<compile_context>
chip_gen: v7x
topology: tpu7x:2x2x1
jax: 0.10.0
libtpu: 0.0.40
codegen_flags: <defaults>
</compile_context>

<pallas_src>
import functools

import jax
import jax.numpy as jnp
from jax import lax
from jax.experimental import pallas as pl
from jax.experimental.pallas import tpu as pltpu


# ----------------------------- conv (spectral norm + fused im2col GEMM) ---------

def _pick_row_tile(Ho, Wo, cout):
    """Rows of output per grid step: whole map when small, else a divisor of Ho whose
    flattened tile (th*Wo) is a lane-dense multiple of 128 and fits a VMEM budget."""
    if Ho * Wo * max(cout, 1) * 4 <= 2 * 1024 * 1024:
        return Ho
    for th in range(Ho, 0, -1):
        if Ho % th == 0 and (th * Wo) % 128 == 0 and th * Wo * cout * 4 <= 2 * 1024 * 1024:
            return th
    return Ho


def _conv_kernel(x_ref, w_ref, o_ref, *, k, s, th, Wo, nT, apply_relu):
    """x_ref: (1, k, s, Cin, Hs*Wo) bf16 phase-decomposed input (per batch, resident
    across the row-tile axis).  w_ref: (k*k, Cout, Cin) bf16 taps.
    o_ref: (1, Cout, th*Wo) -> lane dim is the flattened spatial tile."""
    cout = o_ref.shape[1]
    m = th * Wo
    if nT == 1:
        row0 = 0                                  # fully static slicing
    else:
        row0 = pl.program_id(1) * th
    acc = jnp.zeros((cout, m), jnp.float32)
    for ki in range(k):
        hq, hr = ki // s, ki % s
        for kj in range(k):
            w_tap = w_ref[ki * k + kj]                                    # (Cout, Cin)
            sub = x_ref[0, kj, hr, :, pl.ds((row0 + hq) * Wo, m)]         # (Cin, m)
            acc = acc + jnp.dot(w_tap, sub, preferred_element_type=jnp.float32)
    if apply_relu:
        acc = jnp.maximum(acc, 0.0)
    o_ref[0] = acc.astype(o_ref.dtype)


def conv2d_sn(x, weight, u, k, s, p, apply_relu, out_dtype):
    """Spectrally-normalized Conv2d (bias=False).  NCHW in / NCHW out.
    The k*k-tap im2col contraction is fused inside the Pallas kernel."""
    B, Cin, H, W = x.shape
    Cout = weight.shape[0]

    # --- spectral norm: one power-iteration step (torch semantics), tiny matvecs ---
    w_mat = weight.reshape(Cout, -1)
    v = w_mat.T @ u
    v = v / (jnp.linalg.norm(v) + 1e-12)
    u1 = w_mat @ v
    u1 = u1 / (jnp.linalg.norm(u1) + 1e-12)
    sigma = jnp.dot(u1, w_mat @ v)
    w_n = weight / sigma

    # --- geometry ---
    Ho = (H + 2 * p - k) // s + 1
    Wo = (W + 2 * p - k) // s + 1
    ex = (k - 1) // s
    Hs, Ws = Ho + ex, Wo + ex

    # pad (and crop) so every stride-phase has exactly Hs rows / Ws cols
    xp = jnp.pad(x, ((0, 0), (0, 0), (p, p), (p, p)))
    eh = max(0, s * Hs - xp.shape[2])
    ew = max(0, s * Ws - xp.shape[3])
    xp = jnp.pad(xp, ((0, 0), (0, 0), (0, eh), (0, ew)))[:, :, : s * Hs, : s * Ws]

    # phase / column-window decomposition: xarr[b, kj, hr, c, h*Wo + w]
    #   = xp[b, c, h*s + hr, w*s + kj]
    # so the kernel only ever needs *contiguous* slices of the flattened (Hs*Wo) axis.
    taps = []
    for kj in range(k):
        wr, wq = kj % s, kj // s
        sl = xp[:, :, :, wr::s][:, :, :, wq:wq + Wo]                  # (B, Cin, s*Hs, Wo)
        taps.append(jnp.stack([sl[:, :, hr::s, :] for hr in range(s)], axis=1))
    xarr = jnp.stack(taps, axis=1)                                    # (B, k, s, Cin, Hs, Wo)
    xarr = xarr.reshape(B, k, s, Cin, Hs * Wo).astype(jnp.bfloat16)

    # weight taps in (k*k, Cout, Cin) order, bf16 for the MXU
    w_taps = w_n.transpose(2, 3, 0, 1).reshape(k * k, Cout, Cin).astype(jnp.bfloat16)

    th = _pick_row_tile(Ho, Wo, Cout)
    nT = Ho // th

    kernel = functools.partial(_conv_kernel, k=k, s=s, th=th, Wo=Wo, nT=nT,
                               apply_relu=apply_relu)
    out = pl.pallas_call(
        kernel,
        out_shape=jax.ShapeDtypeStruct((B, Cout, Ho * Wo), out_dtype),
        grid_spec=pltpu.PrefetchScalarGridSpec(
            num_scalar_prefetch=0,
            grid=(B, nT),
            in_specs=[
                # per-batch input stays resident across the row-tile axis
                pl.BlockSpec((1, k, s, Cin, Hs * Wo), lambda b, t: (b, 0, 0, 0, 0)),
                pl.BlockSpec((k * k, Cout, Cin), lambda b, t: (0, 0, 0)),
            ],
            out_specs=pl.BlockSpec((1, Cout, th * Wo), lambda b, t: (b, 0, t)),
        ),
        compiler_params=pltpu.CompilerParams(
            dimension_semantics=("parallel", "parallel"),
            vmem_limit_bytes=32 * 1024 * 1024,
        ),
    )(xarr, w_taps)
    return out.reshape(B, Cout, Ho, Wo)


# ----------------------------- SAGAN self-attention -----------------------------

def _attn_kernel(x_ref, wq_ref, bq_ref, wk_ref, bk_ref, wv_ref, bv_ref,
                 gamma_ref, o_ref, k_sc, v_sc, *, tq, n_tiles):
    """x_ref: (1, C, N) bf16 with N on lanes.  Query dimension tiled by tq.
    K/V are computed once per batch (t == 0) into bf16 VMEM scratch and reused."""

    def compute_kv():
        x_full = x_ref[0]                                              # (C, N)
        kf = jnp.dot(wk_ref[...], x_full,
                     preferred_element_type=jnp.float32) + bk_ref[...]
        vf = jnp.dot(wv_ref[...], x_full,
                     preferred_element_type=jnp.float32) + bv_ref[...]
        k_sc[...] = kf.astype(k_sc.dtype)
        v_sc[...] = vf.astype(v_sc.dtype)

    if n_tiles == 1:
        compute_kv()
        xq = x_ref[0]                                                  # (C, N)
    else:
        @pl.when(pl.program_id(1) == 0)
        def _():
            compute_kv()
        q0 = pl.program_id(1) * tq
        xq = x_ref[0, :, pl.ds(q0, tq)]                                # (C, tq)

    # 1x1 conv for the query block, bf16 operands / f32 accumulation
    q = jnp.dot(wq_ref[...], xq, preferred_element_type=jnp.float32) + bq_ref[...]
    qb = q.astype(jnp.bfloat16)                                        # (C8, tq)

    # energy[nq, nk] = sum_c q[c, nq] * k[c, nk]; softmax over keys (lane axis)
    energy = lax.dot_general(qb, k_sc[...], (((0,), (0,)), ((), ())),
                             preferred_element_type=jnp.float32)       # (tq, N)
    mmax = jnp.max(energy, axis=-1, keepdims=True)
    e = jnp.exp(energy - mmax)
    attn = e * pl.reciprocal(jnp.sum(e, axis=-1, keepdims=True), approx=True)

    # out[c, nq] = sum_nk v[c, nk] * attn[nq, nk]
    out = lax.dot_general(v_sc[...], attn.astype(jnp.bfloat16),
                          (((1,), (1,)), ((), ())),
                          preferred_element_type=jnp.float32)          # (C, tq)
    y = gamma_ref[0] * out + xq.astype(jnp.float32)
    o_ref[0] = y.astype(o_ref.dtype)


def self_attention(x_nchw, p):
    B, C, H, W = x_nchw.shape
    N = H * W
    x_tok = x_nchw.reshape(B, C, N).astype(jnp.bfloat16)               # free reshape, no transpose
    C8 = p["wq"].shape[0]

    tq = N
    if N > 1024:
        for cand in (512, 256, 128):
            if N % cand == 0:
                tq = cand
                break
    n_tiles = N // tq

    kernel = functools.partial(_attn_kernel, tq=tq, n_tiles=n_tiles)
    out = pl.pallas_call(
        kernel,
        out_shape=jax.ShapeDtypeStruct((B, C, N), jnp.bfloat16),
        grid_spec=pltpu.PrefetchScalarGridSpec(
            num_scalar_prefetch=0,
            grid=(B, n_tiles),
            in_specs=[
                pl.BlockSpec((1, C, N), lambda b, t: (b, 0, 0)),
                pl.BlockSpec((C8, C), lambda b, t: (0, 0)),
                pl.BlockSpec((C8, 1), lambda b, t: (0, 0)),
                pl.BlockSpec((C8, C), lambda b, t: (0, 0)),
                pl.BlockSpec((C8, 1), lambda b, t: (0, 0)),
                pl.BlockSpec((C, C), lambda b, t: (0, 0)),
                pl.BlockSpec((C, 1), lambda b, t: (0, 0)),
                pl.BlockSpec(memory_space=pltpu.MemorySpace.SMEM),      # gamma scalar
            ],
            out_specs=pl.BlockSpec((1, C, tq), lambda b, t: (b, 0, t)),
            scratch_shapes=[
                pltpu.VMEM((C8, N), jnp.bfloat16),                      # K scratch
                pltpu.VMEM((C, N), jnp.bfloat16),                       # V scratch
            ],
        ),
        compiler_params=pltpu.CompilerParams(
            dimension_semantics=("parallel", "arbitrary"),
            vmem_limit_bytes=32 * 1024 * 1024,
        ),
    )(x_tok,
      p["wq"].astype(jnp.bfloat16), p["bq"],
      p["wk"].astype(jnp.bfloat16), p["bk"],
      p["wv"].astype(jnp.bfloat16), p["bv"],
      p["gamma"])
    return out.reshape(B, C, H, W)


# ----------------------------- model -----------------------------

def init_params(key, cf, ck):
    n = len(ck)
    keys = jax.random.split(key, 2 * n + 3)
    convs, sn_u = [], []
    for i in range(n):
        fan_in = cf[i] * ck[i] * ck[i]
        convs.append(jax.random.normal(keys[i], (cf[i + 1], cf[i], ck[i], ck[i]),
                                       jnp.float32) * (fan_in ** -0.5))
        u = jax.random.normal(keys[n + i], (cf[i + 1],), jnp.float32)
        sn_u.append(u / (jnp.linalg.norm(u) + 1e-12))
    C = cf[-2]
    C8 = max(C // 8, 1)
    return {
        "convs": convs,
        "sn_u": sn_u,
        "wq": 0.1 * jax.random.normal(keys[2 * n + 0], (C8, C), jnp.float32),
        "bq": jnp.zeros((C8, 1), jnp.float32),
        "wk": 0.1 * jax.random.normal(keys[2 * n + 1], (C8, C), jnp.float32),
        "bk": jnp.zeros((C8, 1), jnp.float32),
        "wv": 0.1 * jax.random.normal(keys[2 * n + 2], (C, C), jnp.float32),
        "bv": jnp.zeros((C, 1), jnp.float32),
        "gamma": jnp.zeros((1,), jnp.float32),   # torch init: gamma = 0
    }


def critic_srgan_forward(x, params, ck, cs, cp):
    n = len(ck)
    h = x
    for lay in range(n - 1):
        h = conv2d_sn(h, params["convs"][lay], params["sn_u"][lay],
                      ck[lay], cs[lay], cp[lay],
                      apply_relu=True, out_dtype=jnp.bfloat16)
    h = self_attention(h, params)
    return conv2d_sn(h, params["convs"][-1], params["sn_u"][-1],
                     ck[-1], cs[-1], cp[-1],
                     apply_relu=False, out_dtype=jnp.float32)


if __name__ == "__main__":
    # small critic config: channels cf, kernel ck, stride cs, pad cp
    cf = [3, 8, 16, 1]
    ck = [3, 3, 3]
    cs = [1, 2, 1]
    cp = [1, 1, 1]

    key = jax.random.PRNGKey(0)
    k_in, k_par = jax.random.split(key)
    x = jax.random.normal(k_in, (2, cf[0], 16, 16), jnp.float32)   # NCHW
    params = init_params(k_par, cf, ck)

    fwd = jax.jit(functools.partial(critic_srgan_forward, ck=ck, cs=cs, cp=cp))
    out = fwd(x, params)
    out = jax.block_until_ready(out)

    assert out.shape == (2, 1, 8, 8), out.shape
    assert bool(jnp.all(jnp.isfinite(out)))
    print("KERNEL_OK")
</pallas_src>

<mosaic_0001>
module attributes {stable_mosaic.version = 11 : i64} {
  func.func @_conv_kernel(%arg0: i32, %arg1: i32, %arg2: memref<1x3x1x3x288xbf16, #tpu.memory_space<vmem>>, %arg3: memref<9x8x3xbf16, #tpu.memory_space<vmem>>, %arg4: memref<1x8x256xbf16, #tpu.memory_space<vmem>>) attributes {dimension_semantics = [#tpu.dimension_semantics<parallel>, #tpu.dimension_semantics<parallel>], iteration_bounds = array<i64: 2, 1>, scalar_prefetch = 0 : i64, scratch_operands = 0 : i64, tpu.core_type = #tpu.core_type<tc>, window_params = [{transform_indices = @transform_0, window_bounds = array<i64: 1, 3, 1, 3, 288>}, {pipeline_mode = #tpu.pipeline_mode<synchronous>, transform_indices = @transform_1, window_bounds = array<i64: 9, 8, 3>}, {transform_indices = @transform_2, window_bounds = array<i64: 1, 8, 256>}]} {
    %cst = arith.constant 0.000000e+00 : f32
    %0 = vector.broadcast %cst : f32 to vector<8x256xf32>
    %c0 = arith.constant 0 : index
    %c0_0 = arith.constant 0 : index
    %c0_1 = arith.constant 0 : index
    %1 = vector.load %arg3[%c0, %c0_0, %c0_1] : memref<9x8x3xbf16, #tpu.memory_space<vmem>>, vector<1x8x3xbf16>
    %2 = vector.shape_cast %1 : vector<1x8x3xbf16> to vector<8x3xbf16>
    %c0_2 = arith.constant 0 : index
    %c0_3 = arith.constant 0 : index
    %c0_4 = arith.constant 0 : index
    %c0_5 = arith.constant 0 : index
    %c0_6 = arith.constant 0 : index
    %3 = vector.load %arg2[%c0_2, %c0_3, %c0_4, %c0_5, %c0_6] : memref<1x3x1x3x288xbf16, #tpu.memory_space<vmem>>, vector<1x1x1x3x256xbf16>
    %4 = vector.shape_cast %3 : vector<1x1x1x3x256xbf16> to vector<3x256xbf16>
    %cst_7 = arith.constant dense<0.000000e+00> : vector<8x256xf32>
    %5 = tpu.matmul %2, %4, %cst_7 {dimension_numbers = #tpu.dot_dimension_numbers<[1], [0], [0], [1], [0, 0, 1, 1], [], []>} : vector<8x3xbf16>, vector<3x256xbf16>, vector<8x256xf32> -> vector<8x256xf32>
    %6 = arith.addf %0, %5 : vector<8x256xf32>
    %c1 = arith.constant 1 : index
    %c0_8 = arith.constant 0 : index
    %c0_9 = arith.constant 0 : index
    %7 = vector.load %arg3[%c1, %c0_8, %c0_9] : memref<9x8x3xbf16, #tpu.memory_space<vmem>>, vector<1x8x3xbf16>
    %8 = vector.shape_cast %7 : vector<1x8x3xbf16> to vector<8x3xbf16>
    %c0_10 = arith.constant 0 : index
    %c1_11 = arith.constant 1 : index
    %c0_12 = arith.constant 0 : index
    %c0_13 = arith.constant 0 : index
    %c0_14 = arith.constant 0 : index
    %9 = vector.load %arg2[%c0_10, %c1_11, %c0_12, %c0_13, %c0_14] : memref<1x3x1x3x288xbf16, #tpu.memory_space<vmem>>, vector<1x1x1x3x256xbf16>
    %10 = vector.shape_cast %9 : vector<1x1x1x3x256xbf16> to vector<3x256xbf16>
    %cst_15 = arith.constant dense<0.000000e+00> : vector<8x256xf32>
    %11 = tpu.matmul %8, %10, %cst_15 {dimension_numbers = #tpu.dot_dimension_numbers<[1], [0], [0], [1], [0, 0, 1, 1], [], []>} : vector<8x3xbf16>, vector<3x256xbf16>, vector<8x256xf32> -> vector<8x256xf32>
    %12 = arith.addf %6, %11 : vector<8x256xf32>
    %c2 = arith.constant 2 : index
    %c0_16 = arith.constant 0 : index
    %c0_17 = arith.constant 0 : index
    %13 = vector.load %arg3[%c2, %c0_16, %c0_17] : memref<9x8x3xbf16, #tpu.memory_space<vmem>>, vector<1x8x3xbf16>
    %14 = vector.shape_cast %13 : vector<1x8x3xbf16> to vector<8x3xbf16>
    %c0_18 = arith.constant 0 : index
    %c2_19 = arith.constant 2 : index
    %c0_20 = arith.constant 0 : index
    %c0_21 = arith.constant 0 : index
    %c0_22 = arith.constant 0 : index
    %15 = vector.load %arg2[%c0_18, %c2_19, %c0_20, %c0_21, %c0_22] : memref<1x3x1x3x288xbf16, #tpu.memory_space<vmem>>, vector<1x1x1x3x256xbf16>
    %16 = vector.shape_cast %15 : vector<1x1x1x3x256xbf16> to vector<3x256xbf16>
    %cst_23 = arith.constant dense<0.000000e+00> : vector<8x256xf32>
    %17 = tpu.matmul %14, %16, %cst_23 {dimension_numbers = #tpu.dot_dimension_numbers<[1], [0], [0], [1], [0, 0, 1, 1], [], []>} : vector<8x3xbf16>, vector<3x256xbf16>, vector<8x256xf32> -> vector<8x256xf32>
    %18 = arith.addf %12, %17 : vector<8x256xf32>
    %c3 = arith.constant 3 : index
    %c0_24 = arith.constant 0 : index
    %c0_25 = arith.constant 0 : index
    %19 = vector.load %arg3[%c3, %c0_24, %c0_25] : memref<9x8x3xbf16, #tpu.memory_space<vmem>>, vector<1x8x3xbf16>
    %20 = vector.shape_cast %19 : vector<1x8x3xbf16> to vector<8x3xbf16>
    %c0_26 = arith.constant 0 : index
    %c0_27 = arith.constant 0 : index
    %c0_28 = arith.constant 0 : index
    %c0_29 = arith.constant 0 : index
    %c16 = arith.constant 16 : index
    %21 = vector.load %arg2[%c0_26, %c0_27, %c0_28, %c0_29, %c16] : memref<1x3x1x3x288xbf16, #tpu.memory_space<vmem>>, vector<1x1x1x3x256xbf16>
    %22 = vector.shape_cast %21 : vector<1x1x1x3x256xbf16> to vector<3x256xbf16>
    %cst_30 = arith.constant dense<0.000000e+00> : vector<8x256xf32>
    %23 = tpu.matmul %20, %22, %cst_30 {dimension_numbers = #tpu.dot_dimension_numbers<[1], [0], [0], [1], [0, 0, 1, 1], [], []>} : vector<8x3xbf16>, vector<3x256xbf16>, vector<8x256xf32> -> vector<8x256xf32>
    %24 = arith.addf %18, %23 : vector<8x256xf32>
    %c4 = arith.constant 4 : index
    %c0_31 = arith.constant 0 : index
    %c0_32 = arith.constant 0 : index
    %25 = vector.load %arg3[%c4, %c0_31, %c0_32] : memref<9x8x3xbf16, #tpu.memory_space<vmem>>, vector<1x8x3xbf16>
    %26 = vector.shape_cast %25 : vector<1x8x3xbf16> to vector<8x3xbf16>
    %c0_33 = arith.constant 0 : index
    %c1_34 = arith.constant 1 : index
    %c0_35 = arith.constant 0 : index
    %c0_36 = arith.constant 0 : index
    %c16_37 = arith.constant 16 : index
    %27 = vector.load %arg2[%c0_33, %c1_34, %c0_35, %c0_36, %c16_37] : memref<1x3x1x3x288xbf16, #tpu.memory_space<vmem>>, vector<1x1x1x3x256xbf16>
    %28 = vector.shape_cast %27 : vector<1x1x1x3x256xbf16> to vector<3x256xbf16>
    %cst_38 = arith.constant dense<0.000000e+00> : vector<8x256xf32>
    %29 = tpu.matmul %26, %28, %cst_38 {dimension_numbers = #tpu.dot_dimension_numbers<[1], [0], [0], [1], [0, 0, 1, 1], [], []>} : vector<8x3xbf16>, vector<3x256xbf16>, vector<8x256xf32> -> vector<8x256xf32>
    %30 = arith.addf %24, %29 : vector<8x256xf32>
    %c5 = arith.constant 5 : index
    %c0_39 = arith.constant 0 : index
    %c0_40 = arith.constant 0 : index
    %31 = vector.load %arg3[%c5, %c0_39, %c0_40] : memref<9x8x3xbf16, #tpu.memory_space<vmem>>, vector<1x8x3xbf16>
    %32 = vector.shape_cast %31 : vector<1x8x3xbf16> to vector<8x3xbf16>
    %c0_41 = arith.constant 0 : index
    %c2_42 = arith.constant 2 : index
    %c0_43 = arith.constant 0 : index
    %c0_44 = arith.constant 0 : index
    %c16_45 = arith.constant 16 : index
    %33 = vector.load %arg2[%c0_41, %c2_42, %c0_43, %c0_44, %c16_45] : memref<1x3x1x3x288xbf16, #tpu.memory_space<vmem>>, vector<1x1x1x3x256xbf16>
    %34 = vector.shape_cast %33 : vector<1x1x1x3x256xbf16> to vector<3x256xbf16>
    %cst_46 = arith.constant dense<0.000000e+00> : vector<8x256xf32>
    %35 = tpu.matmul %32, %34, %cst_46 {dimension_numbers = #tpu.dot_dimension_numbers<[1], [0], [0], [1], [0, 0, 1, 1], [], []>} : vector<8x3xbf16>, vector<3x256xbf16>, vector<8x256xf32> -> vector<8x256xf32>
    %36 = arith.addf %30, %35 : vector<8x256xf32>
    %c6 = arith.constant 6 : index
    %c0_47 = arith.constant 0 : index
    %c0_48 = arith.constant 0 : index
    %37 = vector.load %arg3[%c6, %c0_47, %c0_48] : memref<9x8x3xbf16, #tpu.memory_space<vmem>>, vector<1x8x3xbf16>
    %38 = vector.shape_cast %37 : vector<1x8x3xbf16> to vector<8x3xbf16>
    %c0_49 = arith.constant 0 : index
    %c0_50 = arith.constant 0 : index
    %c0_51 = arith.constant 0 : index
    %c0_52 = arith.constant 0 : index
    %c32 = arith.constant 32 : index
    %39 = vector.load %arg2[%c0_49, %c0_50, %c0_51, %c0_52, %c32] : memref<1x3x1x3x288xbf16, #tpu.memory_space<vmem>>, vector<1x1x1x3x256xbf16>
    %40 = vector.shape_cast %39 : vector<1x1x1x3x256xbf16> to vector<3x256xbf16>
    %cst_53 = arith.constant dense<0.000000e+00> : vector<8x256xf32>
    %41 = tpu.matmul %38, %40, %cst_53 {dimension_numbers = #tpu.dot_dimension_numbers<[1], [0], [0], [1], [0, 0, 1, 1], [], []>} : vector<8x3xbf16>, vector<3x256xbf16>, vector<8x256xf32> -> vector<8x256xf32>
    %42 = arith.addf %36, %41 : vector<8x256xf32>
    %c7 = arith.constant 7 : index
    %c0_54 = arith.constant 0 : index
    %c0_55 = arith.constant 0 : index
    %43 = vector.load %arg3[%c7, %c0_54, %c0_55] : memref<9x8x3xbf16, #tpu.memory_space<vmem>>, vector<1x8x3xbf16>
    %44 = vector.shape_cast %43 : vector<1x8x3xbf16> to vector<8x3xbf16>
    %c0_56 = arith.constant 0 : index
    %c1_57 = arith.constant 1 : index
    %c0_58 = arith.constant 0 : index
    %c0_59 = arith.constant 0 : index
    %c32_60 = arith.constant 32 : index
    %45 = vector.load %arg2[%c0_56, %c1_57, %c0_58, %c0_59, %c32_60] : memref<1x3x1x3x288xbf16, #tpu.memory_space<vmem>>, vector<1x1x1x3x256xbf16>
    %46 = vector.shape_cast %45 : vector<1x1x1x3x256xbf16> to vector<3x256xbf16>
    %cst_61 = arith.constant dense<0.000000e+00> : vector<8x256xf32>
    %47 = tpu.matmul %44, %46, %cst_61 {dimension_numbers = #tpu.dot_dimension_numbers<[1], [0], [0], [1], [0, 0, 1, 1], [], []>} : vector<8x3xbf16>, vector<3x256xbf16>, vector<8x256xf32> -> vector<8x256xf32>
    %48 = arith.addf %42, %47 : vector<8x256xf32>
    %c8 = arith.constant 8 : index
    %c0_62 = arith.constant 0 : index
    %c0_63 = arith.constant 0 : index
    %49 = vector.load %arg3[%c8, %c0_62, %c0_63] : memref<9x8x3xbf16, #tpu.memory_space<vmem>>, vector<1x8x3xbf16>
    %50 = vector.shape_cast %49 : vector<1x8x3xbf16> to vector<8x3xbf16>
    %c0_64 = arith.constant 0 : index
    %c2_65 = arith.constant 2 : index
    %c0_66 = arith.constant 0 : index
    %c0_67 = arith.constant 0 : index
    %c32_68 = arith.constant 32 : index
    %51 = vector.load %arg2[%c0_64, %c2_65, %c0_66, %c0_67, %c32_68] : memref<1x3x1x3x288xbf16, #tpu.memory_space<vmem>>, vector<1x1x1x3x256xbf16>
    %52 = vector.shape_cast %51 : vector<1x1x1x3x256xbf16> to vector<3x256xbf16>
    %cst_69 = arith.constant dense<0.000000e+00> : vector<8x256xf32>
    %53 = tpu.matmul %50, %52, %cst_69 {dimension_numbers = #tpu.dot_dimension_numbers<[1], [0], [0], [1], [0, 0, 1, 1], [], []>} : vector<8x3xbf16>, vector<3x256xbf16>, vector<8x256xf32> -> vector<8x256xf32>
    %54 = arith.addf %48, %53 : vector<8x256xf32>
    %cst_70 = arith.constant 0.000000e+00 : f32
    %55 = vector.broadcast %cst_70 : f32 to vector<8x256xf32>
    %56 = arith.maximumf %54, %55 : vector<8x256xf32>
    %57 = arith.truncf %56 : vector<8x256xf32> to vector<8x256xbf16>
    %c0_71 = arith.constant 0 : index
    %c0_72 = arith.constant 0 : index
    %c0_73 = arith.constant 0 : index
    %58 = vector.load %arg4[%c0_71, %c0_72, %c0_73] : memref<1x8x256xbf16, #tpu.memory_space<vmem>>, vector<1x8x256xbf16>
    %59 = vector.shape_cast %58 : vector<1x8x256xbf16> to vector<8x256xbf16>
    %60 = vector.shape_cast %57 : vector<8x256xbf16> to vector<1x8x256xbf16>
    tpu.vector_store %arg4[%c0_71, %c0_72, %c0_73], %60 {strides = array<i32>} : memref<1x8x256xbf16, #tpu.memory_space<vmem>>, vector<1x8x256xbf16>,
    return
  }
  func.func @transform_0(%arg0: i32, %arg1: i32) -> (i32, i32, i32, i32, i32) {
    %c0_i32 = arith.constant 0 : i32
    %c0_i32_0 = arith.constant 0 : i32
    %c0_i32_1 = arith.constant 0 : i32
    %c0_i32_2 = arith.constant 0 : i32
    %c0_i32_3 = arith.constant 0 : i32
    return %arg0, %c0_i32, %c0_i32_0, %c0_i32_1, %c0_i32_2 : i32, i32, i32, i32, i32
  }
  func.func @transform_1(%arg0: i32, %arg1: i32) -> (i32, i32, i32) {
    %c0_i32 = arith.constant 0 : i32
    %c0_i32_0 = arith.constant 0 : i32
    %c0_i32_1 = arith.constant 0 : i32
    %c0_i32_2 = arith.constant 0 : i32
    return %c0_i32, %c0_i32_0, %c0_i32_1 : i32, i32, i32
  }
  func.func @transform_2(%arg0: i32, %arg1: i32) -> (i32, i32, i32) {
    %c0_i32 = arith.constant 0 : i32
    %c0_i32_0 = arith.constant 0 : i32
    return %arg0, %c0_i32, %arg1 : i32, i32, i32
  }
}

module attributes {stable_mosaic.version = 11 : i64} {
  func.func @_attn_kernel(%arg0: i32, %arg1: i32, %arg2: memref<1x16x64xbf16, #tpu.memory_space<vmem>>, %arg3: memref<2x16xbf16, #tpu.memory_space<vmem>>, %arg4: memref<2x1xf32, #tpu.memory_space<vmem>>, %arg5: memref<2x16xbf16, #tpu.memory_space<vmem>>, %arg6: memref<2x1xf32, #tpu.memory_space<vmem>>, %arg7: memref<16x16xbf16, #tpu.memory_space<vmem>>, %arg8: memref<16x1xf32, #tpu.memory_space<vmem>>, %arg9: memref<1xf32, #tpu.memory_space<smem>>, %arg10: memref<1x16x64xbf16, #tpu.memory_space<vmem>>, %arg11: memref<2x64xbf16, #tpu.memory_space<vmem>>, %arg12: memref<16x64xbf16, #tpu.memory_space<vmem>>) attributes {dimension_semantics = [#tpu.dimension_semantics<parallel>, #tpu.dimension_semantics<arbitrary>], iteration_bounds = array<i64: 2, 1>, scalar_prefetch = 0 : i64, scratch_operands = 2 : i64, tpu.core_type = #tpu.core_type<tc>, window_params = [{transform_indices = @transform_0, window_bounds = array<i64: 1, 16, 64>}, {pipeline_mode = #tpu.pipeline_mode<synchronous>, transform_indices = @transform_1, window_bounds = array<i64: 2, 16>}, {pipeline_mode = #tpu.pipeline_mode<synchronous>, transform_indices = @transform_2, window_bounds = array<i64: 2, 1>}, {pipeline_mode = #tpu.pipeline_mode<synchronous>, transform_indices = @transform_3, window_bounds = array<i64: 2, 16>}, {pipeline_mode = #tpu.pipeline_mode<synchronous>, transform_indices = @transform_4, window_bounds = array<i64: 2, 1>}, {pipeline_mode = #tpu.pipeline_mode<synchronous>, transform_indices = @transform_5, window_bounds = array<i64: 16, 16>}, {pipeline_mode = #tpu.pipeline_mode<synchronous>, transform_indices = @transform_6, window_bounds = array<i64: 16, 1>}, {transform_indices = @transform_7, window_bounds = array<i64: 1>}, {transform_indices = @transform_8, window_bounds = array<i64: 1, 16, 64>}]} {
    %c0 = arith.constant 0 : index
    %c0_0 = arith.constant 0 : index
    %c0_1 = arith.constant 0 : index
    %0 = vector.load %arg2[%c0, %c0_0, %c0_1] : memref<1x16x64xbf16, #tpu.memory_space<vmem>>, vector<1x16x64xbf16>
    %1 = vector.shape_cast %0 : vector<1x16x64xbf16> to vector<16x64xbf16>
    %c0_2 = arith.constant 0 : index
    %c0_3 = arith.constant 0 : index
    %2 = vector.load %arg5[%c0_2, %c0_3] : memref<2x16xbf16, #tpu.memory_space<vmem>>, vector<2x16xbf16>
    %cst = arith.constant dense<0.000000e+00> : vector<2x64xf32>
    %3 = tpu.matmul %2, %1, %cst {dimension_numbers = #tpu.dot_dimension_numbers<[1], [0], [0], [1], [0, 0, 1, 1], [], []>} : vector<2x16xbf16>, vector<16x64xbf16>, vector<2x64xf32> -> vector<2x64xf32>
    %c0_4 = arith.constant 0 : index
    %c0_5 = arith.constant 0 : index
    %4 = vector.load %arg6[%c0_4, %c0_5] : memref<2x1xf32, #tpu.memory_space<vmem>>, vector<2x1xf32>
    %5 = vector.broadcast %4 : vector<2x1xf32> to vector<2x64xf32>
    %6 = arith.addf %3, %5 : vector<2x64xf32>
    %c0_6 = arith.constant 0 : index
    %c0_7 = arith.constant 0 : index
    %7 = vector.load %arg7[%c0_6, %c0_7] : memref<16x16xbf16, #tpu.memory_space<vmem>>, vector<16x16xbf16>
    %cst_8 = arith.constant dense<0.000000e+00> : vector<16x64xf32>
    %8 = tpu.matmul %7, %1, %cst_8 {dimension_numbers = #tpu.dot_dimension_numbers<[1], [0], [0], [1], [0, 0, 1, 1], [], []>} : vector<16x16xbf16>, vector<16x64xbf16>, vector<16x64xf32> -> vector<16x64xf32>
    %c0_9 = arith.constant 0 : index
    %c0_10 = arith.constant 0 : index
    %9 = vector.load %arg8[%c0_9, %c0_10] : memref<16x1xf32, #tpu.memory_space<vmem>>, vector<16x1xf32>
    %10 = vector.broadcast %9 : vector<16x1xf32> to vector<16x64xf32>
    %11 = arith.addf %8, %10 : vector<16x64xf32>
    %12 = arith.truncf %6 : vector<2x64xf32> to vector<2x64xbf16>
    %c0_11 = arith.constant 0 : index
    %c0_12 = arith.constant 0 : index
    %13 = vector.load %arg11[%c0_11, %c0_12] : memref<2x64xbf16, #tpu.memory_space<vmem>>, vector<2x64xbf16>
    tpu.vector_store %arg11[%c0_11, %c0_12], %12 {strides = array<i32>} : memref<2x64xbf16, #tpu.memory_space<vmem>>, vector<2x64xbf16>,
    %14 = arith.truncf %11 : vector<16x64xf32> to vector<16x64xbf16>
    %c0_13 = arith.constant 0 : index
    %c0_14 = arith.constant 0 : index
    %15 = vector.load %arg12[%c0_13, %c0_14] : memref<16x64xbf16, #tpu.memory_space<vmem>>, vector<16x64xbf16>
    tpu.vector_store %arg12[%c0_13, %c0_14], %14 {strides = array<i32>} : memref<16x64xbf16, #tpu.memory_space<vmem>>, vector<16x64xbf16>,
    %c0_15 = arith.constant 0 : index
    %c0_16 = arith.constant 0 : index
    %c0_17 = arith.constant 0 : index
    %16 = vector.load %arg2[%c0_15, %c0_16, %c0_17] : memref<1x16x64xbf16, #tpu.memory_space<vmem>>, vector<1x16x64xbf16>
    %17 = vector.shape_cast %16 : vector<1x16x64xbf16> to vector<16x64xbf16>
    %c0_18 = arith.constant 0 : index
    %c0_19 = arith.constant 0 : index
    %18 = vector.load %arg3[%c0_18, %c0_19] : memref<2x16xbf16, #tpu.memory_space<vmem>>, vector<2x16xbf16>
    %cst_20 = arith.constant dense<0.000000e+00> : vector<2x64xf32>
    %19 = tpu.matmul %18, %17, %cst_20 {dimension_numbers = #tpu.dot_dimension_numbers<[1], [0], [0], [1], [0, 0, 1, 1], [], []>} : vector<2x16xbf16>, vector<16x64xbf16>, vector<2x64xf32> -> vector<2x64xf32>
    %c0_21 = arith.constant 0 : index
    %c0_22 = arith.constant 0 : index
    %20 = vector.load %arg4[%c0_21, %c0_22] : memref<2x1xf32, #tpu.memory_space<vmem>>, vector<2x1xf32>
    %21 = vector.broadcast %20 : vector<2x1xf32> to vector<2x64xf32>
    %22 = arith.addf %19, %21 : vector<2x64xf32>
    %23 = arith.truncf %22 : vector<2x64xf32> to vector<2x64xbf16>
    %c0_23 = arith.constant 0 : index
    %c0_24 = arith.constant 0 : index
    %24 = vector.load %arg11[%c0_23, %c0_24] : memref<2x64xbf16, #tpu.memory_space<vmem>>, vector<2x64xbf16>
    %cst_25 = arith.constant dense<0.000000e+00> : vector<64x64xf32>
    %25 = tpu.matmul %23, %24, %cst_25 {dimension_numbers = #tpu.dot_dimension_numbers<[0], [0], [1], [1], [0, 1, 1, 1], [], []>} : vector<2x64xbf16>, vector<2x64xbf16>, vector<64x64xf32> -> vector<64x64xf32>
    %cst_26 = arith.constant dense<0xFF800000> : vector<64xf32>
    %26 = vector.multi_reduction <maximumf>, %25, %cst_26 [1] : vector<64x64xf32> to vector<64xf32>
    %27 = vector.shape_cast %26 : vector<64xf32> to vector<64x1xf32>
    %28 = vector.broadcast %27 : vector<64x1xf32> to vector<64x64xf32>
    %29 = arith.subf %25, %28 : vector<64x64xf32>
    %30 = math.exp %29 : vector<64x64xf32>
    %cst_27 = arith.constant dense<0.000000e+00> : vector<64xf32>
    %31 = vector.multi_reduction <add>, %30, %cst_27 [1] : vector<64x64xf32> to vector<64xf32>
    %32 = vector.shape_cast %31 : vector<64xf32> to vector<64x1xf32>
    %33 = tpu.reciprocal %32 {approx = true} : vector<64x1xf32> -> vector<64x1xf32>
    %34 = vector.broadcast %33 : vector<64x1xf32> to vector<64x64xf32>
    %35 = arith.mulf %30, %34 : vector<64x64xf32>
    %c0_28 = arith.constant 0 : index
    %c0_29 = arith.constant 0 : index
    %36 = vector.load %arg12[%c0_28, %c0_29] : memref<16x64xbf16, #tpu.memory_space<vmem>>, vector<16x64xbf16>
    %37 = arith.truncf %35 : vector<64x64xf32> to vector<64x64xbf16>
    %cst_30 = arith.constant dense<0.000000e+00> : vector<16x64xf32>
    %38 = tpu.matmul %36, %37, %cst_30 {dimension_numbers = #tpu.dot_dimension_numbers<[1], [1], [0], [0], [0, 0, 1, 0], [], []>} : vector<16x64xbf16>, vector<64x64xbf16>, vector<16x64xf32> -> vector<16x64xf32>
    %c0_31 = arith.constant 0 : index
    %39 = memref.load %arg9[%c0_31] : memref<1xf32, #tpu.memory_space<smem>>
    %40 = vector.broadcast %39 : f32 to vector<16x64xf32>
    %41 = arith.mulf %40, %38 : vector<16x64xf32>
    %42 = arith.extf %17 : vector<16x64xbf16> to vector<16x64xf32>
    %43 = arith.addf %41, %42 : vector<16x64xf32>
    %44 = arith.truncf %43 : vector<16x64xf32> to vector<16x64xbf16>
    %c0_32 = arith.constant 0 : index
    %c0_33 = arith.constant 0 : index
    %c0_34 = arith.constant 0 : index
    %45 = vector.load %arg10[%c0_32, %c0_33, %c0_34] : memref<1x16x64xbf16, #tpu.memory_space<vmem>>, vector<1x16x64xbf16>
    %46 = vector.shape_cast %45 : vector<1x16x64xbf16> to vector<16x64xbf16>
    %47 = vector.shape_cast %44 : vector<16x64xbf16> to vector<1x16x64xbf16>
    tpu.vector_store %arg10[%c0_32, %c0_33, %c0_34], %47 {strides = array<i32>} : memref<1x16x64xbf16, #tpu.memory_space<vmem>>, vector<1x16x64xbf16>,
    return
  }
  func.func @transform_0(%arg0: i32, %arg1: i32) -> (i32, i32, i32) {
    %c0_i32 = arith.constant 0 : i32
    %c0_i32_0 = arith.constant 0 : i32
    %c0_i32_1 = arith.constant 0 : i32
    return %arg0, %c0_i32, %c0_i32_0 : i32, i32, i32
  }
  func.func @transform_1(%arg0: i32, %arg1: i32) -> (i32, i32) {
    %c0_i32 = arith.constant 0 : i32
    %c0_i32_0 = arith.constant 0 : i32
    %c0_i32_1 = arith.constant 0 : i32
    return %c0_i32, %c0_i32_0 : i32, i32
  }
  func.func @transform_2(%arg0: i32, %arg1: i32) -> (i32, i32) {
    %c0_i32 = arith.constant 0 : i32
    %c0_i32_0 = arith.constant 0 : i32
    %c0_i32_1 = arith.constant 0 : i32
    return %c0_i32, %c0_i32_0 : i32, i32
  }
  func.func @transform_3(%arg0: i32, %arg1: i32) -> (i32, i32) {
    %c0_i32 = arith.constant 0 : i32
    %c0_i32_0 = arith.constant 0 : i32
    %c0_i32_1 = arith.constant 0 : i32
    return %c0_i32, %c0_i32_0 : i32, i32
  }
  func.func @transform_4(%arg0: i32, %arg1: i32) -> (i32, i32) {
    %c0_i32 = arith.constant 0 : i32
    %c0_i32_0 = arith.constant 0 : i32
    %c0_i32_1 = arith.constant 0 : i32
    return %c0_i32, %c0_i32_0 : i32, i32
  }
  func.func @transform_5(%arg0: i32, %arg1: i32) -> (i32, i32) {
    %c0_i32 = arith.constant 0 : i32
    %c0_i32_0 = arith.constant 0 : i32
    %c0_i32_1 = arith.constant 0 : i32
    return %c0_i32, %c0_i32_0 : i32, i32
  }
  func.func @transform_6(%arg0: i32, %arg1: i32) -> (i32, i32) {
    %c0_i32 = arith.constant 0 : i32
    %c0_i32_0 = arith.constant 0 : i32
    %c0_i32_1 = arith.constant 0 : i32
    return %c0_i32, %c0_i32_0 : i32, i32
  }
  func.func @transform_7(%arg0: i32, %arg1: i32) -> i32 {
    %c0_i32 = arith.constant 0 : i32
    %c0_i32_0 = arith.constant 0 : i32
    return %c0_i32 : i32
  }
  func.func @transform_8(%arg0: i32, %arg1: i32) -> (i32, i32, i32) {
    %c0_i32 = arith.constant 0 : i32
    %c0_i32_0 = arith.constant 0 : i32
    return %arg0, %c0_i32, %arg1 : i32, i32, i32
  }
}

module attributes {stable_mosaic.version = 11 : i64} {
  func.func @_conv_kernel(%arg0: i32, %arg1: i32, %arg2: memref<1x3x2x8x72xbf16, #tpu.memory_space<vmem>>, %arg3: memref<9x16x8xbf16, #tpu.memory_space<vmem>>, %arg4: memref<1x16x64xbf16, #tpu.memory_space<vmem>>) attributes {dimension_semantics = [#tpu.dimension_semantics<parallel>, #tpu.dimension_semantics<parallel>], iteration_bounds = array<i64: 2, 1>, scalar_prefetch = 0 : i64, scratch_operands = 0 : i64, tpu.core_type = #tpu.core_type<tc>, window_params = [{transform_indices = @transform_0, window_bounds = array<i64: 1, 3, 2, 8, 72>}, {pipeline_mode = #tpu.pipeline_mode<synchronous>, transform_indices = @transform_1, window_bounds = array<i64: 9, 16, 8>}, {transform_indices = @transform_2, window_bounds = array<i64: 1, 16, 64>}]} {
    %cst = arith.constant 0.000000e+00 : f32
    %0 = vector.broadcast %cst : f32 to vector<16x64xf32>
    %c0 = arith.constant 0 : index
    %c0_0 = arith.constant 0 : index
    %c0_1 = arith.constant 0 : index
    %1 = vector.load %arg3[%c0, %c0_0, %c0_1] : memref<9x16x8xbf16, #tpu.memory_space<vmem>>, vector<1x16x8xbf16>
    %2 = vector.shape_cast %1 : vector<1x16x8xbf16> to vector<16x8xbf16>
    %c0_2 = arith.constant 0 : index
    %c0_3 = arith.constant 0 : index
    %c0_4 = arith.constant 0 : index
    %c0_5 = arith.constant 0 : index
    %c0_6 = arith.constant 0 : index
    %3 = vector.load %arg2[%c0_2, %c0_3, %c0_4, %c0_5, %c0_6] : memref<1x3x2x8x72xbf16, #tpu.memory_space<vmem>>, vector<1x1x1x8x64xbf16>
    %4 = vector.shape_cast %3 : vector<1x1x1x8x64xbf16> to vector<8x64xbf16>
    %cst_7 = arith.constant dense<0.000000e+00> : vector<16x64xf32>
    %5 = tpu.matmul %2, %4, %cst_7 {dimension_numbers = #tpu.dot_dimension_numbers<[1], [0], [0], [1], [0, 0, 1, 1], [], []>} : vector<16x8xbf16>, vector<8x64xbf16>, vector<16x64xf32> -> vector<16x64xf32>
    %6 = arith.addf %0, %5 : vector<16x64xf32>
    %c1 = arith.constant 1 : index
    %c0_8 = arith.constant 0 : index
    %c0_9 = arith.constant 0 : index
    %7 = vector.load %arg3[%c1, %c0_8, %c0_9] : memref<9x16x8xbf16, #tpu.memory_space<vmem>>, vector<1x16x8xbf16>
    %8 = vector.shape_cast %7 : vector<1x16x8xbf16> to vector<16x8xbf16>
    %c0_10 = arith.constant 0 : index
    %c1_11 = arith.constant 1 : index
    %c0_12 = arith.constant 0 : index
    %c0_13 = arith.constant 0 : index
    %c0_14 = arith.constant 0 : index
    %9 = vector.load %arg2[%c0_10, %c1_11, %c0_12, %c0_13, %c0_14] : memref<1x3x2x8x72xbf16, #tpu.memory_space<vmem>>, vector<1x1x1x8x64xbf16>
    %10 = vector.shape_cast %9 : vector<1x1x1x8x64xbf16> to vector<8x64xbf16>
    %cst_15 = arith.constant dense<0.000000e+00> : vector<16x64xf32>
    %11 = tpu.matmul %8, %10, %cst_15 {dimension_numbers = #tpu.dot_dimension_numbers<[1], [0], [0], [1], [0, 0, 1, 1], [], []>} : vector<16x8xbf16>, vector<8x64xbf16>, vector<16x64xf32> -> vector<16x64xf32>
    %12 = arith.addf %6, %11 : vector<16x64xf32>
    %c2 = arith.constant 2 : index
    %c0_16 = arith.constant 0 : index
    %c0_17 = arith.constant 0 : index
    %13 = vector.load %arg3[%c2, %c0_16, %c0_17] : memref<9x16x8xbf16, #tpu.memory_space<vmem>>, vector<1x16x8xbf16>
    %14 = vector.shape_cast %13 : vector<1x16x8xbf16> to vector<16x8xbf16>
    %c0_18 = arith.constant 0 : index
    %c2_19 = arith.constant 2 : index
    %c0_20 = arith.constant 0 : index
    %c0_21 = arith.constant 0 : index
    %c0_22 = arith.constant 0 : index
    %15 = vector.load %arg2[%c0_18, %c2_19, %c0_20, %c0_21, %c0_22] : memref<1x3x2x8x72xbf16, #tpu.memory_space<vmem>>, vector<1x1x1x8x64xbf16>
    %16 = vector.shape_cast %15 : vector<1x1x1x8x64xbf16> to vector<8x64xbf16>
    %cst_23 = arith.constant dense<0.000000e+00> : vector<16x64xf32>
    %17 = tpu.matmul %14, %16, %cst_23 {dimension_numbers = #tpu.dot_dimension_numbers<[1], [0], [0], [1], [0, 0, 1, 1], [], []>} : vector<16x8xbf16>, vector<8x64xbf16>, vector<16x64xf32> -> vector<16x64xf32>
    %18 = arith.addf %12, %17 : vector<16x64xf32>
    %c3 = arith.constant 3 : index
    %c0_24 = arith.constant 0 : index
    %c0_25 = arith.constant 0 : index
    %19 = vector.load %arg3[%c3, %c0_24, %c0_25] : memref<9x16x8xbf16, #tpu.memory_space<vmem>>, vector<1x16x8xbf16>
    %20 = vector.shape_cast %19 : vector<1x16x8xbf16> to vector<16x8xbf16>
    %c0_26 = arith.constant 0 : index
    %c0_27 = arith.constant 0 : index
    %c1_28 = arith.constant 1 : index
    %c0_29 = arith.constant 0 : index
    %c0_30 = arith.constant 0 : index
    %21 = vector.load %arg2[%c0_26, %c0_27, %c1_28, %c0_29, %c0_30] : memref<1x3x2x8x72xbf16, #tpu.memory_space<vmem>>, vector<1x1x1x8x64xbf16>
    %22 = vector.shape_cast %21 : vector<1x1x1x8x64xbf16> to vector<8x64xbf16>
    %cst_31 = arith.constant dense<0.000000e+00> : vector<16x64xf32>
    %23 = tpu.matmul %20, %22, %cst_31 {dimension_numbers = #tpu.dot_dimension_numbers<[1], [0], [0], [1], [0, 0, 1, 1], [], []>} : vector<16x8xbf16>, vector<8x64xbf16>, vector<16x64xf32> -> vector<16x64xf32>
    %24 = arith.addf %18, %23 : vector<16x64xf32>
    %c4 = arith.constant 4 : index
    %c0_32 = arith.constant 0 : index
    %c0_33 = arith.constant 0 : index
    %25 = vector.load %arg3[%c4, %c0_32, %c0_33] : memref<9x16x8xbf16, #tpu.memory_space<vmem>>, vector<1x16x8xbf16>
    %26 = vector.shape_cast %25 : vector<1x16x8xbf16> to vector<16x8xbf16>
    %c0_34 = arith.constant 0 : index
    %c1_35 = arith.constant 1 : index
    %c1_36 = arith.constant 1 : index
    %c0_37 = arith.constant 0 : index
    %c0_38 = arith.constant 0 : index
    %27 = vector.load %arg2[%c0_34, %c1_35, %c1_36, %c0_37, %c0_38] : memref<1x3x2x8x72xbf16, #tpu.memory_space<vmem>>, vector<1x1x1x8x64xbf16>
    %28 = vector.shape_cast %27 : vector<1x1x1x8x64xbf16> to vector<8x64xbf16>
    %cst_39 = arith.constant dense<0.000000e+00> : vector<16x64xf32>
    %29 = tpu.matmul %26, %28, %cst_39 {dimension_numbers = #tpu.dot_dimension_numbers<[1], [0], [0], [1], [0, 0, 1, 1], [], []>} : vector<16x8xbf16>, vector<8x64xbf16>, vector<16x64xf32> -> vector<16x64xf32>
    %30 = arith.addf %24, %29 : vector<16x64xf32>
    %c5 = arith.constant 5 : index
    %c0_40 = arith.constant 0 : index
    %c0_41 = arith.constant 0 : index
    %31 = vector.load %arg3[%c5, %c0_40, %c0_41] : memref<9x16x8xbf16, #tpu.memory_space<vmem>>, vector<1x16x8xbf16>
    %32 = vector.shape_cast %31 : vector<1x16x8xbf16> to vector<16x8xbf16>
    %c0_42 = arith.constant 0 : index
    %c2_43 = arith.constant 2 : index
    %c1_44 = arith.constant 1 : index
    %c0_45 = arith.constant 0 : index
    %c0_46 = arith.constant 0 : index
    %33 = vector.load %arg2[%c0_42, %c2_43, %c1_44, %c0_45, %c0_46] : memref<1x3x2x8x72xbf16, #tpu.memory_space<vmem>>, vector<1x1x1x8x64xbf16>
    %34 = vector.shape_cast %33 : vector<1x1x1x8x64xbf16> to vector<8x64xbf16>
    %cst_47 = arith.constant dense<0.000000e+00> : vector<16x64xf32>
    %35 = tpu.matmul %32, %34, %cst_47 {dimension_numbers = #tpu.dot_dimension_numbers<[1], [0], [0], [1], [0, 0, 1, 1], [], []>} : vector<16x8xbf16>, vector<8x64xbf16>, vector<16x64xf32> -> vector<16x64xf32>
    %36 = arith.addf %30, %35 : vector<16x64xf32>
    %c6 = arith.constant 6 : index
    %c0_48 = arith.constant 0 : index
    %c0_49 = arith.constant 0 : index
    %37 = vector.load %arg3[%c6, %c0_48, %c0_49] : memref<9x16x8xbf16, #tpu.memory_space<vmem>>, vector<1x16x8xbf16>
    %38 = vector.shape_cast %37 : vector<1x16x8xbf16> to vector<16x8xbf16>
    %c0_50 = arith.constant 0 : index
    %c0_51 = arith.constant 0 : index
    %c0_52 = arith.constant 0 : index
    %c0_53 = arith.constant 0 : index
    %c8 = arith.constant 8 : index
    %39 = vector.load %arg2[%c0_50, %c0_51, %c0_52, %c0_53, %c8] : memref<1x3x2x8x72xbf16, #tpu.memory_space<vmem>>, vector<1x1x1x8x64xbf16>
    %40 = vector.shape_cast %39 : vector<1x1x1x8x64xbf16> to vector<8x64xbf16>
    %cst_54 = arith.constant dense<0.000000e+00> : vector<16x64xf32>
    %41 = tpu.matmul %38, %40, %cst_54 {dimension_numbers = #tpu.dot_dimension_numbers<[1], [0], [0], [1], [0, 0, 1, 1], [], []>} : vector<16x8xbf16>, vector<8x64xbf16>, vector<16x64xf32> -> vector<16x64xf32>
    %42 = arith.addf %36, %41 : vector<16x64xf32>
    %c7 = arith.constant 7 : index
    %c0_55 = arith.constant 0 : index
    %c0_56 = arith.constant 0 : index
    %43 = vector.load %arg3[%c7, %c0_55, %c0_56] : memref<9x16x8xbf16, #tpu.memory_space<vmem>>, vector<1x16x8xbf16>
    %44 = vector.shape_cast %43 : vector<1x16x8xbf16> to vector<16x8xbf16>
    %c0_57 = arith.constant 0 : index
    %c1_58 = arith.constant 1 : index
    %c0_59 = arith.constant 0 : index
    %c0_60 = arith.constant 0 : index
    %c8_61 = arith.constant 8 : index
    %45 = vector.load %arg2[%c0_57, %c1_58, %c0_59, %c0_60, %c8_61] : memref<1x3x2x8x72xbf16, #tpu.memory_space<vmem>>, vector<1x1x1x8x64xbf16>
    %46 = vector.shape_cast %45 : vector<1x1x1x8x64xbf16> to vector<8x64xbf16>
    %cst_62 = arith.constant dense<0.000000e+00> : vector<16x64xf32>
    %47 = tpu.matmul %44, %46, %cst_62 {dimension_numbers = #tpu.dot_dimension_numbers<[1], [0], [0], [1], [0, 0, 1, 1], [], []>} : vector<16x8xbf16>, vector<8x64xbf16>, vector<16x64xf32> -> vector<16x64xf32>
    %48 = arith.addf %42, %47 : vector<16x64xf32>
    %c8_63 = arith.constant 8 : index
    %c0_64 = arith.constant 0 : index
    %c0_65 = arith.constant 0 : index
    %49 = vector.load %arg3[%c8_63, %c0_64, %c0_65] : memref<9x16x8xbf16, #tpu.memory_space<vmem>>, vector<1x16x8xbf16>
    %50 = vector.shape_cast %49 : vector<1x16x8xbf16> to vector<16x8xbf16>
    %c0_66 = arith.constant 0 : index
    %c2_67 = arith.constant 2 : index
    %c0_68 = arith.constant 0 : index
    %c0_69 = arith.constant 0 : index
    %c8_70 = arith.constant 8 : index
    %51 = vector.load %arg2[%c0_66, %c2_67, %c0_68, %c0_69, %c8_70] : memref<1x3x2x8x72xbf16, #tpu.memory_space<vmem>>, vector<1x1x1x8x64xbf16>
    %52 = vector.shape_cast %51 : vector<1x1x1x8x64xbf16> to vector<8x64xbf16>
    %cst_71 = arith.constant dense<0.000000e+00> : vector<16x64xf32>
    %53 = tpu.matmul %50, %52, %cst_71 {dimension_numbers = #tpu.dot_dimension_numbers<[1], [0], [0], [1], [0, 0, 1, 1], [], []>} : vector<16x8xbf16>, vector<8x64xbf16>, vector<16x64xf32> -> vector<16x64xf32>
    %54 = arith.addf %48, %53 : vector<16x64xf32>
    %cst_72 = arith.constant 0.000000e+00 : f32
    %55 = vector.broadcast %cst_72 : f32 to vector<16x64xf32>
    %56 = arith.maximumf %54, %55 : vector<16x64xf32>
    %57 = arith.truncf %56 : vector<16x64xf32> to vector<16x64xbf16>
    %c0_73 = arith.constant 0 : index
    %c0_74 = arith.constant 0 : index
    %c0_75 = arith.constant 0 : index
    %58 = vector.load %arg4[%c0_73, %c0_74, %c0_75] : memref<1x16x64xbf16, #tpu.memory_space<vmem>>, vector<1x16x64xbf16>
    %59 = vector.shape_cast %58 : vector<1x16x64xbf16> to vector<16x64xbf16>
    %60 = vector.shape_cast %57 : vector<16x64xbf16> to vector<1x16x64xbf16>
    tpu.vector_store %arg4[%c0_73, %c0_74, %c0_75], %60 {strides = array<i32>} : memref<1x16x64xbf16, #tpu.memory_space<vmem>>, vector<1x16x64xbf16>,
    return
  }
  func.func @transform_0(%arg0: i32, %arg1: i32) -> (i32, i32, i32, i32, i32) {
    %c0_i32 = arith.constant 0 : i32
    %c0_i32_0 = arith.constant 0 : i32
    %c0_i32_1 = arith.constant 0 : i32
    %c0_i32_2 = arith.constant 0 : i32
    %c0_i32_3 = arith.constant 0 : i32
    return %arg0, %c0_i32, %c0_i32_0, %c0_i32_1, %c0_i32_2 : i32, i32, i32, i32, i32
  }
  func.func @transform_1(%arg0: i32, %arg1: i32) -> (i32, i32, i32) {
    %c0_i32 = arith.constant 0 : i32
    %c0_i32_0 = arith.constant 0 : i32
    %c0_i32_1 = arith.constant 0 : i32
    %c0_i32_2 = arith.constant 0 : i32
    return %c0_i32, %c0_i32_0, %c0_i32_1 : i32, i32, i32
  }
  func.func @transform_2(%arg0: i32, %arg1: i32) -> (i32, i32, i32) {
    %c0_i32 = arith.constant 0 : i32
    %c0_i32_0 = arith.constant 0 : i32
    return %arg0, %c0_i32, %arg1 : i32, i32, i32
  }
}

module attributes {stable_mosaic.version = 11 : i64} {
  func.func @_conv_kernel(%arg0: i32, %arg1: i32, %arg2: memref<1x3x1x16x80xbf16, #tpu.memory_space<vmem>>, %arg3: memref<9x1x16xbf16, #tpu.memory_space<vmem>>, %arg4: memref<1x1x64xf32, #tpu.memory_space<vmem>>) attributes {dimension_semantics = [#tpu.dimension_semantics<parallel>, #tpu.dimension_semantics<parallel>], iteration_bounds = array<i64: 2, 1>, scalar_prefetch = 0 : i64, scratch_operands = 0 : i64, tpu.core_type = #tpu.core_type<tc>, window_params = [{transform_indices = @transform_0, window_bounds = array<i64: 1, 3, 1, 16, 80>}, {pipeline_mode = #tpu.pipeline_mode<synchronous>, transform_indices = @transform_1, window_bounds = array<i64: 9, 1, 16>}, {transform_indices = @transform_2, window_bounds = array<i64: 1, 1, 64>}]} {
    %cst = arith.constant 0.000000e+00 : f32
    %0 = vector.broadcast %cst : f32 to vector<1x64xf32>
    %c0 = arith.constant 0 : index
    %c0_0 = arith.constant 0 : index
    %c0_1 = arith.constant 0 : index
    %1 = vector.load %arg3[%c0, %c0_0, %c0_1] : memref<9x1x16xbf16, #tpu.memory_space<vmem>>, vector<1x1x16xbf16>
    %2 = vector.shape_cast %1 : vector<1x1x16xbf16> to vector<1x16xbf16>
    %c0_2 = arith.constant 0 : index
    %c0_3 = arith.constant 0 : index
    %c0_4 = arith.constant 0 : index
    %c0_5 = arith.constant 0 : index
    %c0_6 = arith.constant 0 : index
    %3 = vector.load %arg2[%c0_2, %c0_3, %c0_4, %c0_5, %c0_6] : memref<1x3x1x16x80xbf16, #tpu.memory_space<vmem>>, vector<1x1x1x16x64xbf16>
    %4 = vector.shape_cast %3 : vector<1x1x1x16x64xbf16> to vector<16x64xbf16>
    %cst_7 = arith.constant dense<0.000000e+00> : vector<1x64xf32>
    %5 = tpu.matmul %2, %4, %cst_7 {dimension_numbers = #tpu.dot_dimension_numbers<[1], [0], [0], [1], [0, 0, 1, 1], [], []>} : vector<1x16xbf16>, vector<16x64xbf16>, vector<1x64xf32> -> vector<1x64xf32>
    %6 = arith.addf %0, %5 : vector<1x64xf32>
    %c1 = arith.constant 1 : index
    %c0_8 = arith.constant 0 : index
    %c0_9 = arith.constant 0 : index
    %7 = vector.load %arg3[%c1, %c0_8, %c0_9] : memref<9x1x16xbf16, #tpu.memory_space<vmem>>, vector<1x1x16xbf16>
    %8 = vector.shape_cast %7 : vector<1x1x16xbf16> to vector<1x16xbf16>
    %c0_10 = arith.constant 0 : index
    %c1_11 = arith.constant 1 : index
    %c0_12 = arith.constant 0 : index
    %c0_13 = arith.constant 0 : index
    %c0_14 = arith.constant 0 : index
    %9 = vector.load %arg2[%c0_10, %c1_11, %c0_12, %c0_13, %c0_14] : memref<1x3x1x16x80xbf16, #tpu.memory_space<vmem>>, vector<1x1x1x16x64xbf16>
    %10 = vector.shape_cast %9 : vector<1x1x1x16x64xbf16> to vector<16x64xbf16>
    %cst_15 = arith.constant dense<0.000000e+00> : vector<1x64xf32>
    %11 = tpu.matmul %8, %10, %cst_15 {dimension_numbers = #tpu.dot_dimension_numbers<[1], [0], [0], [1], [0, 0, 1, 1], [], []>} : vector<1x16xbf16>, vector<16x64xbf16>, vector<1x64xf32> -> vector<1x64xf32>
    %12 = arith.addf %6, %11 : vector<1x64xf32>
    %c2 = arith.constant 2 : index
    %c0_16 = arith.constant 0 : index
    %c0_17 = arith.constant 0 : index
    %13 = vector.load %arg3[%c2, %c0_16, %c0_17] : memref<9x1x16xbf16, #tpu.memory_space<vmem>>, vector<1x1x16xbf16>
    %14 = vector.shape_cast %13 : vector<1x1x16xbf16> to vector<1x16xbf16>
    %c0_18 = arith.constant 0 : index
    %c2_19 = arith.constant 2 : index
    %c0_20 = arith.constant 0 : index
    %c0_21 = arith.constant 0 : index
    %c0_22 = arith.constant 0 : index
    %15 = vector.load %arg2[%c0_18, %c2_19, %c0_20, %c0_21, %c0_22] : memref<1x3x1x16x80xbf16, #tpu.memory_space<vmem>>, vector<1x1x1x16x64xbf16>
    %16 = vector.shape_cast %15 : vector<1x1x1x16x64xbf16> to vector<16x64xbf16>
    %cst_23 = arith.constant dense<0.000000e+00> : vector<1x64xf32>
    %17 = tpu.matmul %14, %16, %cst_23 {dimension_numbers = #tpu.dot_dimension_numbers<[1], [0], [0], [1], [0, 0, 1, 1], [], []>} : vector<1x16xbf16>, vector<16x64xbf16>, vector<1x64xf32> -> vector<1x64xf32>
    %18 = arith.addf %12, %17 : vector<1x64xf32>
    %c3 = arith.constant 3 : index
    %c0_24 = arith.constant 0 : index
    %c0_25 = arith.constant 0 : index
    %19 = vector.load %arg3[%c3, %c0_24, %c0_25] : memref<9x1x16xbf16, #tpu.memory_space<vmem>>, vector<1x1x16xbf16>
    %20 = vector.shape_cast %19 : vector<1x1x16xbf16> to vector<1x16xbf16>
    %c0_26 = arith.constant 0 : index
    %c0_27 = arith.constant 0 : index
    %c0_28 = arith.constant 0 : index
    %c0_29 = arith.constant 0 : index
    %c8 = arith.constant 8 : index
    %21 = vector.load %arg2[%c0_26, %c0_27, %c0_28, %c0_29, %c8] : memref<1x3x1x16x80xbf16, #tpu.memory_space<vmem>>, vector<1x1x1x16x64xbf16>
    %22 = vector.shape_cast %21 : vector<1x1x1x16x64xbf16> to vector<16x64xbf16>
    %cst_30 = arith.constant dense<0.000000e+00> : vector<1x64xf32>
    %23 = tpu.matmul %20, %22, %cst_30 {dimension_numbers = #tpu.dot_dimension_numbers<[1], [0], [0], [1], [0, 0, 1, 1], [], []>} : vector<1x16xbf16>, vector<16x64xbf16>, vector<1x64xf32> -> vector<1x64xf32>
    %24 = arith.addf %18, %23 : vector<1x64xf32>
    %c4 = arith.constant 4 : index
    %c0_31 = arith.constant 0 : index
    %c0_32 = arith.constant 0 : index
    %25 = vector.load %arg3[%c4, %c0_31, %c0_32] : memref<9x1x16xbf16, #tpu.memory_space<vmem>>, vector<1x1x16xbf16>
    %26 = vector.shape_cast %25 : vector<1x1x16xbf16> to vector<1x16xbf16>
    %c0_33 = arith.constant 0 : index
    %c1_34 = arith.constant 1 : index
    %c0_35 = arith.constant 0 : index
    %c0_36 = arith.constant 0 : index
    %c8_37 = arith.constant 8 : index
    %27 = vector.load %arg2[%c0_33, %c1_34, %c0_35, %c0_36, %c8_37] : memref<1x3x1x16x80xbf16, #tpu.memory_space<vmem>>, vector<1x1x1x16x64xbf16>
    %28 = vector.shape_cast %27 : vector<1x1x1x16x64xbf16> to vector<16x64xbf16>
    %cst_38 = arith.constant dense<0.000000e+00> : vector<1x64xf32>
    %29 = tpu.matmul %26, %28, %cst_38 {dimension_numbers = #tpu.dot_dimension_numbers<[1], [0], [0], [1], [0, 0, 1, 1], [], []>} : vector<1x16xbf16>, vector<16x64xbf16>, vector<1x64xf32> -> vector<1x64xf32>
    %30 = arith.addf %24, %29 : vector<1x64xf32>
    %c5 = arith.constant 5 : index
    %c0_39 = arith.constant 0 : index
    %c0_40 = arith.constant 0 : index
    %31 = vector.load %arg3[%c5, %c0_39, %c0_40] : memref<9x1x16xbf16, #tpu.memory_space<vmem>>, vector<1x1x16xbf16>
    %32 = vector.shape_cast %31 : vector<1x1x16xbf16> to vector<1x16xbf16>
    %c0_41 = arith.constant 0 : index
    %c2_42 = arith.constant 2 : index
    %c0_43 = arith.constant 0 : index
    %c0_44 = arith.constant 0 : index
    %c8_45 = arith.constant 8 : index
    %33 = vector.load %arg2[%c0_41, %c2_42, %c0_43, %c0_44, %c8_45] : memref<1x3x1x16x80xbf16, #tpu.memory_space<vmem>>, vector<1x1x1x16x64xbf16>
    %34 = vector.shape_cast %33 : vector<1x1x1x16x64xbf16> to vector<16x64xbf16>
    %cst_46 = arith.constant dense<0.000000e+00> : vector<1x64xf32>
    %35 = tpu.matmul %32, %34, %cst_46 {dimension_numbers = #tpu.dot_dimension_numbers<[1], [0], [0], [1], [0, 0, 1, 1], [], []>} : vector<1x16xbf16>, vector<16x64xbf16>, vector<1x64xf32> -> vector<1x64xf32>
    %36 = arith.addf %30, %35 : vector<1x64xf32>
    %c6 = arith.constant 6 : index
    %c0_47 = arith.constant 0 : index
    %c0_48 = arith.constant 0 : index
    %37 = vector.load %arg3[%c6, %c0_47, %c0_48] : memref<9x1x16xbf16, #tpu.memory_space<vmem>>, vector<1x1x16xbf16>
    %38 = vector.shape_cast %37 : vector<1x1x16xbf16> to vector<1x16xbf16>
    %c0_49 = arith.constant 0 : index
    %c0_50 = arith.constant 0 : index
    %c0_51 = arith.constant 0 : index
    %c0_52 = arith.constant 0 : index
    %c16 = arith.constant 16 : index
    %39 = vector.load %arg2[%c0_49, %c0_50, %c0_51, %c0_52, %c16] : memref<1x3x1x16x80xbf16, #tpu.memory_space<vmem>>, vector<1x1x1x16x64xbf16>
    %40 = vector.shape_cast %39 : vector<1x1x1x16x64xbf16> to vector<16x64xbf16>
    %cst_53 = arith.constant dense<0.000000e+00> : vector<1x64xf32>
    %41 = tpu.matmul %38, %40, %cst_53 {dimension_numbers = #tpu.dot_dimension_numbers<[1], [0], [0], [1], [0, 0, 1, 1], [], []>} : vector<1x16xbf16>, vector<16x64xbf16>, vector<1x64xf32> -> vector<1x64xf32>
    %42 = arith.addf %36, %41 : vector<1x64xf32>
    %c7 = arith.constant 7 : index
    %c0_54 = arith.constant 0 : index
    %c0_55 = arith.constant 0 : index
    %43 = vector.load %arg3[%c7, %c0_54, %c0_55] : memref<9x1x16xbf16, #tpu.memory_space<vmem>>, vector<1x1x16xbf16>
    %44 = vector.shape_cast %43 : vector<1x1x16xbf16> to vector<1x16xbf16>
    %c0_56 = arith.constant 0 : index
    %c1_57 = arith.constant 1 : index
    %c0_58 = arith.constant 0 : index
    %c0_59 = arith.constant 0 : index
    %c16_60 = arith.constant 16 : index
    %45 = vector.load %arg2[%c0_56, %c1_57, %c0_58, %c0_59, %c16_60] : memref<1x3x1x16x80xbf16, #tpu.memory_space<vmem>>, vector<1x1x1x16x64xbf16>
    %46 = vector.shape_cast %45 : vector<1x1x1x16x64xbf16> to vector<16x64xbf16>
    %cst_61 = arith.constant dense<0.000000e+00> : vector<1x64xf32>
    %47 = tpu.matmul %44, %46, %cst_61 {dimension_numbers = #tpu.dot_dimension_numbers<[1], [0], [0], [1], [0, 0, 1, 1], [], []>} : vector<1x16xbf16>, vector<16x64xbf16>, vector<1x64xf32> -> vector<1x64xf32>
    %48 = arith.addf %42, %47 : vector<1x64xf32>
    %c8_62 = arith.constant 8 : index
    %c0_63 = arith.constant 0 : index
    %c0_64 = arith.constant 0 : index
    %49 = vector.load %arg3[%c8_62, %c0_63, %c0_64] : memref<9x1x16xbf16, #tpu.memory_space<vmem>>, vector<1x1x16xbf16>
    %50 = vector.shape_cast %49 : vector<1x1x16xbf16> to vector<1x16xbf16>
    %c0_65 = arith.constant 0 : index
    %c2_66 = arith.constant 2 : index
    %c0_67 = arith.constant 0 : index
    %c0_68 = arith.constant 0 : index
    %c16_69 = arith.constant 16 : index
    %51 = vector.load %arg2[%c0_65, %c2_66, %c0_67, %c0_68, %c16_69] : memref<1x3x1x16x80xbf16, #tpu.memory_space<vmem>>, vector<1x1x1x16x64xbf16>
    %52 = vector.shape_cast %51 : vector<1x1x1x16x64xbf16> to vector<16x64xbf16>
    %cst_70 = arith.constant dense<0.000000e+00> : vector<1x64xf32>
    %53 = tpu.matmul %50, %52, %cst_70 {dimension_numbers = #tpu.dot_dimension_numbers<[1], [0], [0], [1], [0, 0, 1, 1], [], []>} : vector<1x16xbf16>, vector<16x64xbf16>, vector<1x64xf32> -> vector<1x64xf32>
    %54 = arith.addf %48, %53 : vector<1x64xf32>
    %c0_71 = arith.constant 0 : index
    %c0_72 = arith.constant 0 : index
    %c0_73 = arith.constant 0 : index
    %55 = vector.load %arg4[%c0_71, %c0_72, %c0_73] : memref<1x1x64xf32, #tpu.memory_space<vmem>>, vector<1x1x64xf32>
    %56 = vector.shape_cast %55 : vector<1x1x64xf32> to vector<1x64xf32>
    %57 = vector.shape_cast %54 : vector<1x64xf32> to vector<1x1x64xf32>
    tpu.vector_store %arg4[%c0_71, %c0_72, %c0_73], %57 {strides = array<i32>} : memref<1x1x64xf32, #tpu.memory_space<vmem>>, vector<1x1x64xf32>,
    return
  }
  func.func @transform_0(%arg0: i32, %arg1: i32) -> (i32, i32, i32, i32, i32) {
    %c0_i32 = arith.constant 0 : i32
    %c0_i32_0 = arith.constant 0 : i32
    %c0_i32_1 = arith.constant 0 : i32
    %c0_i32_2 = arith.constant 0 : i32
    %c0_i32_3 = arith.constant 0 : i32
    return %arg0, %c0_i32, %c0_i32_0, %c0_i32_1, %c0_i32_2 : i32, i32, i32, i32, i32
  }
  func.func @transform_1(%arg0: i32, %arg1: i32) -> (i32, i32, i32) {
    %c0_i32 = arith.constant 0 : i32
    %c0_i32_0 = arith.constant 0 : i32
    %c0_i32_1 = arith.constant 0 : i32
    %c0_i32_2 = arith.constant 0 : i32
    return %c0_i32, %c0_i32_0, %c0_i32_1 : i32, i32, i32
  }
  func.func @transform_2(%arg0: i32, %arg1: i32) -> (i32, i32, i32) {
    %c0_i32 = arith.constant 0 : i32
    %c0_i32_0 = arith.constant 0 : i32
    return %arg0, %c0_i32, %arg1 : i32, i32, i32
  }
}

</mosaic_0001>

<llo_original>
// kernel: critic_srgan_forward.4
$region0: #{critic_srgan_forward.4}
  #allocation0 [shape = 'u32[]', space=smem, size = 0x4, offset = 0x4, fixed_abs, tag = 'smem constant byte address 0x4 - core index']
  #allocation1 [shape = 'u32[144,128]{1,0:T(1,128)}', space=vmem, size = 0x12000, scoped, tag = 'internal scratch']
  %s0 = inlined_call_operand.vmem [shape: bf16[2,3,1,3,288], index: 0, kind: input, shape index: {}]
  %s1 = inlined_call_operand.vmem [shape: bf16[9,8,3], index: 1, kind: input, shape index: {}]
  %s2 = inlined_call_operand.vmem [shape: bf16[2,8,256], index: 2, kind: output, shape index: {}]
  %s3 = sld [smem:[#allocation0]]
  $region41: #{critic_srgan_forward.4} parent=0
    _
  %s5 = ssub.s32 1, %s3
  %s6 = scalar_select 0, %s5, %s3
  loop: start=0, step=1, limit=4
  $region2: #{critic_srgan_forward.4} parent=0 // loop_pre_header
    _
  $region3: #{critic_srgan_forward.4} parent=0 // loop_header
    %s8 = sphi 0, %s12
    %p9 = scmp.ge.s32.totalorder %s8, 4
    %s15 = sphi 0, %s27
    %s16 = sphi 0, %s23
    %s17 = sphi 0, %s15
    %s18 = sphi 0, %s16
    %s19 = sphi 0, %s17
    %s20 = sphi 0, %s18
    %s30 = sphi 0, %s32
    %s33 = sphi 0, %s30
    %s34 = sphi 0, %s33
    %s50 = sphi 0, %s34
    %s54 = sphi 0, %s54
    %s56 = sphi 0, %s54
    %s57 = sphi 0, %s56
    %s71 = sphi 0, %s57
    %s79 = sphi 0, %s81
    %s82 = sphi 0, %s79
    %s83 = sphi 0, %s82
    %s99 = sphi 0, %s83
  $region4: #{critic_srgan_forward.4} parent=0 // loop_header_branch
    %11 = sbr.rel (%p9) target = $region8
  $region5: #{critic_srgan_forward.4} parent=0 // loop_body
    %s13 = ssub.s32 %s8, 1
    %s14 = ssub.s32 %s8, 2
    %s21 = sadd.s32 1, %s16
    %p22 = scmp.ge.s32.totalorder %s21, 1
    %s23 = scalar_select %p22, 0, %s21
    %s24 = sadd.s32 1, %s15
    %s25 = scalar_select %p22, %s24, %s15
    %p26 = scmp.ge.s32.totalorder %s25, 2
    %s27 = scalar_select %p26, 0, %s25
    %s28 = ssub.s32 %s15, %s27
    %p29 = scmp.eq.s32.totalorder %s28, 0
    %s31 = sadd.s32 %s30, 1
    %s32 = scalar_select %p29, %s30, %s31
    %p35 = pneg %p29
    %p36 = scmp.eq.s32.totalorder %s8, 1
    %p37 = por %p35, %p36
    %p38 = scmp.ne.s32.totalorder %s30, %s33
    %p39 = scmp.eq.s32.totalorder %s8, 0
    %p40 = por %p38, %p39
    %p41 = scmp.ne.s32.totalorder %s30, %s33
    %p42 = scmp.eq.s32.totalorder %s13, 1
    %p43 = por %p41, %p42
    %p44 = scmp.ne.s32.totalorder %s33, %s34
    %p45 = scmp.eq.s32.totalorder %s13, 0
    %p46 = por %p44, %p45
    %p47 = scmp.ne.s32.totalorder %s33, %s34
    %p48 = scmp.eq.s32.totalorder %s14, 1
    %p49 = por %p47, %p48
    %p51 = scmp.ne.s32.totalorder %s34, %s50
    %p52 = scmp.eq.s32.totalorder %s14, 0
    %p53 = por %p51, %p52
    %s55 = sadd.s32 %s54, 1
    %p58 = scmp.eq.s32.totalorder %s8, 1
    %p59 = scmp.ne.s32.totalorder %s54, %s56
    %p60 = scmp.eq.s32.totalorder %s8, 0
    %p61 = por %p59, %p60
    %p62 = scmp.ne.s32.totalorder %s54, %s56
    %p63 = scmp.eq.s32.totalorder %s13, 1
    %p64 = por %p62, %p63
    %p65 = scmp.ne.s32.totalorder %s56, %s57
    %p66 = scmp.eq.s32.totalorder %s13, 0
    %p67 = por %p65, %p66
    %p68 = scmp.ne.s32.totalorder %s56, %s57
    %p69 = scmp.eq.s32.totalorder %s14, 1
    %p70 = por %p68, %p69
    %p72 = scmp.ne.s32.totalorder %s57, %s71
    %p73 = scmp.eq.s32.totalorder %s14, 0
    %p74 = por %p72, %p73
    %s75 = ssub.s32 %s15, %s27
    %s76 = ssub.s32 %s16, %s23
    %s77 = sor.u32 %s75, %s76
    %p78 = scmp.eq.s32.totalorder %s77, 0
    %s80 = sadd.s32 %s79, 1
    %s81 = scalar_select %p78, %s79, %s80
    %p84 = pneg %p78
    %p85 = scmp.eq.s32.totalorder %s8, 1
    %p86 = por %p84, %p85
    %p87 = scmp.ne.s32.totalorder %s79, %s82
    %p88 = scmp.eq.s32.totalorder %s8, 0
    %p89 = por %p87, %p88
    %p90 = scmp.ne.s32.totalorder %s79, %s82
    %p91 = scmp.eq.s32.totalorder %s13, 1
    %p92 = por %p90, %p91
    %p93 = scmp.ne.s32.totalorder %s82, %s83
    %p94 = scmp.eq.s32.totalorder %s13, 0
    %p95 = por %p93, %p94
    %p96 = scmp.ne.s32.totalorder %s82, %s83
    %p97 = scmp.eq.s32.totalorder %s14, 1
    %p98 = por %p96, %p97
    %p100 = scmp.ne.s32.totalorder %s83, %s99
    %p101 = scmp.eq.s32.totalorder %s14, 0
    %p102 = por %p100, %p101
    %p103 = scmp.le.s32.totalorder 1, %s8
    %p104 = scmp.lt.s32.totalorder %s8, 3
    %p105 = pnand %p103, %p104
    %p106 = pneg %p105
    // Predicated region
    $region9: #{critic_srgan_forward.4} parent=5 // pred_check
      _
    $region10: #{critic_srgan_forward.4} parent=5 // pred_check_branch
      %108 = sbr.rel (%p105) target = $region12
    $region11: #{critic_srgan_forward.4} parent=5 // pred_region
      %s109 = ssub.s32 %s8, 1
      // Predicated region
      $region13: #{critic_srgan_forward.4} parent=11 // pred_check
        %p110 = pneg %p67
      $region14: #{critic_srgan_forward.4} parent=11 // pred_check_branch
        %112 = sbr.rel (%p110) target = $region16
      $region15: #{critic_srgan_forward.4} parent=11 // pred_region
        _
      $region16: #{critic_srgan_forward.4} parent=11 // pred_fallthru
        _
    $region12: #{critic_srgan_forward.4} parent=5 // pred_fallthru
      _
    %p113 = scmp.lt.s32.totalorder %s8, 2
    // Predicated region
    $region17: #{critic_srgan_forward.4} parent=5 // pred_check
      %p114 = pneg %p113
    $region18: #{critic_srgan_forward.4} parent=5 // pred_check_branch
      %116 = sbr.rel (%p114) target = $region20
    $region19: #{critic_srgan_forward.4} parent=5 // pred_region
      // Predicated region
      $region21: #{critic_srgan_forward.4} parent=19 // pred_check
        %p117 = pneg %p40
      $region22: #{critic_srgan_forward.4} parent=19 // pred_check_branch
        %119 = sbr.rel (%p117) target = $region24
      $region23: #{critic_srgan_forward.4} parent=19 // pred_region
        %p120 = scmp.lt.s32.totalorder %s15, 1
        %s121 = scalar_select %p120, %s15, 1
        %s122 = smul.addr %s121, 9
        %s123 = smul.addr %s122, 2
        %s124 = scalar_lea.vmem %s0, %s123
      $region24: #{critic_srgan_forward.4} parent=19 // pred_fallthru
        _
    $region20: #{critic_srgan_forward.4} parent=5 // pred_fallthru
      _
    %p125 = scmp.le.s32.totalorder 1, %s8
    %p126 = scmp.lt.s32.totalorder %s8, 3
    %p127 = pnand %p125, %p126
    %p128 = pneg %p127
    // Predicated region
    $region25: #{critic_srgan_forward.4} parent=5 // pred_check
      _
    $region26: #{critic_srgan_forward.4} parent=5 // pred_check_branch
      %130 = sbr.rel (%p127) target = $region28
    $region27: #{critic_srgan_forward.4} parent=5 // pred_region
      %s131 = ssub.s32 %s8, 1
      %p132 = scmp.lt.s32.totalorder %s17, 1
      %s133 = scalar_select %p132, %s17, 1
      %s134 = smul.addr %s133, 9
      %s135 = smul.addr %s134, 2
      %s136 = scalar_lea.vmem %s0, %s135
      %p137 = pneg %p46
      %p138 = pneg %p43
      %p139 = pneg %p67
      %p140 = pneg %p64
      %p141 = pneg %p95
      %p142 = pneg %p92
      %s143 = smul.u32 2, %s18
      %p144 = scmp.lt.s32.totalorder %s17, 1
      %s145 = scalar_select %p144, %s17, 1
      %p146 = scmp.lt.s32.totalorder %s143, 1
      %s147 = scalar_select %p146, %s143, 1
      %s148 = smul.addr %s145, 2
      %s149 = sadd.s32 %s147, %s148
      %s150 = smul.addr %s149, 4
      %s151 = scalar_lea.vmem %s2, %s150
      %p152 = scmp.lt.s32.totalorder %s17, 1
      %s153 = scalar_select %p152, %s17, 1
      %s154 = smul.addr %s153, 9
      %s155 = smul.addr %s154, 2
      %s156 = scalar_lea.vmem %s0, %s155
      %s157 = smul.u32 2, %s18
      %p158 = scmp.lt.s32.totalorder %s17, 1
      %s159 = scalar_select %p158, %s17, 1
      %p160 = scmp.lt.s32.totalorder %s157, 1
      %s161 = scalar_select %p160, %s157, 1
      %s162 = smul.addr %s159, 2
      %s163 = sadd.s32 %s161, %s162
      %s164 = smul.addr %s163, 4
      %s165 = scalar_lea.vmem %s2, %s164
      %s166 = smul.u32 2, %s18
      %v168 = vld [vmem:[%s1] sm:$0xf]
      %v169 = vld [vmem:[%s156] sm:$0xf]
      %s170 = scalar_lea.vmem %s1, 4
      %v171 = vld [vmem:[%s170] sm:$0xf]
      %s172 = scalar_lea.vmem %s156, 6
      %v173 = vld [vmem:[%s172] sm:$0xf]
      %v176 = vunpack.c.l.s4 1983009808
      %v177 = vunpack.c.0.s8 %v176
      %v178 = vlaneseq
      %v179 = vshrl.u32 %v178, 7
      %v180 = vsub.s32 %v177, %v179
      %v181 = vrot.slane %v173, %v180
      %v182 = vcombine.high %v181, %v181
      %vm183 = vcmask 23552
      %v185 = vsel %vm183, %v171, 0
      %vm187 = vcmask 1040384
      %vm188 = vcmask 1041408
      %v189 = vsel %vm187, 4294967295, 65535
      %v190 = vsel %vm188, %v189, 0
      %v192 = vand.u32 %v181, %v190
      %v195 = vand.u32 %v182, %v190
      %197 = vmatprep.subr.bf16.mxu0 %v195
      %198 = vmatpush1.bf16.msra.mxu0 %v192
      %199 = vmatprep.subr.bf16.mxu0 0
      %200 = vmatpush1.bf16.msra.mxu0 0
      %201 = vmatprep.subr.bf16.mxu0 0
      %202 = vmatpush1.bf16.msra.mxu0 0
      %203 = vmatprep.subr.bf16.mxu0 0
      %204 = vmatpush1.bf16.msra.mxu0 0
      %205 = vmatprep.subr.bf16.mxu0 0
      %206 = vmatpush1.bf16.msra.mxu0 0
      %207 = vmatprep.subr.bf16.mxu0 0
      %208 = vmatpush1.bf16.msra.mxu0 0
      %209 = vmatprep.subr.bf16.mxu0 0
      %210 = vmatpush1.bf16.msra.mxu0 0
      %211 = vmatprep.subr.bf16.mxu0 0
      %212 = vmatpush1.bf16.msra.mxu0 0
      %213 = vmatprep.subr.bf16.mxu0 0
      %214 = vmatpush1.bf16.msra.mxu0 0
      %215 = vmatprep.subr.bf16.mxu0 0
      %216 = vmatpush1.bf16.msra.mxu0 0
      %217 = vmatprep.subr.bf16.mxu0 0
      %218 = vmatpush1.bf16.msra.mxu0 0
      %219 = vmatprep.subr.bf16.mxu0 0
      %220 = vmatpush1.bf16.msra.mxu0 0
      %221 = vmatprep.subr.bf16.mxu0 0
      %222 = vmatpush1.bf16.msra.mxu0 0
      %223 = vmatprep.subr.bf16.mxu0 0
      %224 = vmatpush1.bf16.msra.mxu0 0
      %225 = vmatprep.subr.bf16.mxu0 0
      %226 = vmatpush1.bf16.msra.mxu0 0
      %227 = vmatprep.subr.bf16.mxu0 0
      %228 = vmatpush1.bf16.msra.mxu0 0
      %229 = vmatprep.mubr.bf16.mxu0 0
      %230 = vmatmul.mubr.bf16.gmra.mrb[0].mxu0 %v185
      %v231 = vpop.f32.mrb[0].mxu0
      %v232 = vadd.f32 0.0, %v231
      %v233 = vpop.f32.mrb[0].mxu0
      %v234 = vadd.f32 0.0, %v233
      %v235 = vpop.f32.mrb[0].mxu0
      %v236 = vpop.f32.mrb[0].mxu0
      %237 = vdwg.mxu0
      %v240 = vunpack.c.l.s4 1983009808
      %v241 = vunpack.c.0.s8 %v240
      %v242 = vlaneseq
      %v243 = vshrl.u32 %v242, 7
      %v244 = vsub.s32 %v241, %v243
      %v245 = vrot.slane %v169, %v244
      %v246 = vcombine.high %v245, %v245
      %v248 = vsel %vm183, %v168, 0
      %v251 = vand.u32 %v245, %v190
      %v254 = vand.u32 %v246, %v190
      %256 = vmatprep.subr.bf16.mxu0 %v254
      %257 = vmatpush1.bf16.msra.mxu0 %v251
      %258 = vmatprep.subr.bf16.mxu0 0
      %259 = vmatpush1.bf16.msra.mxu0 0
      %260 = vmatprep.subr.bf16.mxu0 0
      %261 = vmatpush1.bf16.msra.mxu0 0
      %262 = vmatprep.subr.bf16.mxu0 0
      %263 = vmatpush1.bf16.msra.mxu0 0
      %264 = vmatprep.subr.bf16.mxu0 0
      %265 = vmatpush1.bf16.msra.mxu0 0
      %266 = vmatprep.subr.bf16.mxu0 0
      %267 = vmatpush1.bf16.msra.mxu0 0
      %268 = vmatprep.subr.bf16.mxu0 0
      %269 = vmatpush1.bf16.msra.mxu0 0
      %270 = vmatprep.subr.bf16.mxu0 0
      %271 = vmatpush1.bf16.msra.mxu0 0
      %272 = vmatprep.subr.bf16.mxu0 0
      %273 = vmatpush1.bf16.msra.mxu0 0
      %274 = vmatprep.subr.bf16.mxu0 0
      %275 = vmatpush1.bf16.msra.mxu0 0
      %276 = vmatprep.subr.bf16.mxu0 0
      %277 = vmatpush1.bf16.msra.mxu0 0
      %278 = vmatprep.subr.bf16.mxu0 0
      %279 = vmatpush1.bf16.msra.mxu0 0
      %280 = vmatprep.subr.bf16.mxu0 0
      %281 = vmatpush1.bf16.msra.mxu0 0
      %282 = vmatprep.subr.bf16.mxu0 0
      %283 = vmatpush1.bf16.msra.mxu0 0
      %284 = vmatprep.subr.bf16.mxu0 0
      %285 = vmatpush1.bf16.msra.mxu0 0
      %286 = vmatprep.subr.bf16.mxu0 0
      %287 = vmatpush1.bf16.msra.mxu0 0
      %288 = vmatprep.mubr.bf16.mxu0 0
      %289 = vmatmul.mubr.bf16.gmra.mrb[0].mxu0 %v248
      %v290 = vpop.f32.mrb[0].mxu0
      %v291 = vadd.f32 %v232, %v290
      %v292 = vpop.f32.mrb[0].mxu0
      %v293 = vadd.f32 %v234, %v292
      %v294 = vpop.f32.mrb[0].mxu0
      %v295 = vpop.f32.mrb[0].mxu0
      %296 = vdwg.mxu0
      %s297 = scalar_lea.vmem %s1, 8
      %v298 = vld [vmem:[%s297] sm:$0xf]
      %s299 = scalar_lea.vmem %s156, 12
      %v300 = vld [vmem:[%s299] sm:$0xf]
      %v303 = vunpack.c.l.s4 1983009808
      %v304 = vunpack.c.0.s8 %v303
      %v305 = vlaneseq
      %v306 = vshrl.u32 %v305, 7
      %v307 = vsub.s32 %v304, %v306
      %v308 = vrot.slane %v300, %v307
      %v309 = vcombine.high %v308, %v308
      %v311 = vsel %vm183, %v298, 0
      %v314 = vand.u32 %v308, %v190
      %v317 = vand.u32 %v309, %v190
      %319 = vmatprep.subr.bf16.mxu0 %v317
      %320 = vmatpush1.bf16.msra.mxu0 %v314
      %321 = vmatprep.subr.bf16.mxu0 0
      %322 = vmatpush1.bf16.msra.mxu0 0
      %323 = vmatprep.subr.bf16.mxu0 0
      %324 = vmatpush1.bf16.msra.mxu0 0
      %325 = vmatprep.subr.bf16.mxu0 0
      %326 = vmatpush1.bf16.msra.mxu0 0
      %327 = vmatprep.subr.bf16.mxu0 0
      %328 = vmatpush1.bf16.msra.mxu0 0
      %329 = vmatprep.subr.bf16.mxu0 0
      %330 = vmatpush1.bf16.msra.mxu0 0
      %331 = vmatprep.subr.bf16.mxu0 0
      %332 = vmatpush1.bf16.msra.mxu0 0
      %333 = vmatprep.subr.bf16.mxu0 0
      %334 = vmatpush1.bf16.msra.mxu0 0
      %335 = vmatprep.subr.bf16.mxu0 0
      %336 = vmatpush1.bf16.msra.mxu0 0
      %337 = vmatprep.subr.bf16.mxu0 0
      %338 = vmatpush1.bf16.msra.mxu0 0
      %339 = vmatprep.subr.bf16.mxu0 0
      %340 = vmatpush1.bf16.msra.mxu0 0
      %341 = vmatprep.subr.bf16.mxu0 0
      %342 = vmatpush1.bf16.msra.mxu0 0
      %343 = vmatprep.subr.bf16.mxu0 0
      %344 = vmatpush1.bf16.msra.mxu0 0
      %345 = vmatprep.subr.bf16.mxu0 0
      %346 = vmatpush1.bf16.msra.mxu0 0
      %347 = vmatprep.subr.bf16.mxu0 0
      %348 = vmatpush1.bf16.msra.mxu0 0
      %349 = vmatprep.subr.bf16.mxu0 0
      %350 = vmatpush1.bf16.msra.mxu0 0
      %351 = vmatprep.mubr.bf16.mxu0 0
      %352 = vmatmul.mubr.bf16.gmra.mrb[0].mxu0 %v311
      %v353 = vpop.f32.mrb[0].mxu0
      %v354 = vadd.f32 0.0, %v353
      %v355 = vpop.f32.mrb[0].mxu0
      %v356 = vadd.f32 0.0, %v355
      %v357 = vpop.f32.mrb[0].mxu0
      %v358 = vpop.f32.mrb[0].mxu0
      %359 = vdwg.mxu0
      %v360 = vadd.f32 %v291, %v354
      %v361 = vadd.f32 %v293, %v356
      %s362 = scalar_lea.vmem %s1, 12
      %v363 = vld [vmem:[%s362] sm:$0xf]
      %v364 = vld [vmem:[%s156] sm:$0x3f]
      %v366 = vcombine.high %v364, %v364
      %v368 = vunpack.c.l.s4 1983009808
      %v369 = vunpack.c.0.s8 %v368
      %v370 = vlaneseq
      %v371 = vshrl.u32 %v370, 7
      %v372 = vsub.s32 %v369, %v371
      %v373 = vrot.slane %v364, %v372
      %v375 = vunpack.c.l.s4 1983009808
      %v376 = vunpack.c.0.s8 %v375
      %v377 = vlaneseq
      %v378 = vshrl.u32 %v377, 7
      %v379 = vsub.s32 %v376, %v378
      %v380 = vrot.slane %v366, %v379
      %v381 = vcombine.high %v373, %v373
      %382 = vrot.lane.b32.xlu0 %v373, 112
      %v383 = vpop.permute.xlu0 %382
      %384 = vrot.lane.b32.xlu0 %v381, 112
      %v385 = vpop.permute.xlu0 %384
      %386 = vrot.lane.b32.xlu0 %v380, 112
      %v387 = vpop.permute.xlu0 %386
      %vm388 = vcmask 916480
      %v389 = vsel %vm388, %v383, %v385
      %v390 = vsel %vm388, %v385, %v387
      %v392 = vsel %vm183, %v363, 0
      %v395 = vand.u32 %v389, %v190
      %v398 = vand.u32 %v390, %v190
      %400 = vmatprep.subr.bf16.mxu0 %v398
      %401 = vmatpush1.bf16.msra.mxu0 %v395
      %402 = vmatprep.subr.bf16.mxu0 0
      %403 = vmatpush1.bf16.msra.mxu0 0
      %404 = vmatprep.subr.bf16.mxu0 0
      %405 = vmatpush1.bf16.msra.mxu0 0
      %406 = vmatprep.subr.bf16.mxu0 0
      %407 = vmatpush1.bf16.msra.mxu0 0
      %408 = vmatprep.subr.bf16.mxu0 0
      %409 = vmatpush1.bf16.msra.mxu0 0
      %410 = vmatprep.subr.bf16.mxu0 0
      %411 = vmatpush1.bf16.msra.mxu0 0
      %412 = vmatprep.subr.bf16.mxu0 0
      %413 = vmatpush1.bf16.msra.mxu0 0
      %414 = vmatprep.subr.bf16.mxu0 0
      %415 = vmatpush1.bf16.msra.mxu0 0
      %416 = vmatprep.subr.bf16.mxu0 0
      %417 = vmatpush1.bf16.msra.mxu0 0
      %418 = vmatprep.subr.bf16.mxu0 0
      %419 = vmatpush1.bf16.msra.mxu0 0
      %420 = vmatprep.subr.bf16.mxu0 0
      %421 = vmatpush1.bf16.msra.mxu0 0
      %422 = vmatprep.subr.bf16.mxu0 0
      %423 = vmatpush1.bf16.msra.mxu0 0
      %424 = vmatprep.subr.bf16.mxu0 0
      %425 = vmatpush1.bf16.msra.mxu0 0
      %426 = vmatprep.subr.bf16.mxu0 0
      %427 = vmatpush1.bf16.msra.mxu0 0
      %428 = vmatprep.subr.bf16.mxu0 0
      %429 = vmatpush1.bf16.msra.mxu0 0
      %430 = vmatprep.subr.bf16.mxu0 0
      %431 = vmatpush1.bf16.msra.mxu0 0
      %432 = vmatprep.mubr.bf16.mxu0 0
      %433 = vmatmul.mubr.bf16.gmra.mrb[0].mxu0 %v392
      %v434 = vpop.f32.mrb[0].mxu0
      %v435 = vadd.f32 0.0, %v434
      %v436 = vpop.f32.mrb[0].mxu0
      %v437 = vadd.f32 0.0, %v436
      %v438 = vpop.f32.mrb[0].mxu0
      %v439 = vpop.f32.mrb[0].mxu0
      %440 = vdwg.mxu0
      %v441 = vadd.f32 %v360, %v435
      %v442 = vadd.f32 %v361, %v437
      %s443 = scalar_lea.vmem %s1, 16
      %v444 = vld [vmem:[%s443] sm:$0xf]
      %v445 = vld [vmem:[%s172] sm:$0x3f]
      %v447 = vcombine.high %v445, %v445
      %v449 = vunpack.c.l.s4 1983009808
      %v450 = vunpack.c.0.s8 %v449
      %v451 = vlaneseq
      %v452 = vshrl.u32 %v451, 7
      %v453 = vsub.s32 %v450, %v452
      %v454 = vrot.slane %v445, %v453
      %v456 = vunpack.c.l.s4 1983009808
      %v457 = vunpack.c.0.s8 %v456
      %v458 = vlaneseq
      %v459 = vshrl.u32 %v458, 7
      %v460 = vsub.s32 %v457, %v459
      %v461 = vrot.slane %v447, %v460
      %v462 = vcombine.high %v454, %v454
      %463 = vrot.lane.b32.xlu0 %v454, 112
      %v464 = vpop.permute.xlu0 %463
      %465 = vrot.lane.b32.xlu0 %v462, 112
      %v466 = vpop.permute.xlu0 %465
      %467 = vrot.lane.b32.xlu0 %v461, 112
      %v468 = vpop.permute.xlu0 %467
      %v469 = vsel %vm388, %v464, %v466
      %v470 = vsel %vm388, %v466, %v468
      %v472 = vsel %vm183, %v444, 0
      %v475 = vand.u32 %v469, %v190
      %v478 = vand.u32 %v470, %v190
      %480 = vmatprep.subr.bf16.mxu0 %v478
      %481 = vmatpush1.bf16.msra.mxu0 %v475
      %482 = vmatprep.subr.bf16.mxu0 0
      %483 = vmatpush1.bf16.msra.mxu0 0
      %484 = vmatprep.subr.bf16.mxu0 0
      %485 = vmatpush1.bf16.msra.mxu0 0
      %486 = vmatprep.subr.bf16.mxu0 0
      %487 = vmatpush1.bf16.msra.mxu0 0
      %488 = vmatprep.subr.bf16.mxu0 0
      %489 = vmatpush1.bf16.msra.mxu0 0
      %490 = vmatprep.subr.bf16.mxu0 0
      %491 = vmatpush1.bf16.msra.mxu0 0
      %492 = vmatprep.subr.bf16.mxu0 0
      %493 = vmatpush1.bf16.msra.mxu0 0
      %494 = vmatprep.subr.bf16.mxu0 0
      %495 = vmatpush1.bf16.msra.mxu0 0
      %496 = vmatprep.subr.bf16.mxu0 0
      %497 = vmatpush1.bf16.msra.mxu0 0
      %498 = vmatprep.subr.bf16.mxu0 0
      %499 = vmatpush1.bf16.msra.mxu0 0
      %500 = vmatprep.subr.bf16.mxu0 0
      %501 = vmatpush1.bf16.msra.mxu0 0
      %502 = vmatprep.subr.bf16.mxu0 0
      %503 = vmatpush1.bf16.msra.mxu0 0
      %504 = vmatprep.subr.bf16.mxu0 0
      %505 = vmatpush1.bf16.msra.mxu0 0
      %506 = vmatprep.subr.bf16.mxu0 0
      %507 = vmatpush1.bf16.msra.mxu0 0
      %508 = vmatprep.subr.bf16.mxu0 0
      %509 = vmatpush1.bf16.msra.mxu0 0
      %510 = vmatprep.subr.bf16.mxu0 0
      %511 = vmatpush1.bf16.msra.mxu0 0
      %512 = vmatprep.mubr.bf16.mxu0 0
      %513 = vmatmul.mubr.bf16.gmra.mrb[0].mxu0 %v472
      %v514 = vpop.f32.mrb[0].mxu0
      %v515 = vadd.f32 0.0, %v514
      %v516 = vpop.f32.mrb[0].mxu0
      %v517 = vadd.f32 0.0, %v516
      %v518 = vpop.f32.mrb[0].mxu0
      %v519 = vpop.f32.mrb[0].mxu0
      %520 = vdwg.mxu0
      %v521 = vadd.f32 %v441, %v515
      %v522 = vadd.f32 %v442, %v517
      %s523 = scalar_lea.vmem %s1, 20
      %v524 = vld [vmem:[%s523] sm:$0xf]
      %v525 = vld [vmem:[%s299] sm:$0x3f]
      %v527 = vcombine.high %v525, %v525
      %v529 = vunpack.c.l.s4 1983009808
      %v530 = vunpack.c.0.s8 %v529
      %v531 = vlaneseq
      %v532 = vshrl.u32 %v531, 7
      %v533 = vsub.s32 %v530, %v532
      %v534 = vrot.slane %v525, %v533
      %v536 = vunpack.c.l.s4 1983009808
      %v537 = vunpack.c.0.s8 %v536
      %v538 = vlaneseq
      %v539 = vshrl.u32 %v538, 7
      %v540 = vsub.s32 %v537, %v539
      %v541 = vrot.slane %v527, %v540
      %v542 = vcombine.high %v534, %v534
      %543 = vrot.lane.b32.xlu0 %v534, 112
      %v544 = vpop.permute.xlu0 %543
      %545 = vrot.lane.b32.xlu0 %v542, 112
      %v546 = vpop.permute.xlu0 %545
      %547 = vrot.lane.b32.xlu0 %v541, 112
      %v548 = vpop.permute.xlu0 %547
      %v549 = vsel %vm388, %v544, %v546
      %v550 = vsel %vm388, %v546, %v548
      %v552 = vsel %vm183, %v524, 0
      %v555 = vand.u32 %v549, %v190
      %v558 = vand.u32 %v550, %v190
      %560 = vmatprep.subr.bf16.mxu0 %v558
      %561 = vmatpush1.bf16.msra.mxu0 %v555
      %562 = vmatprep.subr.bf16.mxu0 0
      %563 = vmatpush1.bf16.msra.mxu0 0
      %564 = vmatprep.subr.bf16.mxu0 0
      %565 = vmatpush1.bf16.msra.mxu0 0
      %566 = vmatprep.subr.bf16.mxu0 0
      %567 = vmatpush1.bf16.msra.mxu0 0
      %568 = vmatprep.subr.bf16.mxu0 0
      %569 = vmatpush1.bf16.msra.mxu0 0
      %570 = vmatprep.subr.bf16.mxu0 0
      %571 = vmatpush1.bf16.msra.mxu0 0
      %572 = vmatprep.subr.bf16.mxu0 0
      %573 = vmatpush1.bf16.msra.mxu0 0
      %574 = vmatprep.subr.bf16.mxu0 0
      %575 = vmatpush1.bf16.msra.mxu0 0
      %576 = vmatprep.subr.bf16.mxu0 0
      %577 = vmatpush1.bf16.msra.mxu0 0
      %578 = vmatprep.subr.bf16.mxu0 0
      %579 = vmatpush1.bf16.msra.mxu0 0
      %580 = vmatprep.subr.bf16.mxu0 0
      %581 = vmatpush1.bf16.msra.mxu0 0
      %582 = vmatprep.subr.bf16.mxu0 0
      %583 = vmatpush1.bf16.msra.mxu0 0
      %584 = vmatprep.subr.bf16.mxu0 0
      %585 = vmatpush1.bf16.msra.mxu0 0
      %586 = vmatprep.subr.bf16.mxu0 0
      %587 = vmatpush1.bf16.msra.mxu0 0
      %588 = vmatprep.subr.bf16.mxu0 0
      %589 = vmatpush1.bf16.msra.mxu0 0
      %590 = vmatprep.subr.bf16.mxu0 0
      %591 = vmatpush1.bf16.msra.mxu0 0
      %592 = vmatprep.mubr.bf16.mxu0 0
      %593 = vmatmul.mubr.bf16.gmra.mrb[0].mxu0 %v552
      %v594 = vpop.f32.mrb[0].mxu0
      %v595 = vadd.f32 0.0, %v594
      %v596 = vpop.f32.mrb[0].mxu0
      %v597 = vadd.f32 0.0, %v596
      %v598 = vpop.f32.mrb[0].mxu0
      %v599 = vpop.f32.mrb[0].mxu0
      %600 = vdwg.mxu0
      %v601 = vadd.f32 %v521, %v595
      %v602 = vadd.f32 %v522, %v597
      %s603 = scalar_lea.vmem %s1, 24
      %v604 = vld [vmem:[%s603] sm:$0xf]
      %v605 = vld [vmem:[%s156] sm:$0x3f]
      %v607 = vcombine.high %v605, %v605
      %v609 = vunpack.c.l.s4 1983009808
      %v610 = vunpack.c.0.s8 %v609
      %v611 = vlaneseq
      %v612 = vshrl.u32 %v611, 7
      %v613 = vsub.s32 %v610, %v612
      %v614 = vrot.slane %v605, %v613
      %v616 = vunpack.c.l.s4 1983009808
      %v617 = vunpack.c.0.s8 %v616
      %v618 = vlaneseq
      %v619 = vshrl.u32 %v618, 7
      %v620 = vsub.s32 %v617, %v619
      %v621 = vrot.slane %v607, %v620
      %v622 = vcombine.high %v614, %v614
      %623 = vrot.lane.b32.xlu0 %v614, 96
      %v624 = vpop.permute.xlu0 %623
      %625 = vrot.lane.b32.xlu0 %v622, 96
      %v626 = vpop.permute.xlu0 %625
      %627 = vrot.lane.b32.xlu0 %v621, 96
      %v628 = vpop.permute.xlu0 %627
      %vm629 = vcmask 785408
      %v630 = vsel %vm629, %v624, %v626
      %v631 = vsel %vm629, %v626, %v628
      %v633 = vsel %vm183, %v604, 0
      %v636 = vand.u32 %v630, %v190
      %v639 = vand.u32 %v631, %v190
      %641 = vmatprep.subr.bf16.mxu0 %v639
      %642 = vmatpush1.bf16.msra.mxu0 %v636
      %643 = vmatprep.subr.bf16.mxu0 0
      %644 = vmatpush1.bf16.msra.mxu0 0
      %645 = vmatprep.subr.bf16.mxu0 0
      %646 = vmatpush1.bf16.msra.mxu0 0
      %647 = vmatprep.subr.bf16.mxu0 0
      %648 = vmatpush1.bf16.msra.mxu0 0
      %649 = vmatprep.subr.bf16.mxu0 0
      %650 = vmatpush1.bf16.msra.mxu0 0
      %651 = vmatprep.subr.bf16.mxu0 0
      %652 = vmatpush1.bf16.msra.mxu0 0
      %653 = vmatprep.subr.bf16.mxu0 0
      %654 = vmatpush1.bf16.msra.mxu0 0
      %655 = vmatprep.subr.bf16.mxu0 0
      %656 = vmatpush1.bf16.msra.mxu0 0
      %657 = vmatprep.subr.bf16.mxu0 0
      %658 = vmatpush1.bf16.msra.mxu0 0
      %659 = vmatprep.subr.bf16.mxu0 0
      %660 = vmatpush1.bf16.msra.mxu0 0
      %661 = vmatprep.subr.bf16.mxu0 0
      %662 = vmatpush1.bf16.msra.mxu0 0
      %663 = vmatprep.subr.bf16.mxu0 0
      %664 = vmatpush1.bf16.msra.mxu0 0
      %665 = vmatprep.subr.bf16.mxu0 0
      %666 = vmatpush1.bf16.msra.mxu0 0
      %667 = vmatprep.subr.bf16.mxu0 0
      %668 = vmatpush1.bf16.msra.mxu0 0
      %669 = vmatprep.subr.bf16.mxu0 0
      %670 = vmatpush1.bf16.msra.mxu0 0
      %671 = vmatprep.subr.bf16.mxu0 0
      %672 = vmatpush1.bf16.msra.mxu0 0
      %673 = vmatprep.mubr.bf16.mxu0 0
      %674 = vmatmul.mubr.bf16.gmra.mrb[0].mxu0 %v633
      %v675 = vpop.f32.mrb[0].mxu0
      %v676 = vadd.f32 0.0, %v675
      %v677 = vpop.f32.mrb[0].mxu0
      %v678 = vadd.f32 0.0, %v677
      %v679 = vpop.f32.mrb[0].mxu0
      %v680 = vpop.f32.mrb[0].mxu0
      %681 = vdwg.mxu0
      %v682 = vadd.f32 %v601, %v676
      %v683 = vadd.f32 %v602, %v678
      %s684 = scalar_lea.vmem %s1, 28
      %v685 = vld [vmem:[%s684] sm:$0xf]
      %v686 = vld [vmem:[%s172] sm:$0x3f]
      %v688 = vcombine.high %v686, %v686
      %v690 = vunpack.c.l.s4 1983009808
      %v691 = vunpack.c.0.s8 %v690
      %v692 = vlaneseq
      %v693 = vshrl.u32 %v692, 7
      %v694 = vsub.s32 %v691, %v693
      %v695 = vrot.slane %v686, %v694
      %v697 = vunpack.c.l.s4 1983009808
      %v698 = vunpack.c.0.s8 %v697
      %v699 = vlaneseq
      %v700 = vshrl.u32 %v699, 7
      %v701 = vsub.s32 %v698, %v700
      %v702 = vrot.slane %v688, %v701
      %v703 = vcombine.high %v695, %v695
      %704 = vrot.lane.b32.xlu0 %v695, 96
      %v705 = vpop.permute.xlu0 %704
      %706 = vrot.lane.b32.xlu0 %v703, 96
      %v707 = vpop.permute.xlu0 %706
      %708 = vrot.lane.b32.xlu0 %v702, 96
      %v709 = vpop.permute.xlu0 %708
      %v710 = vsel %vm629, %v705, %v707
      %v711 = vsel %vm629, %v707, %v709
      %v713 = vsel %vm183, %v685, 0
      %v716 = vand.u32 %v710, %v190
      %v719 = vand.u32 %v711, %v190
      %721 = vmatprep.subr.bf16.mxu0 %v719
      %722 = vmatpush1.bf16.msra.mxu0 %v716
      %723 = vmatprep.subr.bf16.mxu0 0
      %724 = vmatpush1.bf16.msra.mxu0 0
      %725 = vmatprep.subr.bf16.mxu0 0
      %726 = vmatpush1.bf16.msra.mxu0 0
      %727 = vmatprep.subr.bf16.mxu0 0
      %728 = vmatpush1.bf16.msra.mxu0 0
      %729 = vmatprep.subr.bf16.mxu0 0
      %730 = vmatpush1.bf16.msra.mxu0 0
      %731 = vmatprep.subr.bf16.mxu0 0
      %732 = vmatpush1.bf16.msra.mxu0 0
      %733 = vmatprep.subr.bf16.mxu0 0
      %734 = vmatpush1.bf16.msra.mxu0 0
      %735 = vmatprep.subr.bf16.mxu0 0
      %736 = vmatpush1.bf16.msra.mxu0 0
      %737 = vmatprep.subr.bf16.mxu0 0
      %738 = vmatpush1.bf16.msra.mxu0 0
      %739 = vmatprep.subr.bf16.mxu0 0
      %740 = vmatpush1.bf16.msra.mxu0 0
      %741 = vmatprep.subr.bf16.mxu0 0
      %742 = vmatpush1.bf16.msra.mxu0 0
      %743 = vmatprep.subr.bf16.mxu0 0
      %744 = vmatpush1.bf16.msra.mxu0 0
      %745 = vmatprep.subr.bf16.mxu0 0
      %746 = vmatpush1.bf16.msra.mxu0 0
      %747 = vmatprep.subr.bf16.mxu0 0
      %748 = vmatpush1.bf16.msra.mxu0 0
      %749 = vmatprep.subr.bf16.mxu0 0
      %750 = vmatpush1.bf16.msra.mxu0 0
      %751 = vmatprep.subr.bf16.mxu0 0
      %752 = vmatpush1.bf16.msra.mxu0 0
      %753 = vmatprep.mubr.bf16.mxu0 0
      %754 = vmatmul.mubr.bf16.gmra.mrb[0].mxu0 %v713
      %v755 = vpop.f32.mrb[0].mxu0
      %v756 = vadd.f32 0.0, %v755
      %v757 = vpop.f32.mrb[0].mxu0
      %v758 = vadd.f32 0.0, %v757
      %v759 = vpop.f32.mrb[0].mxu0
      %v760 = vpop.f32.mrb[0].mxu0
      %761 = vdwg.mxu0
      %v762 = vadd.f32 %v682, %v756
      %v763 = vadd.f32 %v683, %v758
      %s764 = scalar_lea.vmem %s1, 32
      %v765 = vld [vmem:[%s764] sm:$0xf]
      %v766 = vld [vmem:[%s299] sm:$0x3f]
      %v768 = vcombine.high %v766, %v766
      %v770 = vunpack.c.l.s4 1983009808
      %v771 = vunpack.c.0.s8 %v770
      %v772 = vlaneseq
      %v773 = vshrl.u32 %v772, 7
      %v774 = vsub.s32 %v771, %v773
      %v775 = vrot.slane %v766, %v774
      %v777 = vunpack.c.l.s4 1983009808
      %v778 = vunpack.c.0.s8 %v777
      %v779 = vlaneseq
      %v780 = vshrl.u32 %v779, 7
      %v781 = vsub.s32 %v778, %v780
      %v782 = vrot.slane %v768, %v781
      %v783 = vcombine.high %v775, %v775
      %784 = vrot.lane.b32.xlu0 %v775, 96
      %v785 = vpop.permute.xlu0 %784
      %786 = vrot.lane.b32.xlu0 %v783, 96
      %v787 = vpop.permute.xlu0 %786
      %788 = vrot.lane.b32.xlu0 %v782, 96
      %v789 = vpop.permute.xlu0 %788
      %v790 = vsel %vm629, %v785, %v787
      %v791 = vsel %vm629, %v787, %v789
      %v793 = vsel %vm183, %v765, 0
      %v796 = vand.u32 %v790, %v190
      %v799 = vand.u32 %v791, %v190
      %801 = vmatprep.subr.bf16.mxu0 %v799
      %802 = vmatpush1.bf16.msra.mxu0 %v796
      %803 = vmatprep.subr.bf16.mxu0 0
      %804 = vmatpush1.bf16.msra.mxu0 0
      %805 = vmatprep.subr.bf16.mxu0 0
      %806 = vmatpush1.bf16.msra.mxu0 0
      %807 = vmatprep.subr.bf16.mxu0 0
      %808 = vmatpush1.bf16.msra.mxu0 0
      %809 = vmatprep.subr.bf16.mxu0 0
      %810 = vmatpush1.bf16.msra.mxu0 0
      %811 = vmatprep.subr.bf16.mxu0 0
      %812 = vmatpush1.bf16.msra.mxu0 0
      %813 = vmatprep.subr.bf16.mxu0 0
      %814 = vmatpush1.bf16.msra.mxu0 0
      %815 = vmatprep.subr.bf16.mxu0 0
      %816 = vmatpush1.bf16.msra.mxu0 0
      %817 = vmatprep.subr.bf16.mxu0 0
      %818 = vmatpush1.bf16.msra.mxu0 0
      %819 = vmatprep.subr.bf16.mxu0 0
      %820 = vmatpush1.bf16.msra.mxu0 0
      %821 = vmatprep.subr.bf16.mxu0 0
      %822 = vmatpush1.bf16.msra.mxu0 0
      %823 = vmatprep.subr.bf16.mxu0 0
      %824 = vmatpush1.bf16.msra.mxu0 0
      %825 = vmatprep.subr.bf16.mxu0 0
      %826 = vmatpush1.bf16.msra.mxu0 0
      %827 = vmatprep.subr.bf16.mxu0 0
      %828 = vmatpush1.bf16.msra.mxu0 0
      %829 = vmatprep.subr.bf16.mxu0 0
      %830 = vmatpush1.bf16.msra.mxu0 0
      %831 = vmatprep.subr.bf16.mxu0 0
      %832 = vmatpush1.bf16.msra.mxu0 0
      %833 = vmatprep.mubr.bf16.mxu0 0
      %834 = vmatmul.mubr.bf16.gmra.mrb[0].mxu0 %v793
      %v835 = vpop.f32.mrb[0].mxu0
      %v836 = vadd.f32 0.0, %v835
      %v837 = vpop.f32.mrb[0].mxu0
      %v838 = vadd.f32 0.0, %v837
      %v839 = vpop.f32.mrb[0].mxu0
      %v840 = vpop.f32.mrb[0].mxu0
      %841 = vdwg.mxu0
      %v842 = vadd.f32 %v762, %v836
      %v843 = vadd.f32 %v763, %v838
      %v844 = vmax.f32 %v842, 0.0
      %v845 = vmax.f32 %v843, 0.0
      %v846 = vpack.c.bf16 %v844, %v844
      %v847 = vpack.c.bf16 %v845, %v845
      %v850 = vunpack.c.l.b16 %v846
      %v851 = vunpack.c.l.b16 %v847
      %v852 = vpack.c.b16 %v851, %v850
      %854 = vst [vmem:[%s165] sm:$0xff] %v852
      %s855 = smul.u32 2, %s18
      %p856 = scmp.lt.s32.totalorder %s17, 1
      %s857 = scalar_select %p856, %s17, 1
      %p858 = scmp.lt.s32.totalorder %s855, 1
      %s859 = scalar_select %p858, %s855, 1
      %s860 = smul.addr %s857, 2
      %s861 = sadd.s32 %s859, %s860
      %s862 = smul.addr %s861, 4
      %s863 = scalar_lea.vmem %s2, %s862
      // Predicated region
      $region29: #{critic_srgan_forward.4} parent=27 // pred_check
        %p864 = pneg %p92
      $region30: #{critic_srgan_forward.4} parent=27 // pred_check_branch
        %866 = sbr.rel (%p864) target = $region32
      $region31: #{critic_srgan_forward.4} parent=27 // pred_region
        %s867 = smul.u32 2, %s18
      $region32: #{critic_srgan_forward.4} parent=27 // pred_fallthru
        _
    $region28: #{critic_srgan_forward.4} parent=5 // pred_fallthru
      _
    %p868 = scmp.le.s32.totalorder 2, %s8
    // Predicated region
    $region33: #{critic_srgan_forward.4} parent=5 // pred_check
      %p869 = pneg %p868
    $region34: #{critic_srgan_forward.4} parent=5 // pred_check_branch
      %871 = sbr.rel (%p869) target = $region36
    $region35: #{critic_srgan_forward.4} parent=5 // pred_region
      %s872 = ssub.s32 %s8, 2
      // Predicated region
      $region37: #{critic_srgan_forward.4} parent=35 // pred_check
        %p873 = pneg %p98
      $region38: #{critic_srgan_forward.4} parent=35 // pred_check_branch
        %875 = sbr.rel (%p873) target = $region40
      $region39: #{critic_srgan_forward.4} parent=35 // pred_region
        %s876 = smul.u32 2, %s20
        %p877 = scmp.lt.s32.totalorder %s19, 1
        %s878 = scalar_select %p877, %s19, 1
        %p879 = scmp.lt.s32.totalorder %s876, 1
        %s880 = scalar_select %p879, %s876, 1
        %s881 = smul.addr %s878, 2
        %s882 = sadd.s32 %s880, %s881
        %s883 = smul.addr %s882, 4
        %s884 = scalar_lea.vmem %s2, %s883
      $region40: #{critic_srgan_forward.4} parent=35 // pred_fallthru
        _
    $region36: #{critic_srgan_forward.4} parent=5 // pred_fallthru
      _
  $region6: #{critic_srgan_forward.4} parent=0 // loop_footer
    %s12 = sadd.s32 1, %s8
  $region7: #{critic_srgan_forward.4} parent=0 // loop_footer_branch
    %7 = sbr.rel target = $region3
  $region8: #{critic_srgan_forward.4} parent=0 // loop_exit
    _

// kernel: critic_srgan_forward.6
$region0: #{critic_srgan_forward.6}
  #allocation0 [shape = 'u32[]', space=smem, size = 0x4, offset = 0x4, fixed_abs, tag = 'smem constant byte address 0x4 - core index']
  #allocation1 [shape = 'u32[144,128]{1,0:T(1,128)}', space=vmem, size = 0x12000, scoped, tag = 'internal scratch']
  #allocation2 [shape = 'bf16[2,64]{1,0:T(2,128)(2,1)}', space=vmem, size = 0x200, scoped, tag = 'scratch operand']
  #allocation3 [shape = 'bf16[16,64]{1,0:T(16,128)(2,1)}', space=vmem, size = 0x1000, scoped, tag = 'scratch operand']
  #allocation4 [shape = 'f32[1]{0:T(128)S(6)}', space=smem, size = 0x200, scoped, tag = 'scoped memory for critic_srgan_forward.6']
  %s0 = inlined_call_operand.vmem [shape: bf16[2,16,64], index: 0, kind: input, shape index: {}]
  %s1 = inlined_call_operand.vmem [shape: bf16[2,16], index: 1, kind: input, shape index: {}]
  %s2 = inlined_call_operand.vmem [shape: f32[2,1], index: 2, kind: input, shape index: {}]
  %s3 = inlined_call_operand.vmem [shape: bf16[2,16], index: 3, kind: input, shape index: {}]
  %s4 = inlined_call_operand.vmem [shape: f32[2,1], index: 4, kind: input, shape index: {}]
  %s5 = inlined_call_operand.vmem [shape: bf16[16,16], index: 5, kind: input, shape index: {}]
  %s6 = inlined_call_operand.vmem [shape: f32[16,1], index: 6, kind: input, shape index: {}]
  %s7 = inlined_call_operand.<no memory space> [shape: f32[1], index: 7, kind: input, shape index: {}]
  %s8 = inlined_call_operand.vmem [shape: bf16[2,16,64], index: 8, kind: output, shape index: {}]
  %s9 = sld [smem:[#allocation0]]
  $region65: #{critic_srgan_forward.6} parent=0
    _
  %s11 = ssub.s32 1, %s9
  %s12 = scalar_select 0, %s11, %s9
  %13 = sst [smem:[#allocation4]] %s7
  loop: start=0, step=1, limit=4
  $region2: #{critic_srgan_forward.6} parent=0 // loop_pre_header
    _
  $region3: #{critic_srgan_forward.6} parent=0 // loop_header
    %s15 = sphi 0, %s19
    %p16 = scmp.ge.s32.totalorder %s15, 4
    %s22 = sphi 0, %s34
    %s23 = sphi 0, %s30
    %s24 = sphi 0, %s22
    %s25 = sphi 0, %s23
    %s26 = sphi 0, %s24
    %s27 = sphi 0, %s25
    %s37 = sphi 0, %s39
    %s40 = sphi 0, %s37
    %s41 = sphi 0, %s40
    %s57 = sphi 0, %s41
    %s61 = sphi 0, %s61
    %s63 = sphi 0, %s61
    %s64 = sphi 0, %s63
    %s78 = sphi 0, %s64
    %s82 = sphi 0, %s82
    %s84 = sphi 0, %s82
    %s85 = sphi 0, %s84
    %s99 = sphi 0, %s85
    %s103 = sphi 0, %s103
    %s105 = sphi 0, %s103
    %s106 = sphi 0, %s105
    %s120 = sphi 0, %s106
    %s124 = sphi 0, %s124
    %s126 = sphi 0, %s124
    %s127 = sphi 0, %s126
    %s141 = sphi 0, %s127
    %s145 = sphi 0, %s145
    %s147 = sphi 0, %s145
    %s148 = sphi 0, %s147
    %s162 = sphi 0, %s148
    %s166 = sphi 0, %s166
    %s168 = sphi 0, %s166
    %s169 = sphi 0, %s168
    %s183 = sphi 0, %s169
    %s187 = sphi 0, %s187
    %s189 = sphi 0, %s187
    %s190 = sphi 0, %s189
    %s204 = sphi 0, %s190
    %s212 = sphi 0, %s214
    %s215 = sphi 0, %s212
    %s216 = sphi 0, %s215
    %s232 = sphi 0, %s216
  $region4: #{critic_srgan_forward.6} parent=0 // loop_header_branch
    %18 = sbr.rel (%p16) target = $region8
  $region5: #{critic_srgan_forward.6} parent=0 // loop_body
    %s20 = ssub.s32 %s15, 1
    %s21 = ssub.s32 %s15, 2
    %s28 = sadd.s32 1, %s23
    %p29 = scmp.ge.s32.totalorder %s28, 1
    %s30 = scalar_select %p29, 0, %s28
    %s31 = sadd.s32 1, %s22
    %s32 = scalar_select %p29, %s31, %s22
    %p33 = scmp.ge.s32.totalorder %s32, 2
    %s34 = scalar_select %p33, 0, %s32
    %s35 = ssub.s32 %s22, %s34
    %p36 = scmp.eq.s32.totalorder %s35, 0
    %s38 = sadd.s32 %s37, 1
    %s39 = scalar_select %p36, %s37, %s38
    %p42 = pneg %p36
    %p43 = scmp.eq.s32.totalorder %s15, 1
    %p44 = por %p42, %p43
    %p45 = scmp.ne.s32.totalorder %s37, %s40
    %p46 = scmp.eq.s32.totalorder %s15, 0
    %p47 = por %p45, %p46
    %p48 = scmp.ne.s32.totalorder %s37, %s40
    %p49 = scmp.eq.s32.totalorder %s20, 1
    %p50 = por %p48, %p49
    %p51 = scmp.ne.s32.totalorder %s40, %s41
    %p52 = scmp.eq.s32.totalorder %s20, 0
    %p53 = por %p51, %p52
    %p54 = scmp.ne.s32.totalorder %s40, %s41
    %p55 = scmp.eq.s32.totalorder %s21, 1
    %p56 = por %p54, %p55
    %p58 = scmp.ne.s32.totalorder %s41, %s57
    %p59 = scmp.eq.s32.totalorder %s21, 0
    %p60 = por %p58, %p59
    %s62 = sadd.s32 %s61, 1
    %p65 = scmp.eq.s32.totalorder %s15, 1
    %p66 = scmp.ne.s32.totalorder %s61, %s63
    %p67 = scmp.eq.s32.totalorder %s15, 0
    %p68 = por %p66, %p67
    %p69 = scmp.ne.s32.totalorder %s61, %s63
    %p70 = scmp.eq.s32.totalorder %s20, 1
    %p71 = por %p69, %p70
    %p72 = scmp.ne.s32.totalorder %s63, %s64
    %p73 = scmp.eq.s32.totalorder %s20, 0
    %p74 = por %p72, %p73
    %p75 = scmp.ne.s32.totalorder %s63, %s64
    %p76 = scmp.eq.s32.totalorder %s21, 1
    %p77 = por %p75, %p76
    %p79 = scmp.ne.s32.totalorder %s64, %s78
    %p80 = scmp.eq.s32.totalorder %s21, 0
    %p81 = por %p79, %p80
    %s83 = sadd.s32 %s82, 1
    %p86 = scmp.eq.s32.totalorder %s15, 1
    %p87 = scmp.ne.s32.totalorder %s82, %s84
    %p88 = scmp.eq.s32.totalorder %s15, 0
    %p89 = por %p87, %p88
    %p90 = scmp.ne.s32.totalorder %s82, %s84
    %p91 = scmp.eq.s32.totalorder %s20, 1
    %p92 = por %p90, %p91
    %p93 = scmp.ne.s32.totalorder %s84, %s85
    %p94 = scmp.eq.s32.totalorder %s20, 0
    %p95 = por %p93, %p94
    %p96 = scmp.ne.s32.totalorder %s84, %s85
    %p97 = scmp.eq.s32.totalorder %s21, 1
    %p98 = por %p96, %p97
    %p100 = scmp.ne.s32.totalorder %s85, %s99
    %p101 = scmp.eq.s32.totalorder %s21, 0
    %p102 = por %p100, %p101
    %s104 = sadd.s32 %s103, 1
    %p107 = scmp.eq.s32.totalorder %s15, 1
    %p108 = scmp.ne.s32.totalorder %s103, %s105
    %p109 = scmp.eq.s32.totalorder %s15, 0
    %p110 = por %p108, %p109
    %p111 = scmp.ne.s32.totalorder %s103, %s105
    %p112 = scmp.eq.s32.totalorder %s20, 1
    %p113 = por %p111, %p112
    %p114 = scmp.ne.s32.totalorder %s105, %s106
    %p115 = scmp.eq.s32.totalorder %s20, 0
    %p116 = por %p114, %p115
    %p117 = scmp.ne.s32.totalorder %s105, %s106
    %p118 = scmp.eq.s32.totalorder %s21, 1
    %p119 = por %p117, %p118
    %p121 = scmp.ne.s32.totalorder %s106, %s120
    %p122 = scmp.eq.s32.totalorder %s21, 0
    %p123 = por %p121, %p122
    %s125 = sadd.s32 %s124, 1
    %p128 = scmp.eq.s32.totalorder %s15, 1
    %p129 = scmp.ne.s32.totalorder %s124, %s126
    %p130 = scmp.eq.s32.totalorder %s15, 0
    %p131 = por %p129, %p130
    %p132 = scmp.ne.s32.totalorder %s124, %s126
    %p133 = scmp.eq.s32.totalorder %s20, 1
    %p134 = por %p132, %p133
    %p135 = scmp.ne.s32.totalorder %s126, %s127
    %p136 = scmp.eq.s32.totalorder %s20, 0
    %p137 = por %p135, %p136
    %p138 = scmp.ne.s32.totalorder %s126, %s127
    %p139 = scmp.eq.s32.totalorder %s21, 1
    %p140 = por %p138, %p139
    %p142 = scmp.ne.s32.totalorder %s127, %s141
    %p143 = scmp.eq.s32.totalorder %s21, 0
    %p144 = por %p142, %p143
    %s146 = sadd.s32 %s145, 1
    %p149 = scmp.eq.s32.totalorder %s15, 1
    %p150 = scmp.ne.s32.totalorder %s145, %s147
    %p151 = scmp.eq.s32.totalorder %s15, 0
    %p152 = por %p150, %p151
    %p153 = scmp.ne.s32.totalorder %s145, %s147
    %p154 = scmp.eq.s32.totalorder %s20, 1
    %p155 = por %p153, %p154
    %p156 = scmp.ne.s32.totalorder %s147, %s148
    %p157 = scmp.eq.s32.totalorder %s20, 0
    %p158 = por %p156, %p157
    %p159 = scmp.ne.s32.totalorder %s147, %s148
    %p160 = scmp.eq.s32.totalorder %s21, 1
    %p161 = por %p159, %p160
    %p163 = scmp.ne.s32.totalorder %s148, %s162
    %p164 = scmp.eq.s32.totalorder %s21, 0
    %p165 = por %p163, %p164
    %s167 = sadd.s32 %s166, 1
    %p170 = scmp.eq.s32.totalorder %s15, 1
    %p171 = scmp.ne.s32.totalorder %s166, %s168
    %p172 = scmp.eq.s32.totalorder %s15, 0
    %p173 = por %p171, %p172
    %p174 = scmp.ne.s32.totalorder %s166, %s168
    %p175 = scmp.eq.s32.totalorder %s20, 1
    %p176 = por %p174, %p175
    %p177 = scmp.ne.s32.totalorder %s168, %s169
    %p178 = scmp.eq.s32.totalorder %s20, 0
    %p179 = por %p177, %p178
    %p180 = scmp.ne.s32.totalorder %s168, %s169
    %p181 = scmp.eq.s32.totalorder %s21, 1
    %p182 = por %p180, %p181
    %p184 = scmp.ne.s32.totalorder %s169, %s183
    %p185 = scmp.eq.s32.totalorder %s21, 0
    %p186 = por %p184, %p185
    %s188 = sadd.s32 %s187, 1
    %p191 = scmp.eq.s32.totalorder %s15, 1
    %p192 = scmp.ne.s32.totalorder %s187, %s189
    %p193 = scmp.eq.s32.totalorder %s15, 0
    %p194 = por %p192, %p193
    %p195 = scmp.ne.s32.totalorder %s187, %s189
    %p196 = scmp.eq.s32.totalorder %s20, 1
    %p197 = por %p195, %p196
    %p198 = scmp.ne.s32.totalorder %s189, %s190
    %p199 = scmp.eq.s32.totalorder %s20, 0
    %p200 = por %p198, %p199
    %p201 = scmp.ne.s32.totalorder %s189, %s190
    %p202 = scmp.eq.s32.totalorder %s21, 1
    %p203 = por %p201, %p202
    %p205 = scmp.ne.s32.totalorder %s190, %s204
    %p206 = scmp.eq.s32.totalorder %s21, 0
    %p207 = por %p205, %p206
    %s208 = ssub.s32 %s22, %s34
    %s209 = ssub.s32 %s23, %s30
    %s210 = sor.u32 %s208, %s209
    %p211 = scmp.eq.s32.totalorder %s210, 0
    %s213 = sadd.s32 %s212, 1
    %s214 = scalar_select %p211, %s212, %s213
    %p217 = pneg %p211
    %p218 = scmp.eq.s32.totalorder %s15, 1
    %p219 = por %p217, %p218
    %p220 = scmp.ne.s32.totalorder %s212, %s215
    %p221 = scmp.eq.s32.totalorder %s15, 0
    %p222 = por %p220, %p221
    %p223 = scmp.ne.s32.totalorder %s212, %s215
    %p224 = scmp.eq.s32.totalorder %s20, 1
    %p225 = por %p223, %p224
    %p226 = scmp.ne.s32.totalorder %s215, %s216
    %p227 = scmp.eq.s32.totalorder %s20, 0
    %p228 = por %p226, %p227
    %p229 = scmp.ne.s32.totalorder %s215, %s216
    %p230 = scmp.eq.s32.totalorder %s21, 1
    %p231 = por %p229, %p230
    %p233 = scmp.ne.s32.totalorder %s216, %s232
    %p234 = scmp.eq.s32.totalorder %s21, 0
    %p235 = por %p233, %p234
    %p236 = scmp.le.s32.totalorder 1, %s15
    %p237 = scmp.lt.s32.totalorder %s15, 3
    %p238 = pnand %p236, %p237
    %p239 = pneg %p238
    // Predicated region
    $region9: #{critic_srgan_forward.6} parent=5 // pred_check
      _
    $region10: #{critic_srgan_forward.6} parent=5 // pred_check_branch
      %241 = sbr.rel (%p238) target = $region12
    $region11: #{critic_srgan_forward.6} parent=5 // pred_region
      %s242 = ssub.s32 %s15, 1
      // Predicated region
      $region13: #{critic_srgan_forward.6} parent=11 // pred_check
        %p243 = pneg %p74
      $region14: #{critic_srgan_forward.6} parent=11 // pred_check_branch
        %245 = sbr.rel (%p243) target = $region16
      $region15: #{critic_srgan_forward.6} parent=11 // pred_region
        _
      $region16: #{critic_srgan_forward.6} parent=11 // pred_fallthru
        _
      // Predicated region
      $region17: #{critic_srgan_forward.6} parent=11 // pred_check
        %p246 = pneg %p95
      $region18: #{critic_srgan_forward.6} parent=11 // pred_check_branch
        %248 = sbr.rel (%p246) target = $region20
      $region19: #{critic_srgan_forward.6} parent=11 // pred_region
        _
      $region20: #{critic_srgan_forward.6} parent=11 // pred_fallthru
        _
      // Predicated region
      $region21: #{critic_srgan_forward.6} parent=11 // pred_check
        %p249 = pneg %p116
      $region22: #{critic_srgan_forward.6} parent=11 // pred_check_branch
        %251 = sbr.rel (%p249) target = $region24
      $region23: #{critic_srgan_forward.6} parent=11 // pred_region
        _
      $region24: #{critic_srgan_forward.6} parent=11 // pred_fallthru
        _
      // Predicated region
      $region25: #{critic_srgan_forward.6} parent=11 // pred_check
        %p252 = pneg %p137
      $region26: #{critic_srgan_forward.6} parent=11 // pred_check_branch
        %254 = sbr.rel (%p252) target = $region28
      $region27: #{critic_srgan_forward.6} parent=11 // pred_region
        _
      $region28: #{critic_srgan_forward.6} parent=11 // pred_fallthru
        _
      // Predicated region
      $region29: #{critic_srgan_forward.6} parent=11 // pred_check
        %p255 = pneg %p158
      $region30: #{critic_srgan_forward.6} parent=11 // pred_check_branch
        %257 = sbr.rel (%p255) target = $region32
      $region31: #{critic_srgan_forward.6} parent=11 // pred_region
        _
      $region32: #{critic_srgan_forward.6} parent=11 // pred_fallthru
        _
      // Predicated region
      $region33: #{critic_srgan_forward.6} parent=11 // pred_check
        %p258 = pneg %p179
      $region34: #{critic_srgan_forward.6} parent=11 // pred_check_branch
        %260 = sbr.rel (%p258) target = $region36
      $region35: #{critic_srgan_forward.6} parent=11 // pred_region
        _
      $region36: #{critic_srgan_forward.6} parent=11 // pred_fallthru
        _
      // Predicated region
      $region37: #{critic_srgan_forward.6} parent=11 // pred_check
        %p261 = pneg %p200
      $region38: #{critic_srgan_forward.6} parent=11 // pred_check_branch
        %263 = sbr.rel (%p261) target = $region40
      $region39: #{critic_srgan_forward.6} parent=11 // pred_region
        _
      $region40: #{critic_srgan_forward.6} parent=11 // pred_fallthru
        _
    $region12: #{critic_srgan_forward.6} parent=5 // pred_fallthru
      _
    %p264 = scmp.lt.s32.totalorder %s15, 2
    // Predicated region
    $region41: #{critic_srgan_forward.6} parent=5 // pred_check
      %p265 = pneg %p264
    $region42: #{critic_srgan_forward.6} parent=5 // pred_check_branch
      %267 = sbr.rel (%p265) target = $region44
    $region43: #{critic_srgan_forward.6} parent=5 // pred_region
      // Predicated region
      $region45: #{critic_srgan_forward.6} parent=43 // pred_check
        %p268 = pneg %p47
      $region46: #{critic_srgan_forward.6} parent=43 // pred_check_branch
        %270 = sbr.rel (%p268) target = $region48
      $region47: #{critic_srgan_forward.6} parent=43 // pred_region
        %p271 = scmp.lt.s32.totalorder %s22, 1
        %s272 = scalar_select %p271, %s22, 1
        %s273 = smul.addr %s272, 2
        %s274 = smul.addr %s273, 4
        %s275 = scalar_lea.vmem %s0, %s274
      $region48: #{critic_srgan_forward.6} parent=43 // pred_fallthru
        _
    $region44: #{critic_srgan_forward.6} parent=5 // pred_fallthru
      _
    %p276 = scmp.le.s32.totalorder 1, %s15
    %p277 = scmp.lt.s32.totalorder %s15, 3
    %p278 = pnand %p276, %p277
    %p279 = pneg %p278
    // Predicated region
    $region49: #{critic_srgan_forward.6} parent=5 // pred_check
      _
    $region50: #{critic_srgan_forward.6} parent=5 // pred_check_branch
      %281 = sbr.rel (%p278) target = $region52
    $region51: #{critic_srgan_forward.6} parent=5 // pred_region
      %s282 = ssub.s32 %s15, 1
      %p283 = scmp.lt.s32.totalorder %s24, 1
      %s284 = scalar_select %p283, %s24, 1
      %s285 = smul.addr %s284, 2
      %s286 = smul.addr %s285, 4
      %s287 = scalar_lea.vmem %s0, %s286
      %p288 = pneg %p53
      %p289 = pneg %p50
      %p290 = pneg %p74
      %p291 = pneg %p71
      %p292 = pneg %p95
      %p293 = pneg %p92
      %p294 = pneg %p116
      %p295 = pneg %p113
      %p296 = pneg %p137
      %p297 = pneg %p134
      %p298 = pneg %p158
      %p299 = pneg %p155
      %p300 = pneg %p179
      %p301 = pneg %p176
      %p302 = pneg %p200
      %p303 = pneg %p197
      %p304 = pneg %p228
      %p305 = pneg %p225
      %p306 = scmp.lt.s32.totalorder %s24, 1
      %s307 = scalar_select %p306, %s24, 1
      %p308 = scmp.lt.s32.totalorder %s25, 0
      %s309 = scalar_select %p308, %s25, 0
      %s310 = smul.addr %s307, 2
      %s311 = sadd.s32 %s309, %s310
      %s312 = smul.addr %s311, 4
      %s313 = scalar_lea.vmem %s8, %s312
      %p314 = scmp.lt.s32.totalorder %s24, 1
      %s315 = scalar_select %p314, %s24, 1
      %s316 = smul.addr %s315, 2
      %s317 = smul.addr %s316, 4
      %s318 = scalar_lea.vmem %s0, %s317
      %p319 = scmp.lt.s32.totalorder %s24, 1
      %s320 = scalar_select %p319, %s24, 1
      %p321 = scmp.lt.s32.totalorder %s25, 0
      %s322 = scalar_select %p321, %s25, 0
      %s323 = smul.addr %s320, 2
      %s324 = sadd.s32 %s322, %s323
      %s325 = smul.addr %s324, 4
      %s326 = scalar_lea.vmem %s8, %s325
      %v328 = vld [vmem:[%s318] sm:$0xf]
      %v329 = vld [vmem:[%s318 + $0x4] sm:$0xf]
      %v330 = vld [vmem:[%s3] sm:$0x1]
      %v331 = vld [vmem:[%s4] sm:$0x3]
      %333 = vset.pattern.permute.xlu0 0
      %334 = vperm.xlu0 %333, %v331
      %v335 = vpop.permute.xlu0 %334
      %v339 = vunpack.c.l.b16 %v328
      %v340 = vunpack.c.l.b16 %v329
      %v341 = vpack.c.b16 %v340, %v339
      %vm343 = vcmask 130048
      %v345 = vsel %vm343, %v330, 0
      %347 = vmatprep.subr.bf16.mxu0 0
      %348 = vmatpush1.bf16.msra.mxu0 %v341
      %349 = vmatprep.subr.bf16.mxu0 0
      %350 = vmatpush1.bf16.msra.mxu0 0
      %351 = vmatprep.subr.bf16.mxu0 0
      %352 = vmatpush1.bf16.msra.mxu0 0
      %353 = vmatprep.subr.bf16.mxu0 0
      %354 = vmatpush1.bf16.msra.mxu0 0
      %355 = vmatprep.subr.bf16.mxu0 0
      %356 = vmatpush1.bf16.msra.mxu0 0
      %357 = vmatprep.subr.bf16.mxu0 0
      %358 = vmatpush1.bf16.msra.mxu0 0
      %359 = vmatprep.subr.bf16.mxu0 0
      %360 = vmatpush1.bf16.msra.mxu0 0
      %361 = vmatprep.subr.bf16.mxu0 0
      %362 = vmatpush1.bf16.msra.mxu0 0
      %363 = vmatprep.subr.bf16.mxu0 0
      %364 = vmatpush1.bf16.msra.mxu0 0
      %365 = vmatprep.subr.bf16.mxu0 0
      %366 = vmatpush1.bf16.msra.mxu0 0
      %367 = vmatprep.subr.bf16.mxu0 0
      %368 = vmatpush1.bf16.msra.mxu0 0
      %369 = vmatprep.subr.bf16.mxu0 0
      %370 = vmatpush1.bf16.msra.mxu0 0
      %371 = vmatprep.subr.bf16.mxu0 0
      %372 = vmatpush1.bf16.msra.mxu0 0
      %373 = vmatprep.subr.bf16.mxu0 0
      %374 = vmatpush1.bf16.msra.mxu0 0
      %375 = vmatprep.subr.bf16.mxu0 0
      %376 = vmatpush1.bf16.msra.mxu0 0
      %377 = vmatprep.subr.bf16.mxu0 0
      %378 = vmatpush1.bf16.msra.mxu0 0
      %379 = vmatprep.mubr.bf16.mxu0 0
      %380 = vmatmul.mubr.bf16.gmra.mrb[0].mxu0 %v345
      %v381 = vpop.f32.mrb[0].mxu0
      %v382 = vadd.f32 %v335, %v381
      %v383 = vpop.f32.mrb[0].mxu0
      %v384 = vpop.f32.mrb[0].mxu0
      %v385 = vpop.f32.mrb[0].mxu0
      %386 = vdwg.mxu0
      %v387 = vld [vmem:[%s5] sm:$0xf]
      %v388 = vld [vmem:[%s5 + $0x4] sm:$0xf]
      %v389 = vld [vmem:[%s6] sm:$0xff]
      %v390 = vld [vmem:[%s6 + $0x8] sm:$0xff]
      %392 = vset.pattern.permute.xlu0 0
      %393 = vperm.xlu0 %392, %v389
      %v394 = vpop.permute.xlu0 %393
      %397 = vset.pattern.permute.xlu0 0
      %398 = vperm.xlu0 %397, %v390
      %v399 = vpop.permute.xlu0 %398
      %v403 = vunpack.c.l.b16 %v387
      %v404 = vunpack.c.l.b16 %v388
      %v405 = vpack.c.b16 %v404, %v403
      %v407 = vsel %vm343, %v405, 0
      %409 = vmatprep.subr.bf16.mxu0 0
      %410 = vmatpush1.bf16.msra.mxu0 %v341
      %411 = vmatprep.subr.bf16.mxu0 0
      %412 = vmatpush1.bf16.msra.mxu0 0
      %413 = vmatprep.subr.bf16.mxu0 0
      %414 = vmatpush1.bf16.msra.mxu0 0
      %415 = vmatprep.subr.bf16.mxu0 0
      %416 = vmatpush1.bf16.msra.mxu0 0
      %417 = vmatprep.subr.bf16.mxu0 0
      %418 = vmatpush1.bf16.msra.mxu0 0
      %419 = vmatprep.subr.bf16.mxu0 0
      %420 = vmatpush1.bf16.msra.mxu0 0
      %421 = vmatprep.subr.bf16.mxu0 0
      %422 = vmatpush1.bf16.msra.mxu0 0
      %423 = vmatprep.subr.bf16.mxu0 0
      %424 = vmatpush1.bf16.msra.mxu0 0
      %425 = vmatprep.subr.bf16.mxu0 0
      %426 = vmatpush1.bf16.msra.mxu0 0
      %427 = vmatprep.subr.bf16.mxu0 0
      %428 = vmatpush1.bf16.msra.mxu0 0
      %429 = vmatprep.subr.bf16.mxu0 0
      %430 = vmatpush1.bf16.msra.mxu0 0
      %431 = vmatprep.subr.bf16.mxu0 0
      %432 = vmatpush1.bf16.msra.mxu0 0
      %433 = vmatprep.subr.bf16.mxu0 0
      %434 = vmatpush1.bf16.msra.mxu0 0
      %435 = vmatprep.subr.bf16.mxu0 0
      %436 = vmatpush1.bf16.msra.mxu0 0
      %437 = vmatprep.subr.bf16.mxu0 0
      %438 = vmatpush1.bf16.msra.mxu0 0
      %439 = vmatprep.subr.bf16.mxu0 0
      %440 = vmatpush1.bf16.msra.mxu0 0
      %441 = vmatprep.mubr.bf16.mxu0 0
      %442 = vmatmul.mubr.bf16.gmra.mrb[0].mxu0 %v407
      %v443 = vpop.f32.mrb[0].mxu0
      %v444 = vadd.f32 %v394, %v443
      %v445 = vpop.f32.mrb[0].mxu0
      %v446 = vpop.f32.mrb[0].mxu0
      %v447 = vadd.f32 %v399, %v446
      %v448 = vpop.f32.mrb[0].mxu0
      %449 = vdwg.mxu0
      %v450 = vpack.c.bf16 %v382, %v382
      %vm451 = vcmask 516096
      %452 = vst.msk [vmem:[#allocation2] sm:$0x1] %vm451, %v450
      %v453 = vpack.c.bf16 %v447, %v444
      %vm454 = vcmask 523264
      %455 = vst.msk [vmem:[#allocation3] sm:$0xff] %vm454, %v453
      %v456 = vld [vmem:[%s318] sm:$0xf]
      %v457 = vld [vmem:[%s318 + $0x4] sm:$0xf]
      %v458 = vld [vmem:[%s1] sm:$0x1]
      %v459 = vld [vmem:[%s2] sm:$0x3]
      %461 = vset.pattern.permute.xlu0 0
      %462 = vperm.xlu0 %461, %v459
      %v463 = vpop.permute.xlu0 %462
      %v467 = vunpack.c.l.b16 %v456
      %v468 = vunpack.c.l.b16 %v457
      %v469 = vpack.c.b16 %v468, %v467
      %v472 = vsel %vm343, %v458, 0
      %474 = vmatprep.subr.bf16.mxu0 0
      %475 = vmatpush1.bf16.msra.mxu0 %v469
      %476 = vmatprep.subr.bf16.mxu0 0
      %477 = vmatpush1.bf16.msra.mxu0 0
      %478 = vmatprep.subr.bf16.mxu0 0
      %479 = vmatpush1.bf16.msra.mxu0 0
      %480 = vmatprep.subr.bf16.mxu0 0
      %481 = vmatpush1.bf16.msra.mxu0 0
      %482 = vmatprep.subr.bf16.mxu0 0
      %483 = vmatpush1.bf16.msra.mxu0 0
      %484 = vmatprep.subr.bf16.mxu0 0
      %485 = vmatpush1.bf16.msra.mxu0 0
      %486 = vmatprep.subr.bf16.mxu0 0
      %487 = vmatpush1.bf16.msra.mxu0 0
      %488 = vmatprep.subr.bf16.mxu0 0
      %489 = vmatpush1.bf16.msra.mxu0 0
      %490 = vmatprep.subr.bf16.mxu0 0
      %491 = vmatpush1.bf16.msra.mxu0 0
      %492 = vmatprep.subr.bf16.mxu0 0
      %493 = vmatpush1.bf16.msra.mxu0 0
      %494 = vmatprep.subr.bf16.mxu0 0
      %495 = vmatpush1.bf16.msra.mxu0 0
      %496 = vmatprep.subr.bf16.mxu0 0
      %497 = vmatpush1.bf16.msra.mxu0 0
      %498 = vmatprep.subr.bf16.mxu0 0
      %499 = vmatpush1.bf16.msra.mxu0 0
      %500 = vmatprep.subr.bf16.mxu0 0
      %501 = vmatpush1.bf16.msra.mxu0 0
      %502 = vmatprep.subr.bf16.mxu0 0
      %503 = vmatpush1.bf16.msra.mxu0 0
      %504 = vmatprep.subr.bf16.mxu0 0
      %505 = vmatpush1.bf16.msra.mxu0 0
      %506 = vmatprep.mubr.bf16.mxu0 0
      %507 = vmatmul.mubr.bf16.gmra.mrb[0].mxu0 %v472
      %v508 = vpop.f32.mrb[0].mxu0
      %v509 = vadd.f32 %v463, %v508
      %v510 = vpop.f32.mrb[0].mxu0
      %v511 = vpop.f32.mrb[0].mxu0
      %v512 = vpop.f32.mrb[0].mxu0
      %513 = vdwg.mxu0
      %v514 = vpack.c.bf16 %v509, %v509
      %v515 = vld [vmem:[#allocation2] sm:$0x1]
      %516 = vxpose.xlu0.c.b16.start [1/8] %v514, 128
      %517 = vxpose.xlu0.c.b16.cont [2/8] 0, 128
      %518 = vxpose.xlu0.c.b16.cont [3/8] 0, 128
      %519 = vxpose.xlu0.c.b16.cont [4/8] 0, 128
      %520 = vxpose.xlu0.c.b16.cont [5/8] 0, 128
      %521 = vxpose.xlu0.c.b16.cont [6/8] 0, 128
      %522 = vxpose.xlu0.c.b16.cont [7/8] 0, 128
      %523 = vxpose.xlu0.c.b16.end [8/8] 0, 128
      %v524 = vpop.trf.xlu0
      %v525 = vpop.trf.xlu0
      %v526 = vpop.trf.xlu0
      %v527 = vpop.trf.xlu0
      %v528 = vpop.trf.xlu0
      %v529 = vpop.trf.xlu0
      %v530 = vpop.trf.xlu0
      %v531 = vpop.trf.xlu0
      %vm532 = vcmask 15360
      %v534 = vsel %vm532, %v524, 0
      %v537 = vsel %vm532, %v525, 0
      %v540 = vsel %vm532, %v526, 0
      %v543 = vsel %vm532, %v527, 0
      %vm545 = vcmask 1040384
      %v547 = vsel %vm545, %v515, 0
      %549 = vmatprep.subr.bf16.mxu0 0
      %550 = vmatpush1.bf16.msra.mxu0 %v547
      %551 = vmatprep.subr.bf16.mxu0 0
      %552 = vmatpush1.bf16.msra.mxu0 0
      %553 = vmatprep.subr.bf16.mxu0 0
      %554 = vmatpush1.bf16.msra.mxu0 0
      %555 = vmatprep.subr.bf16.mxu0 0
      %556 = vmatpush1.bf16.msra.mxu0 0
      %557 = vmatprep.subr.bf16.mxu0 0
      %558 = vmatpush1.bf16.msra.mxu0 0
      %559 = vmatprep.subr.bf16.mxu0 0
      %560 = vmatpush1.bf16.msra.mxu0 0
      %561 = vmatprep.subr.bf16.mxu0 0
      %562 = vmatpush1.bf16.msra.mxu0 0
      %563 = vmatprep.subr.bf16.mxu0 0
      %564 = vmatpush1.bf16.msra.mxu0 0
      %565 = vmatprep.subr.bf16.mxu0 0
      %566 = vmatpush1.bf16.msra.mxu0 0
      %567 = vmatprep.subr.bf16.mxu0 0
      %568 = vmatpush1.bf16.msra.mxu0 0
      %569 = vmatprep.subr.bf16.mxu0 0
      %570 = vmatpush1.bf16.msra.mxu0 0
      %571 = vmatprep.subr.bf16.mxu0 0
      %572 = vmatpush1.bf16.msra.mxu0 0
      %573 = vmatprep.subr.bf16.mxu0 0
      %574 = vmatpush1.bf16.msra.mxu0 0
      %575 = vmatprep.subr.bf16.mxu0 0
      %576 = vmatpush1.bf16.msra.mxu0 0
      %577 = vmatprep.subr.bf16.mxu0 0
      %578 = vmatpush1.bf16.msra.mxu0 0
      %579 = vmatprep.subr.bf16.mxu0 0
      %580 = vmatpush1.bf16.msra.mxu0 0
      %581 = vmatprep.mubr.bf16.mxu0 0
      %582 = vmatmul.mubr.bf16.gmra.mrb[0].mxu0 %v534
      %v583 = vpop.f32.mrb[0].mxu0
      %v584 = vadd.f32 0.0, %v583
      %v585 = vpop.f32.mrb[0].mxu0
      %v586 = vpop.f32.mrb[0].mxu0
      %v587 = vadd.f32 0.0, %v586
      %v588 = vpop.f32.mrb[0].mxu0
      %589 = vmatprep.mubr.bf16.mxu0 0
      %590 = vmatmul.mubr.bf16.gmra.mrb[0].mxu0 %v537
      %v591 = vpop.f32.mrb[0].mxu0
      %v592 = vadd.f32 0.0, %v591
      %v593 = vpop.f32.mrb[0].mxu0
      %v594 = vpop.f32.mrb[0].mxu0
      %v595 = vadd.f32 0.0, %v594
      %v596 = vpop.f32.mrb[0].mxu0
      %597 = vmatprep.mubr.bf16.mxu0 0
      %598 = vmatmul.mubr.bf16.gmra.mrb[0].mxu0 %v540
      %v599 = vpop.f32.mrb[0].mxu0
      %v600 = vadd.f32 0.0, %v599
      %v601 = vpop.f32.mrb[0].mxu0
      %v602 = vpop.f32.mrb[0].mxu0
      %v603 = vadd.f32 0.0, %v602
      %v604 = vpop.f32.mrb[0].mxu0
      %605 = vmatprep.mubr.bf16.mxu0 0
      %606 = vmatmul.mubr.bf16.gmra.mrb[0].mxu0 %v543
      %v607 = vpop.f32.mrb[0].mxu0
      %v608 = vadd.f32 0.0, %v607
      %v609 = vpop.f32.mrb[0].mxu0
      %v610 = vpop.f32.mrb[0].mxu0
      %v611 = vadd.f32 0.0, %v610
      %v612 = vpop.f32.mrb[0].mxu0
      %613 = vdwg.mxu0
      %v614 = vsel %vm454, %v584, -inf
      %615 = vmax.xlane.f32.xlu0 %v614
      %v616 = vpop.xlane.xlu0 %615
      %v617 = vsel %vm454, %v587, -inf
      %618 = vmax.xlane.f32.xlu0 %v617
      %v619 = vpop.xlane.xlu0 %618
      %v620 = vsel %vm454, %v592, -inf
      %621 = vmax.xlane.f32.xlu0 %v620
      %v622 = vpop.xlane.xlu0 %621
      %v623 = vsel %vm454, %v595, -inf
      %624 = vmax.xlane.f32.xlu0 %v623
      %v625 = vpop.xlane.xlu0 %624
      %v626 = vsel %vm454, %v600, -inf
      %627 = vmax.xlane.f32.xlu0 %v626
      %v628 = vpop.xlane.xlu0 %627
      %v629 = vsel %vm454, %v603, -inf
      %630 = vmax.xlane.f32.xlu0 %v629
      %v631 = vpop.xlane.xlu0 %630
      %v632 = vsel %vm454, %v608, -inf
      %633 = vmax.xlane.f32.xlu0 %v632
      %v634 = vpop.xlane.xlu0 %633
      %v635 = vsel %vm454, %v611, -inf
      %636 = vmax.xlane.f32.xlu0 %v635
      %v637 = vpop.xlane.xlu0 %636
      %v638 = vsub.f32 %v584, %v616
      %v639 = vsub.f32 %v587, %v619
      %v640 = vsub.f32 %v592, %v622
      %v641 = vsub.f32 %v595, %v625
      %v642 = vsub.f32 %v600, %v628
      %v643 = vsub.f32 %v603, %v631
      %v644 = vsub.f32 %v608, %v634
      %v645 = vsub.f32 %v611, %v637
      %v646 = vmul.f32 %v638, 1.442695
      %v647 = vpow.pop %v646
      %v648 = vmul.f32 %v639, 1.442695
      %v649 = vpow.pop %v648
      %v650 = vmul.f32 %v640, 1.442695
      %v651 = vpow.pop %v650
      %v652 = vmul.f32 %v641, 1.442695
      %v653 = vpow.pop %v652
      %v654 = vmul.f32 %v642, 1.442695
      %v655 = vpow.pop %v654
      %v656 = vmul.f32 %v643, 1.442695
      %v657 = vpow.pop %v656
      %v658 = vmul.f32 %v644, 1.442695
      %v659 = vpow.pop %v658
      %v660 = vmul.f32 %v645, 1.442695
      %v661 = vpow.pop %v660
      %v662 = vsel %vm454, %v647, 0.0
      %663 = vadd.xlane.f32.xlu0 %v662
      %v664 = vpop.xlane.xlu0 %663
      %v665 = vsel %vm454, %v649, 0.0
      %666 = vadd.xlane.f32.xlu0 %v665
      %v667 = vpop.xlane.xlu0 %666
      %v668 = vsel %vm454, %v651, 0.0
      %669 = vadd.xlane.f32.xlu0 %v668
      %v670 = vpop.xlane.xlu0 %669
      %v671 = vsel %vm454, %v653, 0.0
      %672 = vadd.xlane.f32.xlu0 %v671
      %v673 = vpop.xlane.xlu0 %672
      %v674 = vsel %vm454, %v655, 0.0
      %675 = vadd.xlane.f32.xlu0 %v674
      %v676 = vpop.xlane.xlu0 %675
      %v677 = vsel %vm454, %v657, 0.0
      %678 = vadd.xlane.f32.xlu0 %v677
      %v679 = vpop.xlane.xlu0 %678
      %v680 = vsel %vm454, %v659, 0.0
      %681 = vadd.xlane.f32.xlu0 %v680
      %v682 = vpop.xlane.xlu0 %681
      %v683 = vsel %vm454, %v661, 0.0
      %684 = vadd.xlane.f32.xlu0 %v683
      %v685 = vpop.xlane.xlu0 %684
      %v686 = vrcp.pop %v664
      %v687 = vrcp.pop %v667
      %v688 = vrcp.pop %v670
      %v689 = vrcp.pop %v673
      %v690 = vrcp.pop %v676
      %v691 = vrcp.pop %v679
      %v692 = vrcp.pop %v682
      %v693 = vrcp.pop %v685
      %v694 = vmul.f32 %v647, %v686
      %v695 = vmul.f32 %v649, %v687
      %v696 = vmul.f32 %v651, %v688
      %v697 = vmul.f32 %v653, %v689
      %v698 = vmul.f32 %v655, %v690
      %v699 = vmul.f32 %v657, %v691
      %v700 = vmul.f32 %v659, %v692
      %v701 = vmul.f32 %v661, %v693
      %v702 = vld [vmem:[#allocation3] sm:$0xff]
      %v703 = vpack.c.bf16 %v695, %v694
      %v704 = vpack.c.bf16 %v697, %v696
      %v705 = vpack.c.bf16 %v699, %v698
      %v706 = vpack.c.bf16 %v701, %v700
      %v708 = vsel %vm454, %v702, 0
      %v711 = vsel %vm454, %v703, 0
      %v714 = vsel %vm454, %v704, 0
      %v717 = vsel %vm454, %v705, 0
      %v720 = vsel %vm454, %v706, 0
      %722 = vmatprep.subr.bf16.mxu0 0
      %723 = vmatpush1.bf16.xpose.msra.mxu0 %v711
      %724 = vmatprep.subr.bf16.mxu0 0
      %725 = vmatpush1.bf16.xpose.msra.mxu0 %v714
      %726 = vmatprep.subr.bf16.mxu0 0
      %727 = vmatpush1.bf16.xpose.msra.mxu0 %v717
      %728 = vmatprep.subr.bf16.mxu0 0
      %729 = vmatpush1.bf16.xpose.msra.mxu0 %v720
      %730 = vmatprep.subr.bf16.mxu0 0
      %731 = vmatpush1.bf16.xpose.msra.mxu0 0
      %732 = vmatprep.subr.bf16.mxu0 0
      %733 = vmatpush1.bf16.xpose.msra.mxu0 0
      %734 = vmatprep.subr.bf16.mxu0 0
      %735 = vmatpush1.bf16.xpose.msra.mxu0 0
      %736 = vmatprep.subr.bf16.mxu0 0
      %737 = vmatpush1.bf16.xpose.msra.mxu0 0
      %738 = vmatprep.subr.bf16.mxu0 0
      %739 = vmatpush1.bf16.xpose.msra.mxu0 0
      %740 = vmatprep.subr.bf16.mxu0 0
      %741 = vmatpush1.bf16.xpose.msra.mxu0 0
      %742 = vmatprep.subr.bf16.mxu0 0
      %743 = vmatpush1.bf16.xpose.msra.mxu0 0
      %744 = vmatprep.subr.bf16.mxu0 0
      %745 = vmatpush1.bf16.xpose.msra.mxu0 0
      %746 = vmatprep.subr.bf16.mxu0 0
      %747 = vmatpush1.bf16.xpose.msra.mxu0 0
      %748 = vmatprep.subr.bf16.mxu0 0
      %749 = vmatpush1.bf16.xpose.msra.mxu0 0
      %750 = vmatprep.subr.bf16.mxu0 0
      %751 = vmatpush1.bf16.xpose.msra.mxu0 0
      %752 = vmatprep.subr.bf16.mxu0 0
      %753 = vmatpush1.bf16.xpose.msra.mxu0 0
      %754 = vmatprep.mubr.bf16.mxu0 0
      %755 = vmatmul.mubr.bf16.gmra.mrb[0].mxu0 %v708
      %v756 = vpop.f32.mrb[0].mxu0
      %v757 = vadd.f32 0.0, %v756
      %v758 = vpop.f32.mrb[0].mxu0
      %v759 = vpop.f32.mrb[0].mxu0
      %v760 = vadd.f32 0.0, %v759
      %v761 = vpop.f32.mrb[0].mxu0
      %762 = vdwg.mxu0
      %s763 = sld [smem:[#allocation4]]
      %v764 = vstv %s763
      %v765 = vmul.f32 %v764, %v757
      %v766 = vmul.f32 %v764, %v760
      %v767 = vunpack.c.l.bf16 %v456
      %v768 = vunpack.c.l.bf16 %v457
      %v769 = vadd.f32 %v765, %v767
      %v770 = vadd.f32 %v766, %v768
      %v771 = vpack.c.bf16 %v770, %v769
      %v773 = vunpack.c.l.b16 %v771
      %v774 = vunpack.c.h.b16 %v771
      %v775 = vpack.c.b16 %v773, %v773
      %v776 = vpack.c.b16 %v774, %v774
      %vm779 = vcmask 519168
      %780 = vst.msk [vmem:[%s326] sm:$0xf] %vm779, %v775
      %781 = vst.msk [vmem:[%s326 + $0x4] sm:$0xf] %vm779, %v776
      %p782 = scmp.lt.s32.totalorder %s24, 1
      %s783 = scalar_select %p782, %s24, 1
      %p784 = scmp.lt.s32.totalorder %s25, 0
      %s785 = scalar_select %p784, %s25, 0
      %s786 = smul.addr %s783, 2
      %s787 = sadd.s32 %s785, %s786
      %s788 = smul.addr %s787, 4
      %s789 = scalar_lea.vmem %s8, %s788
      // Predicated region
      $region53: #{critic_srgan_forward.6} parent=51 // pred_check
        %p790 = pneg %p225
      $region54: #{critic_srgan_forward.6} parent=51 // pred_check_branch
        %792 = sbr.rel (%p790) target = $region56
      $region55: #{critic_srgan_forward.6} parent=51 // pred_region
        _
      $region56: #{critic_srgan_forward.6} parent=51 // pred_fallthru
        _
    $region52: #{critic_srgan_forward.6} parent=5 // pred_fallthru
      _
    %p793 = scmp.le.s32.totalorder 2, %s15
    // Predicated region
    $region57: #{critic_srgan_forward.6} parent=5 // pred_check
      %p794 = pneg %p793
    $region58: #{critic_srgan_forward.6} parent=5 // pred_check_branch
      %796 = sbr.rel (%p794) target = $region60
    $region59: #{critic_srgan_forward.6} parent=5 // pred_region
      %s797 = ssub.s32 %s15, 2
      // Predicated region
      $region61: #{critic_srgan_forward.6} parent=59 // pred_check
        %p798 = pneg %p231
      $region62: #{critic_srgan_forward.6} parent=59 // pred_check_branch
        %800 = sbr.rel (%p798) target = $region64
      $region63: #{critic_srgan_forward.6} parent=59 // pred_region
        %p801 = scmp.lt.s32.totalorder %s26, 1
        %s802 = scalar_select %p801, %s26, 1
        %p803 = scmp.lt.s32.totalorder %s27, 0
        %s804 = scalar_select %p803, %s27, 0
        %s805 = smul.addr %s802, 2
        %s806 = sadd.s32 %s804, %s805
        %s807 = smul.addr %s806, 4
        %s808 = scalar_lea.vmem %s8, %s807
      $region64: #{critic_srgan_forward.6} parent=59 // pred_fallthru
        _
    $region60: #{critic_srgan_forward.6} parent=5 // pred_fallthru
      _
  $region6: #{critic_srgan_forward.6} parent=0 // loop_footer
    %s19 = sadd.s32 1, %s15
  $region7: #{critic_srgan_forward.6} parent=0 // loop_footer_branch
    %14 = sbr.rel target = $region3
  $region8: #{critic_srgan_forward.6} parent=0 // loop_exit
    _

// kernel: critic_srgan_forward.5
$region0: #{critic_srgan_forward.5}
  #allocation0 [shape = 'u32[]', space=smem, size = 0x4, offset = 0x4, fixed_abs, tag = 'smem constant byte address 0x4 - core index']
  #allocation1 [shape = 'u32[144,128]{1,0:T(1,128)}', space=vmem, size = 0x12000, scoped, tag = 'internal scratch']
  %s0 = inlined_call_operand.vmem [shape: bf16[2,3,2,8,72], index: 0, kind: input, shape index: {}]
  %s1 = inlined_call_operand.vmem [shape: bf16[9,16,8], index: 1, kind: input, shape index: {}]
  %s2 = inlined_call_operand.vmem [shape: bf16[2,16,64], index: 2, kind: output, shape index: {}]
  %s3 = sld [smem:[#allocation0]]
  $region41: #{critic_srgan_forward.5} parent=0
    _
  %s5 = ssub.s32 1, %s3
  %s6 = scalar_select 0, %s5, %s3
  loop: start=0, step=1, limit=4
  $region2: #{critic_srgan_forward.5} parent=0 // loop_pre_header
    _
  $region3: #{critic_srgan_forward.5} parent=0 // loop_header
    %s8 = sphi 0, %s12
    %p9 = scmp.ge.s32.totalorder %s8, 4
    %s15 = sphi 0, %s27
    %s16 = sphi 0, %s23
    %s17 = sphi 0, %s15
    %s18 = sphi 0, %s16
    %s19 = sphi 0, %s17
    %s20 = sphi 0, %s18
    %s30 = sphi 0, %s32
    %s33 = sphi 0, %s30
    %s34 = sphi 0, %s33
    %s50 = sphi 0, %s34
    %s54 = sphi 0, %s54
    %s56 = sphi 0, %s54
    %s57 = sphi 0, %s56
    %s71 = sphi 0, %s57
    %s79 = sphi 0, %s81
    %s82 = sphi 0, %s79
    %s83 = sphi 0, %s82
    %s99 = sphi 0, %s83
  $region4: #{critic_srgan_forward.5} parent=0 // loop_header_branch
    %11 = sbr.rel (%p9) target = $region8
  $region5: #{critic_srgan_forward.5} parent=0 // loop_body
    %s13 = ssub.s32 %s8, 1
    %s14 = ssub.s32 %s8, 2
    %s21 = sadd.s32 1, %s16
    %p22 = scmp.ge.s32.totalorder %s21, 1
    %s23 = scalar_select %p22, 0, %s21
    %s24 = sadd.s32 1, %s15
    %s25 = scalar_select %p22, %s24, %s15
    %p26 = scmp.ge.s32.totalorder %s25, 2
    %s27 = scalar_select %p26, 0, %s25
    %s28 = ssub.s32 %s15, %s27
    %p29 = scmp.eq.s32.totalorder %s28, 0
    %s31 = sadd.s32 %s30, 1
    %s32 = scalar_select %p29, %s30, %s31
    %p35 = pneg %p29
    %p36 = scmp.eq.s32.totalorder %s8, 1
    %p37 = por %p35, %p36
    %p38 = scmp.ne.s32.totalorder %s30, %s33
    %p39 = scmp.eq.s32.totalorder %s8, 0
    %p40 = por %p38, %p39
    %p41 = scmp.ne.s32.totalorder %s30, %s33
    %p42 = scmp.eq.s32.totalorder %s13, 1
    %p43 = por %p41, %p42
    %p44 = scmp.ne.s32.totalorder %s33, %s34
    %p45 = scmp.eq.s32.totalorder %s13, 0
    %p46 = por %p44, %p45
    %p47 = scmp.ne.s32.totalorder %s33, %s34
    %p48 = scmp.eq.s32.totalorder %s14, 1
    %p49 = por %p47, %p48
    %p51 = scmp.ne.s32.totalorder %s34, %s50
    %p52 = scmp.eq.s32.totalorder %s14, 0
    %p53 = por %p51, %p52
    %s55 = sadd.s32 %s54, 1
    %p58 = scmp.eq.s32.totalorder %s8, 1
    %p59 = scmp.ne.s32.totalorder %s54, %s56
    %p60 = scmp.eq.s32.totalorder %s8, 0
    %p61 = por %p59, %p60
    %p62 = scmp.ne.s32.totalorder %s54, %s56
    %p63 = scmp.eq.s32.totalorder %s13, 1
    %p64 = por %p62, %p63
    %p65 = scmp.ne.s32.totalorder %s56, %s57
    %p66 = scmp.eq.s32.totalorder %s13, 0
    %p67 = por %p65, %p66
    %p68 = scmp.ne.s32.totalorder %s56, %s57
    %p69 = scmp.eq.s32.totalorder %s14, 1
    %p70 = por %p68, %p69
    %p72 = scmp.ne.s32.totalorder %s57, %s71
    %p73 = scmp.eq.s32.totalorder %s14, 0
    %p74 = por %p72, %p73
    %s75 = ssub.s32 %s15, %s27
    %s76 = ssub.s32 %s16, %s23
    %s77 = sor.u32 %s75, %s76
    %p78 = scmp.eq.s32.totalorder %s77, 0
    %s80 = sadd.s32 %s79, 1
    %s81 = scalar_select %p78, %s79, %s80
    %p84 = pneg %p78
    %p85 = scmp.eq.s32.totalorder %s8, 1
    %p86 = por %p84, %p85
    %p87 = scmp.ne.s32.totalorder %s79, %s82
    %p88 = scmp.eq.s32.totalorder %s8, 0
    %p89 = por %p87, %p88
    %p90 = scmp.ne.s32.totalorder %s79, %s82
    %p91 = scmp.eq.s32.totalorder %s13, 1
    %p92 = por %p90, %p91
    %p93 = scmp.ne.s32.totalorder %s82, %s83
    %p94 = scmp.eq.s32.totalorder %s13, 0
    %p95 = por %p93, %p94
    %p96 = scmp.ne.s32.totalorder %s82, %s83
    %p97 = scmp.eq.s32.totalorder %s14, 1
    %p98 = por %p96, %p97
    %p100 = scmp.ne.s32.totalorder %s83, %s99
    %p101 = scmp.eq.s32.totalorder %s14, 0
    %p102 = por %p100, %p101
    %p103 = scmp.le.s32.totalorder 1, %s8
    %p104 = scmp.lt.s32.totalorder %s8, 3
    %p105 = pnand %p103, %p104
    %p106 = pneg %p105
    // Predicated region
    $region9: #{critic_srgan_forward.5} parent=5 // pred_check
      _
    $region10: #{critic_srgan_forward.5} parent=5 // pred_check_branch
      %108 = sbr.rel (%p105) target = $region12
    $region11: #{critic_srgan_forward.5} parent=5 // pred_region
      %s109 = ssub.s32 %s8, 1
      // Predicated region
      $region13: #{critic_srgan_forward.5} parent=11 // pred_check
        %p110 = pneg %p67
      $region14: #{critic_srgan_forward.5} parent=11 // pred_check_branch
        %112 = sbr.rel (%p110) target = $region16
      $region15: #{critic_srgan_forward.5} parent=11 // pred_region
        _
      $region16: #{critic_srgan_forward.5} parent=11 // pred_fallthru
        _
    $region12: #{critic_srgan_forward.5} parent=5 // pred_fallthru
      _
    %p113 = scmp.lt.s32.totalorder %s8, 2
    // Predicated region
    $region17: #{critic_srgan_forward.5} parent=5 // pred_check
      %p114 = pneg %p113
    $region18: #{critic_srgan_forward.5} parent=5 // pred_check_branch
      %116 = sbr.rel (%p114) target = $region20
    $region19: #{critic_srgan_forward.5} parent=5 // pred_region
      // Predicated region
      $region21: #{critic_srgan_forward.5} parent=19 // pred_check
        %p117 = pneg %p40
      $region22: #{critic_srgan_forward.5} parent=19 // pred_check_branch
        %119 = sbr.rel (%p117) target = $region24
      $region23: #{critic_srgan_forward.5} parent=19 // pred_region
        %p120 = scmp.lt.s32.totalorder %s15, 1
        %s121 = scalar_select %p120, %s15, 1
        %s122 = smul.addr %s121, 6
        %s123 = smul.addr %s122, 4
        %s124 = scalar_lea.vmem %s0, %s123
      $region24: #{critic_srgan_forward.5} parent=19 // pred_fallthru
        _
    $region20: #{critic_srgan_forward.5} parent=5 // pred_fallthru
      _
    %p125 = scmp.le.s32.totalorder 1, %s8
    %p126 = scmp.lt.s32.totalorder %s8, 3
    %p127 = pnand %p125, %p126
    %p128 = pneg %p127
    // Predicated region
    $region25: #{critic_srgan_forward.5} parent=5 // pred_check
      _
    $region26: #{critic_srgan_forward.5} parent=5 // pred_check_branch
      %130 = sbr.rel (%p127) target = $region28
    $region27: #{critic_srgan_forward.5} parent=5 // pred_region
      %s131 = ssub.s32 %s8, 1
      %p132 = scmp.lt.s32.totalorder %s17, 1
      %s133 = scalar_select %p132, %s17, 1
      %s134 = smul.addr %s133, 6
      %s135 = smul.addr %s134, 4
      %s136 = scalar_lea.vmem %s0, %s135
      %p137 = pneg %p46
      %p138 = pneg %p43
      %p139 = pneg %p67
      %p140 = pneg %p64
      %p141 = pneg %p95
      %p142 = pneg %p92
      %p143 = scmp.lt.s32.totalorder %s17, 1
      %s144 = scalar_select %p143, %s17, 1
      %p145 = scmp.lt.s32.totalorder %s18, 0
      %s146 = scalar_select %p145, %s18, 0
      %s147 = smul.addr %s144, 2
      %s148 = sadd.s32 %s146, %s147
      %s149 = smul.addr %s148, 4
      %s150 = scalar_lea.vmem %s2, %s149
      %p151 = scmp.lt.s32.totalorder %s17, 1
      %s152 = scalar_select %p151, %s17, 1
      %s153 = smul.addr %s152, 6
      %s154 = smul.addr %s153, 4
      %s155 = scalar_lea.vmem %s0, %s154
      %p156 = scmp.lt.s32.totalorder %s17, 1
      %s157 = scalar_select %p156, %s17, 1
      %p158 = scmp.lt.s32.totalorder %s18, 0
      %s159 = scalar_select %p158, %s18, 0
      %s160 = smul.addr %s157, 2
      %s161 = sadd.s32 %s159, %s160
      %s162 = smul.addr %s161, 4
      %s163 = scalar_lea.vmem %s2, %s162
      %v165 = vld [vmem:[%s1] sm:$0xf]
      %v166 = vld [vmem:[%s1 + $0x4] sm:$0xf]
      %v167 = vld [vmem:[%s155] sm:$0xf]
      %s168 = scalar_lea.vmem %s1, 8
      %v169 = vld [vmem:[%s168] sm:$0xf]
      %v170 = vld [vmem:[%s168 + $0x4] sm:$0xf]
      %s171 = scalar_lea.vmem %s155, 8
      %v172 = vld [vmem:[%s171] sm:$0xf]
      %v175 = vunpack.c.l.b16 %v169
      %v176 = vunpack.c.l.b16 %v170
      %v177 = vpack.c.b16 %v176, %v175
      %vm178 = vcmask 64512
      %v180 = vsel %vm178, %v177, 0
      %vm182 = vcmask 1043456
      %v184 = vsel %vm182, %v172, 0
      %186 = vmatprep.subr.bf16.mxu0 0
      %187 = vmatpush1.bf16.msra.mxu0 %v184
      %188 = vmatprep.subr.bf16.mxu0 0
      %189 = vmatpush1.bf16.msra.mxu0 0
      %190 = vmatprep.subr.bf16.mxu0 0
      %191 = vmatpush1.bf16.msra.mxu0 0
      %192 = vmatprep.subr.bf16.mxu0 0
      %193 = vmatpush1.bf16.msra.mxu0 0
      %194 = vmatprep.subr.bf16.mxu0 0
      %195 = vmatpush1.bf16.msra.mxu0 0
      %196 = vmatprep.subr.bf16.mxu0 0
      %197 = vmatpush1.bf16.msra.mxu0 0
      %198 = vmatprep.subr.bf16.mxu0 0
      %199 = vmatpush1.bf16.msra.mxu0 0
      %200 = vmatprep.subr.bf16.mxu0 0
      %201 = vmatpush1.bf16.msra.mxu0 0
      %202 = vmatprep.subr.bf16.mxu0 0
      %203 = vmatpush1.bf16.msra.mxu0 0
      %204 = vmatprep.subr.bf16.mxu0 0
      %205 = vmatpush1.bf16.msra.mxu0 0
      %206 = vmatprep.subr.bf16.mxu0 0
      %207 = vmatpush1.bf16.msra.mxu0 0
      %208 = vmatprep.subr.bf16.mxu0 0
      %209 = vmatpush1.bf16.msra.mxu0 0
      %210 = vmatprep.subr.bf16.mxu0 0
      %211 = vmatpush1.bf16.msra.mxu0 0
      %212 = vmatprep.subr.bf16.mxu0 0
      %213 = vmatpush1.bf16.msra.mxu0 0
      %214 = vmatprep.subr.bf16.mxu0 0
      %215 = vmatpush1.bf16.msra.mxu0 0
      %216 = vmatprep.subr.bf16.mxu0 0
      %217 = vmatpush1.bf16.msra.mxu0 0
      %218 = vmatprep.mubr.bf16.mxu0 0
      %219 = vmatmul.mubr.bf16.gmra.mrb[0].mxu0 %v180
      %v220 = vpop.f32.mrb[0].mxu0
      %v221 = vadd.f32 0.0, %v220
      %v222 = vpop.f32.mrb[0].mxu0
      %v223 = vpop.f32.mrb[0].mxu0
      %v224 = vadd.f32 0.0, %v223
      %v225 = vpop.f32.mrb[0].mxu0
      %226 = vdwg.mxu0
      %v229 = vunpack.c.l.b16 %v165
      %v230 = vunpack.c.l.b16 %v166
      %v231 = vpack.c.b16 %v230, %v229
      %v233 = vsel %vm178, %v231, 0
      %v236 = vsel %vm182, %v167, 0
      %238 = vmatprep.subr.bf16.mxu0 0
      %239 = vmatpush1.bf16.msra.mxu0 %v236
      %240 = vmatprep.subr.bf16.mxu0 0
      %241 = vmatpush1.bf16.msra.mxu0 0
      %242 = vmatprep.subr.bf16.mxu0 0
      %243 = vmatpush1.bf16.msra.mxu0 0
      %244 = vmatprep.subr.bf16.mxu0 0
      %245 = vmatpush1.bf16.msra.mxu0 0
      %246 = vmatprep.subr.bf16.mxu0 0
      %247 = vmatpush1.bf16.msra.mxu0 0
      %248 = vmatprep.subr.bf16.mxu0 0
      %249 = vmatpush1.bf16.msra.mxu0 0
      %250 = vmatprep.subr.bf16.mxu0 0
      %251 = vmatpush1.bf16.msra.mxu0 0
      %252 = vmatprep.subr.bf16.mxu0 0
      %253 = vmatpush1.bf16.msra.mxu0 0
      %254 = vmatprep.subr.bf16.mxu0 0
      %255 = vmatpush1.bf16.msra.mxu0 0
      %256 = vmatprep.subr.bf16.mxu0 0
      %257 = vmatpush1.bf16.msra.mxu0 0
      %258 = vmatprep.subr.bf16.mxu0 0
      %259 = vmatpush1.bf16.msra.mxu0 0
      %260 = vmatprep.subr.bf16.mxu0 0
      %261 = vmatpush1.bf16.msra.mxu0 0
      %262 = vmatprep.subr.bf16.mxu0 0
      %263 = vmatpush1.bf16.msra.mxu0 0
      %264 = vmatprep.subr.bf16.mxu0 0
      %265 = vmatpush1.bf16.msra.mxu0 0
      %266 = vmatprep.subr.bf16.mxu0 0
      %267 = vmatpush1.bf16.msra.mxu0 0
      %268 = vmatprep.subr.bf16.mxu0 0
      %269 = vmatpush1.bf16.msra.mxu0 0
      %270 = vmatprep.mubr.bf16.mxu0 0
      %271 = vmatmul.mubr.bf16.gmra.mrb[0].mxu0 %v233
      %v272 = vpop.f32.mrb[0].mxu0
      %v273 = vadd.f32 %v221, %v272
      %v274 = vpop.f32.mrb[0].mxu0
      %v275 = vpop.f32.mrb[0].mxu0
      %v276 = vadd.f32 %v224, %v275
      %v277 = vpop.f32.mrb[0].mxu0
      %278 = vdwg.mxu0
      %s279 = scalar_lea.vmem %s1, 16
      %v280 = vld [vmem:[%s279] sm:$0xf]
      %v281 = vld [vmem:[%s279 + $0x4] sm:$0xf]
      %s282 = scalar_lea.vmem %s155, 16
      %v283 = vld [vmem:[%s282] sm:$0xf]
      %v286 = vunpack.c.l.b16 %v280
      %v287 = vunpack.c.l.b16 %v281
      %v288 = vpack.c.b16 %v287, %v286
      %v290 = vsel %vm178, %v288, 0
      %v293 = vsel %vm182, %v283, 0
      %295 = vmatprep.subr.bf16.mxu0 0
      %296 = vmatpush1.bf16.msra.mxu0 %v293
      %297 = vmatprep.subr.bf16.mxu0 0
      %298 = vmatpush1.bf16.msra.mxu0 0
      %299 = vmatprep.subr.bf16.mxu0 0
      %300 = vmatpush1.bf16.msra.mxu0 0
      %301 = vmatprep.subr.bf16.mxu0 0
      %302 = vmatpush1.bf16.msra.mxu0 0
      %303 = vmatprep.subr.bf16.mxu0 0
      %304 = vmatpush1.bf16.msra.mxu0 0
      %305 = vmatprep.subr.bf16.mxu0 0
      %306 = vmatpush1.bf16.msra.mxu0 0
      %307 = vmatprep.subr.bf16.mxu0 0
      %308 = vmatpush1.bf16.msra.mxu0 0
      %309 = vmatprep.subr.bf16.mxu0 0
      %310 = vmatpush1.bf16.msra.mxu0 0
      %311 = vmatprep.subr.bf16.mxu0 0
      %312 = vmatpush1.bf16.msra.mxu0 0
      %313 = vmatprep.subr.bf16.mxu0 0
      %314 = vmatpush1.bf16.msra.mxu0 0
      %315 = vmatprep.subr.bf16.mxu0 0
      %316 = vmatpush1.bf16.msra.mxu0 0
      %317 = vmatprep.subr.bf16.mxu0 0
      %318 = vmatpush1.bf16.msra.mxu0 0
      %319 = vmatprep.subr.bf16.mxu0 0
      %320 = vmatpush1.bf16.msra.mxu0 0
      %321 = vmatprep.subr.bf16.mxu0 0
      %322 = vmatpush1.bf16.msra.mxu0 0
      %323 = vmatprep.subr.bf16.mxu0 0
      %324 = vmatpush1.bf16.msra.mxu0 0
      %325 = vmatprep.subr.bf16.mxu0 0
      %326 = vmatpush1.bf16.msra.mxu0 0
      %327 = vmatprep.mubr.bf16.mxu0 0
      %328 = vmatmul.mubr.bf16.gmra.mrb[0].mxu0 %v290
      %v329 = vpop.f32.mrb[0].mxu0
      %v330 = vadd.f32 0.0, %v329
      %v331 = vpop.f32.mrb[0].mxu0
      %v332 = vpop.f32.mrb[0].mxu0
      %v333 = vadd.f32 0.0, %v332
      %v334 = vpop.f32.mrb[0].mxu0
      %335 = vdwg.mxu0
      %v336 = vadd.f32 %v273, %v330
      %v337 = vadd.f32 %v276, %v333
      %s338 = scalar_lea.vmem %s1, 24
      %v339 = vld [vmem:[%s338] sm:$0xf]
      %v340 = vld [vmem:[%s338 + $0x4] sm:$0xf]
      %s341 = scalar_lea.vmem %s155, 4
      %v342 = vld [vmem:[%s341] sm:$0xf]
      %v345 = vunpack.c.l.b16 %v339
      %v346 = vunpack.c.l.b16 %v340
      %v347 = vpack.c.b16 %v346, %v345
      %v349 = vsel %vm178, %v347, 0
      %v352 = vsel %vm182, %v342, 0
      %354 = vmatprep.subr.bf16.mxu0 0
      %355 = vmatpush1.bf16.msra.mxu0 %v352
      %356 = vmatprep.subr.bf16.mxu0 0
      %357 = vmatpush1.bf16.msra.mxu0 0
      %358 = vmatprep.subr.bf16.mxu0 0
      %359 = vmatpush1.bf16.msra.mxu0 0
      %360 = vmatprep.subr.bf16.mxu0 0
      %361 = vmatpush1.bf16.msra.mxu0 0
      %362 = vmatprep.subr.bf16.mxu0 0
      %363 = vmatpush1.bf16.msra.mxu0 0
      %364 = vmatprep.subr.bf16.mxu0 0
      %365 = vmatpush1.bf16.msra.mxu0 0
      %366 = vmatprep.subr.bf16.mxu0 0
      %367 = vmatpush1.bf16.msra.mxu0 0
      %368 = vmatprep.subr.bf16.mxu0 0
      %369 = vmatpush1.bf16.msra.mxu0 0
      %370 = vmatprep.subr.bf16.mxu0 0
      %371 = vmatpush1.bf16.msra.mxu0 0
      %372 = vmatprep.subr.bf16.mxu0 0
      %373 = vmatpush1.bf16.msra.mxu0 0
      %374 = vmatprep.subr.bf16.mxu0 0
      %375 = vmatpush1.bf16.msra.mxu0 0
      %376 = vmatprep.subr.bf16.mxu0 0
      %377 = vmatpush1.bf16.msra.mxu0 0
      %378 = vmatprep.subr.bf16.mxu0 0
      %379 = vmatpush1.bf16.msra.mxu0 0
      %380 = vmatprep.subr.bf16.mxu0 0
      %381 = vmatpush1.bf16.msra.mxu0 0
      %382 = vmatprep.subr.bf16.mxu0 0
      %383 = vmatpush1.bf16.msra.mxu0 0
      %384 = vmatprep.subr.bf16.mxu0 0
      %385 = vmatpush1.bf16.msra.mxu0 0
      %386 = vmatprep.mubr.bf16.mxu0 0
      %387 = vmatmul.mubr.bf16.gmra.mrb[0].mxu0 %v349
      %v388 = vpop.f32.mrb[0].mxu0
      %v389 = vadd.f32 0.0, %v388
      %v390 = vpop.f32.mrb[0].mxu0
      %v391 = vpop.f32.mrb[0].mxu0
      %v392 = vadd.f32 0.0, %v391
      %v393 = vpop.f32.mrb[0].mxu0
      %394 = vdwg.mxu0
      %v395 = vadd.f32 %v336, %v389
      %v396 = vadd.f32 %v337, %v392
      %s397 = scalar_lea.vmem %s1, 32
      %v398 = vld [vmem:[%s397] sm:$0xf]
      %v399 = vld [vmem:[%s397 + $0x4] sm:$0xf]
      %s400 = scalar_lea.vmem %s155, 12
      %v401 = vld [vmem:[%s400] sm:$0xf]
      %v404 = vunpack.c.l.b16 %v398
      %v405 = vunpack.c.l.b16 %v399
      %v406 = vpack.c.b16 %v405, %v404
      %v408 = vsel %vm178, %v406, 0
      %v411 = vsel %vm182, %v401, 0
      %413 = vmatprep.subr.bf16.mxu0 0
      %414 = vmatpush1.bf16.msra.mxu0 %v411
      %415 = vmatprep.subr.bf16.mxu0 0
      %416 = vmatpush1.bf16.msra.mxu0 0
      %417 = vmatprep.subr.bf16.mxu0 0
      %418 = vmatpush1.bf16.msra.mxu0 0
      %419 = vmatprep.subr.bf16.mxu0 0
      %420 = vmatpush1.bf16.msra.mxu0 0
      %421 = vmatprep.subr.bf16.mxu0 0
      %422 = vmatpush1.bf16.msra.mxu0 0
      %423 = vmatprep.subr.bf16.mxu0 0
      %424 = vmatpush1.bf16.msra.mxu0 0
      %425 = vmatprep.subr.bf16.mxu0 0
      %426 = vmatpush1.bf16.msra.mxu0 0
      %427 = vmatprep.subr.bf16.mxu0 0
      %428 = vmatpush1.bf16.msra.mxu0 0
      %429 = vmatprep.subr.bf16.mxu0 0
      %430 = vmatpush1.bf16.msra.mxu0 0
      %431 = vmatprep.subr.bf16.mxu0 0
      %432 = vmatpush1.bf16.msra.mxu0 0
      %433 = vmatprep.subr.bf16.mxu0 0
      %434 = vmatpush1.bf16.msra.mxu0 0
      %435 = vmatprep.subr.bf16.mxu0 0
      %436 = vmatpush1.bf16.msra.mxu0 0
      %437 = vmatprep.subr.bf16.mxu0 0
      %438 = vmatpush1.bf16.msra.mxu0 0
      %439 = vmatprep.subr.bf16.mxu0 0
      %440 = vmatpush1.bf16.msra.mxu0 0
      %441 = vmatprep.subr.bf16.mxu0 0
      %442 = vmatpush1.bf16.msra.mxu0 0
      %443 = vmatprep.subr.bf16.mxu0 0
      %444 = vmatpush1.bf16.msra.mxu0 0
      %445 = vmatprep.mubr.bf16.mxu0 0
      %446 = vmatmul.mubr.bf16.gmra.mrb[0].mxu0 %v408
      %v447 = vpop.f32.mrb[0].mxu0
      %v448 = vadd.f32 0.0, %v447
      %v449 = vpop.f32.mrb[0].mxu0
      %v450 = vpop.f32.mrb[0].mxu0
      %v451 = vadd.f32 0.0, %v450
      %v452 = vpop.f32.mrb[0].mxu0
      %453 = vdwg.mxu0
      %v454 = vadd.f32 %v395, %v448
      %v455 = vadd.f32 %v396, %v451
      %s456 = scalar_lea.vmem %s1, 40
      %v457 = vld [vmem:[%s456] sm:$0xf]
      %v458 = vld [vmem:[%s456 + $0x4] sm:$0xf]
      %s459 = scalar_lea.vmem %s155, 20
      %v460 = vld [vmem:[%s459] sm:$0xf]
      %v463 = vunpack.c.l.b16 %v457
      %v464 = vunpack.c.l.b16 %v458
      %v465 = vpack.c.b16 %v464, %v463
      %v467 = vsel %vm178, %v465, 0
      %v470 = vsel %vm182, %v460, 0
      %472 = vmatprep.subr.bf16.mxu0 0
      %473 = vmatpush1.bf16.msra.mxu0 %v470
      %474 = vmatprep.subr.bf16.mxu0 0
      %475 = vmatpush1.bf16.msra.mxu0 0
      %476 = vmatprep.subr.bf16.mxu0 0
      %477 = vmatpush1.bf16.msra.mxu0 0
      %478 = vmatprep.subr.bf16.mxu0 0
      %479 = vmatpush1.bf16.msra.mxu0 0
      %480 = vmatprep.subr.bf16.mxu0 0
      %481 = vmatpush1.bf16.msra.mxu0 0
      %482 = vmatprep.subr.bf16.mxu0 0
      %483 = vmatpush1.bf16.msra.mxu0 0
      %484 = vmatprep.subr.bf16.mxu0 0
      %485 = vmatpush1.bf16.msra.mxu0 0
      %486 = vmatprep.subr.bf16.mxu0 0
      %487 = vmatpush1.bf16.msra.mxu0 0
      %488 = vmatprep.subr.bf16.mxu0 0
      %489 = vmatpush1.bf16.msra.mxu0 0
      %490 = vmatprep.subr.bf16.mxu0 0
      %491 = vmatpush1.bf16.msra.mxu0 0
      %492 = vmatprep.subr.bf16.mxu0 0
      %493 = vmatpush1.bf16.msra.mxu0 0
      %494 = vmatprep.subr.bf16.mxu0 0
      %495 = vmatpush1.bf16.msra.mxu0 0
      %496 = vmatprep.subr.bf16.mxu0 0
      %497 = vmatpush1.bf16.msra.mxu0 0
      %498 = vmatprep.subr.bf16.mxu0 0
      %499 = vmatpush1.bf16.msra.mxu0 0
      %500 = vmatprep.subr.bf16.mxu0 0
      %501 = vmatpush1.bf16.msra.mxu0 0
      %502 = vmatprep.subr.bf16.mxu0 0
      %503 = vmatpush1.bf16.msra.mxu0 0
      %504 = vmatprep.mubr.bf16.mxu0 0
      %505 = vmatmul.mubr.bf16.gmra.mrb[0].mxu0 %v467
      %v506 = vpop.f32.mrb[0].mxu0
      %v507 = vadd.f32 0.0, %v506
      %v508 = vpop.f32.mrb[0].mxu0
      %v509 = vpop.f32.mrb[0].mxu0
      %v510 = vadd.f32 0.0, %v509
      %v511 = vpop.f32.mrb[0].mxu0
      %512 = vdwg.mxu0
      %v513 = vadd.f32 %v454, %v507
      %v514 = vadd.f32 %v455, %v510
      %s515 = scalar_lea.vmem %s1, 48
      %v516 = vld [vmem:[%s515] sm:$0xf]
      %v517 = vld [vmem:[%s515 + $0x4] sm:$0xf]
      %v520 = vunpack.c.l.b16 %v516
      %v521 = vunpack.c.l.b16 %v517
      %v522 = vpack.c.b16 %v521, %v520
      %v524 = vunpack.c.l.b16 %v167
      %v525 = vpack.c.b16 %v524, %v524
      %526 = vrot.lane.b32.xlu0 %v525, 120
      %v527 = vpop.permute.xlu0 %526
      %v529 = vsel %vm178, %v522, 0
      %v532 = vsel %vm182, %v527, 0
      %534 = vmatprep.subr.bf16.mxu0 0
      %535 = vmatpush1.bf16.msra.mxu0 %v532
      %536 = vmatprep.subr.bf16.mxu0 0
      %537 = vmatpush1.bf16.msra.mxu0 0
      %538 = vmatprep.subr.bf16.mxu0 0
      %539 = vmatpush1.bf16.msra.mxu0 0
      %540 = vmatprep.subr.bf16.mxu0 0
      %541 = vmatpush1.bf16.msra.mxu0 0
      %542 = vmatprep.subr.bf16.mxu0 0
      %543 = vmatpush1.bf16.msra.mxu0 0
      %544 = vmatprep.subr.bf16.mxu0 0
      %545 = vmatpush1.bf16.msra.mxu0 0
      %546 = vmatprep.subr.bf16.mxu0 0
      %547 = vmatpush1.bf16.msra.mxu0 0
      %548 = vmatprep.subr.bf16.mxu0 0
      %549 = vmatpush1.bf16.msra.mxu0 0
      %550 = vmatprep.subr.bf16.mxu0 0
      %551 = vmatpush1.bf16.msra.mxu0 0
      %552 = vmatprep.subr.bf16.mxu0 0
      %553 = vmatpush1.bf16.msra.mxu0 0
      %554 = vmatprep.subr.bf16.mxu0 0
      %555 = vmatpush1.bf16.msra.mxu0 0
      %556 = vmatprep.subr.bf16.mxu0 0
      %557 = vmatpush1.bf16.msra.mxu0 0
      %558 = vmatprep.subr.bf16.mxu0 0
      %559 = vmatpush1.bf16.msra.mxu0 0
      %560 = vmatprep.subr.bf16.mxu0 0
      %561 = vmatpush1.bf16.msra.mxu0 0
      %562 = vmatprep.subr.bf16.mxu0 0
      %563 = vmatpush1.bf16.msra.mxu0 0
      %564 = vmatprep.subr.bf16.mxu0 0
      %565 = vmatpush1.bf16.msra.mxu0 0
      %566 = vmatprep.mubr.bf16.mxu0 0
      %567 = vmatmul.mubr.bf16.gmra.mrb[0].mxu0 %v529
      %v568 = vpop.f32.mrb[0].mxu0
      %v569 = vadd.f32 0.0, %v568
      %v570 = vpop.f32.mrb[0].mxu0
      %v571 = vpop.f32.mrb[0].mxu0
      %v572 = vadd.f32 0.0, %v571
      %v573 = vpop.f32.mrb[0].mxu0
      %574 = vdwg.mxu0
      %v575 = vadd.f32 %v513, %v569
      %v576 = vadd.f32 %v514, %v572
      %s577 = scalar_lea.vmem %s1, 56
      %v578 = vld [vmem:[%s577] sm:$0xf]
      %v579 = vld [vmem:[%s577 + $0x4] sm:$0xf]
      %v582 = vunpack.c.l.b16 %v578
      %v583 = vunpack.c.l.b16 %v579
      %v584 = vpack.c.b16 %v583, %v582
      %v586 = vunpack.c.l.b16 %v172
      %v587 = vpack.c.b16 %v586, %v586
      %588 = vrot.lane.b32.xlu0 %v587, 120
      %v589 = vpop.permute.xlu0 %588
      %v591 = vsel %vm178, %v584, 0
      %v594 = vsel %vm182, %v589, 0
      %596 = vmatprep.subr.bf16.mxu0 0
      %597 = vmatpush1.bf16.msra.mxu0 %v594
      %598 = vmatprep.subr.bf16.mxu0 0
      %599 = vmatpush1.bf16.msra.mxu0 0
      %600 = vmatprep.subr.bf16.mxu0 0
      %601 = vmatpush1.bf16.msra.mxu0 0
      %602 = vmatprep.subr.bf16.mxu0 0
      %603 = vmatpush1.bf16.msra.mxu0 0
      %604 = vmatprep.subr.bf16.mxu0 0
      %605 = vmatpush1.bf16.msra.mxu0 0
      %606 = vmatprep.subr.bf16.mxu0 0
      %607 = vmatpush1.bf16.msra.mxu0 0
      %608 = vmatprep.subr.bf16.mxu0 0
      %609 = vmatpush1.bf16.msra.mxu0 0
      %610 = vmatprep.subr.bf16.mxu0 0
      %611 = vmatpush1.bf16.msra.mxu0 0
      %612 = vmatprep.subr.bf16.mxu0 0
      %613 = vmatpush1.bf16.msra.mxu0 0
      %614 = vmatprep.subr.bf16.mxu0 0
      %615 = vmatpush1.bf16.msra.mxu0 0
      %616 = vmatprep.subr.bf16.mxu0 0
      %617 = vmatpush1.bf16.msra.mxu0 0
      %618 = vmatprep.subr.bf16.mxu0 0
      %619 = vmatpush1.bf16.msra.mxu0 0
      %620 = vmatprep.subr.bf16.mxu0 0
      %621 = vmatpush1.bf16.msra.mxu0 0
      %622 = vmatprep.subr.bf16.mxu0 0
      %623 = vmatpush1.bf16.msra.mxu0 0
      %624 = vmatprep.subr.bf16.mxu0 0
      %625 = vmatpush1.bf16.msra.mxu0 0
      %626 = vmatprep.subr.bf16.mxu0 0
      %627 = vmatpush1.bf16.msra.mxu0 0
      %628 = vmatprep.mubr.bf16.mxu0 0
      %629 = vmatmul.mubr.bf16.gmra.mrb[0].mxu0 %v591
      %v630 = vpop.f32.mrb[0].mxu0
      %v631 = vadd.f32 0.0, %v630
      %v632 = vpop.f32.mrb[0].mxu0
      %v633 = vpop.f32.mrb[0].mxu0
      %v634 = vadd.f32 0.0, %v633
      %v635 = vpop.f32.mrb[0].mxu0
      %636 = vdwg.mxu0
      %v637 = vadd.f32 %v575, %v631
      %v638 = vadd.f32 %v576, %v634
      %s639 = scalar_lea.vmem %s1, 64
      %v640 = vld [vmem:[%s639] sm:$0xf]
      %v641 = vld [vmem:[%s639 + $0x4] sm:$0xf]
      %v644 = vunpack.c.l.b16 %v640
      %v645 = vunpack.c.l.b16 %v641
      %v646 = vpack.c.b16 %v645, %v644
      %v648 = vunpack.c.l.b16 %v283
      %v649 = vpack.c.b16 %v648, %v648
      %650 = vrot.lane.b32.xlu0 %v649, 120
      %v651 = vpop.permute.xlu0 %650
      %v653 = vsel %vm178, %v646, 0
      %v656 = vsel %vm182, %v651, 0
      %658 = vmatprep.subr.bf16.mxu0 0
      %659 = vmatpush1.bf16.msra.mxu0 %v656
      %660 = vmatprep.subr.bf16.mxu0 0
      %661 = vmatpush1.bf16.msra.mxu0 0
      %662 = vmatprep.subr.bf16.mxu0 0
      %663 = vmatpush1.bf16.msra.mxu0 0
      %664 = vmatprep.subr.bf16.mxu0 0
      %665 = vmatpush1.bf16.msra.mxu0 0
      %666 = vmatprep.subr.bf16.mxu0 0
      %667 = vmatpush1.bf16.msra.mxu0 0
      %668 = vmatprep.subr.bf16.mxu0 0
      %669 = vmatpush1.bf16.msra.mxu0 0
      %670 = vmatprep.subr.bf16.mxu0 0
      %671 = vmatpush1.bf16.msra.mxu0 0
      %672 = vmatprep.subr.bf16.mxu0 0
      %673 = vmatpush1.bf16.msra.mxu0 0
      %674 = vmatprep.subr.bf16.mxu0 0
      %675 = vmatpush1.bf16.msra.mxu0 0
      %676 = vmatprep.subr.bf16.mxu0 0
      %677 = vmatpush1.bf16.msra.mxu0 0
      %678 = vmatprep.subr.bf16.mxu0 0
      %679 = vmatpush1.bf16.msra.mxu0 0
      %680 = vmatprep.subr.bf16.mxu0 0
      %681 = vmatpush1.bf16.msra.mxu0 0
      %682 = vmatprep.subr.bf16.mxu0 0
      %683 = vmatpush1.bf16.msra.mxu0 0
      %684 = vmatprep.subr.bf16.mxu0 0
      %685 = vmatpush1.bf16.msra.mxu0 0
      %686 = vmatprep.subr.bf16.mxu0 0
      %687 = vmatpush1.bf16.msra.mxu0 0
      %688 = vmatprep.subr.bf16.mxu0 0
      %689 = vmatpush1.bf16.msra.mxu0 0
      %690 = vmatprep.mubr.bf16.mxu0 0
      %691 = vmatmul.mubr.bf16.gmra.mrb[0].mxu0 %v653
      %v692 = vpop.f32.mrb[0].mxu0
      %v693 = vadd.f32 0.0, %v692
      %v694 = vpop.f32.mrb[0].mxu0
      %v695 = vpop.f32.mrb[0].mxu0
      %v696 = vadd.f32 0.0, %v695
      %v697 = vpop.f32.mrb[0].mxu0
      %698 = vdwg.mxu0
      %v699 = vadd.f32 %v637, %v693
      %v700 = vadd.f32 %v638, %v696
      %v701 = vmax.f32 %v699, 0.0
      %v702 = vmax.f32 %v700, 0.0
      %v703 = vpack.c.bf16 %v702, %v701
      %v705 = vunpack.c.l.b16 %v703
      %v706 = vunpack.c.h.b16 %v703
      %v707 = vpack.c.b16 %v705, %v705
      %v708 = vpack.c.b16 %v706, %v706
      %vm711 = vcmask 519168
      %712 = vst.msk [vmem:[%s163] sm:$0xf] %vm711, %v707
      %713 = vst.msk [vmem:[%s163 + $0x4] sm:$0xf] %vm711, %v708
      %p714 = scmp.lt.s32.totalorder %s17, 1
      %s715 = scalar_select %p714, %s17, 1
      %p716 = scmp.lt.s32.totalorder %s18, 0
      %s717 = scalar_select %p716, %s18, 0
      %s718 = smul.addr %s715, 2
      %s719 = sadd.s32 %s717, %s718
      %s720 = smul.addr %s719, 4
      %s721 = scalar_lea.vmem %s2, %s720
      // Predicated region
      $region29: #{critic_srgan_forward.5} parent=27 // pred_check
        %p722 = pneg %p92
      $region30: #{critic_srgan_forward.5} parent=27 // pred_check_branch
        %724 = sbr.rel (%p722) target = $region32
      $region31: #{critic_srgan_forward.5} parent=27 // pred_region
        _
      $region32: #{critic_srgan_forward.5} parent=27 // pred_fallthru
        _
    $region28: #{critic_srgan_forward.5} parent=5 // pred_fallthru
      _
    %p725 = scmp.le.s32.totalorder 2, %s8
    // Predicated region
    $region33: #{critic_srgan_forward.5} parent=5 // pred_check
      %p726 = pneg %p725
    $region34: #{critic_srgan_forward.5} parent=5 // pred_check_branch
      %728 = sbr.rel (%p726) target = $region36
    $region35: #{critic_srgan_forward.5} parent=5 // pred_region
      %s729 = ssub.s32 %s8, 2
      // Predicated region
      $region37: #{critic_srgan_forward.5} parent=35 // pred_check
        %p730 = pneg %p98
      $region38: #{critic_srgan_forward.5} parent=35 // pred_check_branch
        %732 = sbr.rel (%p730) target = $region40
      $region39: #{critic_srgan_forward.5} parent=35 // pred_region
        %p733 = scmp.lt.s32.totalorder %s19, 1
        %s734 = scalar_select %p733, %s19, 1
        %p735 = scmp.lt.s32.totalorder %s20, 0
        %s736 = scalar_select %p735, %s20, 0
        %s737 = smul.addr %s734, 2
        %s738 = sadd.s32 %s736, %s737
        %s739 = smul.addr %s738, 4
        %s740 = scalar_lea.vmem %s2, %s739
      $region40: #{critic_srgan_forward.5} parent=35 // pred_fallthru
        _
    $region36: #{critic_srgan_forward.5} parent=5 // pred_fallthru
      _
  $region6: #{critic_srgan_forward.5} parent=0 // loop_footer
    %s12 = sadd.s32 1, %s8
  $region7: #{critic_srgan_forward.5} parent=0 // loop_footer_branch
    %7 = sbr.rel target = $region3
  $region8: #{critic_srgan_forward.5} parent=0 // loop_exit
    _

// kernel: critic_srgan_forward.7
$region0: #{critic_srgan_forward.7}
  #allocation0 [shape = 'u32[]', space=smem, size = 0x4, offset = 0x4, fixed_abs, tag = 'smem constant byte address 0x4 - core index']
  #allocation1 [shape = 'u32[144,128]{1,0:T(1,128)}', space=vmem, size = 0x12000, scoped, tag = 'internal scratch']
  %s0 = inlined_call_operand.vmem [shape: bf16[2,3,1,16,80], index: 0, kind: input, shape index: {}]
  %s1 = inlined_call_operand.vmem [shape: bf16[9,1,16], index: 1, kind: input, shape index: {}]
  %s2 = inlined_call_operand.vmem [shape: f32[2,1,64], index: 2, kind: output, shape index: {}]
  %s3 = sld [smem:[#allocation0]]
  $region41: #{critic_srgan_forward.7} parent=0
    _
  %s5 = ssub.s32 1, %s3
  %s6 = scalar_select 0, %s5, %s3
  loop: start=0, step=1, limit=4
  $region2: #{critic_srgan_forward.7} parent=0 // loop_pre_header
    _
  $region3: #{critic_srgan_forward.7} parent=0 // loop_header
    %s8 = sphi 0, %s12
    %p9 = scmp.ge.s32.totalorder %s8, 4
    %s15 = sphi 0, %s27
    %s16 = sphi 0, %s23
    %s17 = sphi 0, %s15
    %s18 = sphi 0, %s16
    %s19 = sphi 0, %s17
    %s20 = sphi 0, %s18
    %s30 = sphi 0, %s32
    %s33 = sphi 0, %s30
    %s34 = sphi 0, %s33
    %s50 = sphi 0, %s34
    %s54 = sphi 0, %s54
    %s56 = sphi 0, %s54
    %s57 = sphi 0, %s56
    %s71 = sphi 0, %s57
    %s79 = sphi 0, %s81
    %s82 = sphi 0, %s79
    %s83 = sphi 0, %s82
    %s99 = sphi 0, %s83
  $region4: #{critic_srgan_forward.7} parent=0 // loop_header_branch
    %11 = sbr.rel (%p9) target = $region8
  $region5: #{critic_srgan_forward.7} parent=0 // loop_body
    %s13 = ssub.s32 %s8, 1
    %s14 = ssub.s32 %s8, 2
    %s21 = sadd.s32 1, %s16
    %p22 = scmp.ge.s32.totalorder %s21, 1
    %s23 = scalar_select %p22, 0, %s21
    %s24 = sadd.s32 1, %s15
    %s25 = scalar_select %p22, %s24, %s15
    %p26 = scmp.ge.s32.totalorder %s25, 2
    %s27 = scalar_select %p26, 0, %s25
    %s28 = ssub.s32 %s15, %s27
    %p29 = scmp.eq.s32.totalorder %s28, 0
    %s31 = sadd.s32 %s30, 1
    %s32 = scalar_select %p29, %s30, %s31
    %p35 = pneg %p29
    %p36 = scmp.eq.s32.totalorder %s8, 1
    %p37 = por %p35, %p36
    %p38 = scmp.ne.s32.totalorder %s30, %s33
    %p39 = scmp.eq.s32.totalorder %s8, 0
    %p40 = por %p38, %p39
    %p41 = scmp.ne.s32.totalorder %s30, %s33
    %p42 = scmp.eq.s32.totalorder %s13, 1
    %p43 = por %p41, %p42
    %p44 = scmp.ne.s32.totalorder %s33, %s34
    %p45 = scmp.eq.s32.totalorder %s13, 0
    %p46 = por %p44, %p45
    %p47 = scmp.ne.s32.totalorder %s33, %s34
    %p48 = scmp.eq.s32.totalorder %s14, 1
    %p49 = por %p47, %p48
    %p51 = scmp.ne.s32.totalorder %s34, %s50
    %p52 = scmp.eq.s32.totalorder %s14, 0
    %p53 = por %p51, %p52
    %s55 = sadd.s32 %s54, 1
    %p58 = scmp.eq.s32.totalorder %s8, 1
    %p59 = scmp.ne.s32.totalorder %s54, %s56
    %p60 = scmp.eq.s32.totalorder %s8, 0
    %p61 = por %p59, %p60
    %p62 = scmp.ne.s32.totalorder %s54, %s56
    %p63 = scmp.eq.s32.totalorder %s13, 1
    %p64 = por %p62, %p63
    %p65 = scmp.ne.s32.totalorder %s56, %s57
    %p66 = scmp.eq.s32.totalorder %s13, 0
    %p67 = por %p65, %p66
    %p68 = scmp.ne.s32.totalorder %s56, %s57
    %p69 = scmp.eq.s32.totalorder %s14, 1
    %p70 = por %p68, %p69
    %p72 = scmp.ne.s32.totalorder %s57, %s71
    %p73 = scmp.eq.s32.totalorder %s14, 0
    %p74 = por %p72, %p73
    %s75 = ssub.s32 %s15, %s27
    %s76 = ssub.s32 %s16, %s23
    %s77 = sor.u32 %s75, %s76
    %p78 = scmp.eq.s32.totalorder %s77, 0
    %s80 = sadd.s32 %s79, 1
    %s81 = scalar_select %p78, %s79, %s80
    %p84 = pneg %p78
    %p85 = scmp.eq.s32.totalorder %s8, 1
    %p86 = por %p84, %p85
    %p87 = scmp.ne.s32.totalorder %s79, %s82
    %p88 = scmp.eq.s32.totalorder %s8, 0
    %p89 = por %p87, %p88
    %p90 = scmp.ne.s32.totalorder %s79, %s82
    %p91 = scmp.eq.s32.totalorder %s13, 1
    %p92 = por %p90, %p91
    %p93 = scmp.ne.s32.totalorder %s82, %s83
    %p94 = scmp.eq.s32.totalorder %s13, 0
    %p95 = por %p93, %p94
    %p96 = scmp.ne.s32.totalorder %s82, %s83
    %p97 = scmp.eq.s32.totalorder %s14, 1
    %p98 = por %p96, %p97
    %p100 = scmp.ne.s32.totalorder %s83, %s99
    %p101 = scmp.eq.s32.totalorder %s14, 0
    %p102 = por %p100, %p101
    %p103 = scmp.le.s32.totalorder 1, %s8
    %p104 = scmp.lt.s32.totalorder %s8, 3
    %p105 = pnand %p103, %p104
    %p106 = pneg %p105
    // Predicated region
    $region9: #{critic_srgan_forward.7} parent=5 // pred_check
      _
    $region10: #{critic_srgan_forward.7} parent=5 // pred_check_branch
      %108 = sbr.rel (%p105) target = $region12
    $region11: #{critic_srgan_forward.7} parent=5 // pred_region
      %s109 = ssub.s32 %s8, 1
      // Predicated region
      $region13: #{critic_srgan_forward.7} parent=11 // pred_check
        %p110 = pneg %p67
      $region14: #{critic_srgan_forward.7} parent=11 // pred_check_branch
        %112 = sbr.rel (%p110) target = $region16
      $region15: #{critic_srgan_forward.7} parent=11 // pred_region
        _
      $region16: #{critic_srgan_forward.7} parent=11 // pred_fallthru
        _
    $region12: #{critic_srgan_forward.7} parent=5 // pred_fallthru
      _
    %p113 = scmp.lt.s32.totalorder %s8, 2
    // Predicated region
    $region17: #{critic_srgan_forward.7} parent=5 // pred_check
      %p114 = pneg %p113
    $region18: #{critic_srgan_forward.7} parent=5 // pred_check_branch
      %116 = sbr.rel (%p114) target = $region20
    $region19: #{critic_srgan_forward.7} parent=5 // pred_region
      // Predicated region
      $region21: #{critic_srgan_forward.7} parent=19 // pred_check
        %p117 = pneg %p40
      $region22: #{critic_srgan_forward.7} parent=19 // pred_check_branch
        %119 = sbr.rel (%p117) target = $region24
      $region23: #{critic_srgan_forward.7} parent=19 // pred_region
        %p120 = scmp.lt.s32.totalorder %s15, 1
        %s121 = scalar_select %p120, %s15, 1
        %s122 = smul.addr %s121, 6
        %s123 = smul.addr %s122, 4
        %s124 = scalar_lea.vmem %s0, %s123
      $region24: #{critic_srgan_forward.7} parent=19 // pred_fallthru
        _
    $region20: #{critic_srgan_forward.7} parent=5 // pred_fallthru
      _
    %p125 = scmp.le.s32.totalorder 1, %s8
    %p126 = scmp.lt.s32.totalorder %s8, 3
    %p127 = pnand %p125, %p126
    %p128 = pneg %p127
    // Predicated region
    $region25: #{critic_srgan_forward.7} parent=5 // pred_check
      _
    $region26: #{critic_srgan_forward.7} parent=5 // pred_check_branch
      %130 = sbr.rel (%p127) target = $region28
    $region27: #{critic_srgan_forward.7} parent=5 // pred_region
      %s131 = ssub.s32 %s8, 1
      %p132 = scmp.lt.s32.totalorder %s17, 1
      %s133 = scalar_select %p132, %s17, 1
      %s134 = smul.addr %s133, 6
      %s135 = smul.addr %s134, 4
      %s136 = scalar_lea.vmem %s0, %s135
      %p137 = pneg %p46
      %p138 = pneg %p43
      %p139 = pneg %p67
      %p140 = pneg %p64
      %p141 = pneg %p95
      %p142 = pneg %p92
      %p143 = scmp.lt.s32.totalorder %s17, 1
      %s144 = scalar_select %p143, %s17, 1
      %p145 = scmp.lt.s32.totalorder %s18, 0
      %s146 = scalar_select %p145, %s18, 0
      %s147 = sadd.s32 %s146, %s144
      %s148 = scalar_lea.vmem %s2, %s147
      %p149 = scmp.lt.s32.totalorder %s17, 1
      %s150 = scalar_select %p149, %s17, 1
      %s151 = smul.addr %s150, 6
      %s152 = smul.addr %s151, 4
      %s153 = scalar_lea.vmem %s0, %s152
      %p154 = scmp.lt.s32.totalorder %s17, 1
      %s155 = scalar_select %p154, %s17, 1
      %p156 = scmp.lt.s32.totalorder %s18, 0
      %s157 = scalar_select %p156, %s18, 0
      %s158 = sadd.s32 %s157, %s155
      %s159 = scalar_lea.vmem %s2, %s158
      %v161 = vld [vmem:[%s1] sm:$0x1]
      %v162 = vld [vmem:[%s153] sm:$0xf]
      %v163 = vld [vmem:[%s153 + $0x4] sm:$0xf]
      %s164 = scalar_lea.vmem %s1, 1
      %v165 = vld [vmem:[%s164] sm:$0x1]
      %s166 = scalar_lea.vmem %s153, 8
      %v167 = vld [vmem:[%s166] sm:$0xf]
      %v168 = vld [vmem:[%s166 + $0x4] sm:$0xf]
      %v171 = vunpack.c.l.b16 %v167
      %v172 = vunpack.c.l.b16 %v168
      %v173 = vpack.c.b16 %v172, %v171
      %vm175 = vcmask 130048
      %v177 = vsel %vm175, %v165, 0
      %179 = vmatprep.subr.bf16.mxu0 0
      %180 = vmatpush1.bf16.msra.mxu0 %v173
      %181 = vmatprep.subr.bf16.mxu0 0
      %182 = vmatpush1.bf16.msra.mxu0 0
      %183 = vmatprep.subr.bf16.mxu0 0
      %184 = vmatpush1.bf16.msra.mxu0 0
      %185 = vmatprep.subr.bf16.mxu0 0
      %186 = vmatpush1.bf16.msra.mxu0 0
      %187 = vmatprep.subr.bf16.mxu0 0
      %188 = vmatpush1.bf16.msra.mxu0 0
      %189 = vmatprep.subr.bf16.mxu0 0
      %190 = vmatpush1.bf16.msra.mxu0 0
      %191 = vmatprep.subr.bf16.mxu0 0
      %192 = vmatpush1.bf16.msra.mxu0 0
      %193 = vmatprep.subr.bf16.mxu0 0
      %194 = vmatpush1.bf16.msra.mxu0 0
      %195 = vmatprep.subr.bf16.mxu0 0
      %196 = vmatpush1.bf16.msra.mxu0 0
      %197 = vmatprep.subr.bf16.mxu0 0
      %198 = vmatpush1.bf16.msra.mxu0 0
      %199 = vmatprep.subr.bf16.mxu0 0
      %200 = vmatpush1.bf16.msra.mxu0 0
      %201 = vmatprep.subr.bf16.mxu0 0
      %202 = vmatpush1.bf16.msra.mxu0 0
      %203 = vmatprep.subr.bf16.mxu0 0
      %204 = vmatpush1.bf16.msra.mxu0 0
      %205 = vmatprep.subr.bf16.mxu0 0
      %206 = vmatpush1.bf16.msra.mxu0 0
      %207 = vmatprep.subr.bf16.mxu0 0
      %208 = vmatpush1.bf16.msra.mxu0 0
      %209 = vmatprep.subr.bf16.mxu0 0
      %210 = vmatpush1.bf16.msra.mxu0 0
      %211 = vmatprep.mubr.bf16.mxu0 0
      %212 = vmatmul.mubr.bf16.gmra.mrb[0].mxu0 %v177
      %v213 = vpop.f32.mrb[0].mxu0
      %v214 = vadd.f32 0.0, %v213
      %v215 = vpop.f32.mrb[0].mxu0
      %v216 = vpop.f32.mrb[0].mxu0
      %v217 = vpop.f32.mrb[0].mxu0
      %218 = vdwg.mxu0
      %v221 = vunpack.c.l.b16 %v162
      %v222 = vunpack.c.l.b16 %v163
      %v223 = vpack.c.b16 %v222, %v221
      %v226 = vsel %vm175, %v161, 0
      %228 = vmatprep.subr.bf16.mxu0 0
      %229 = vmatpush1.bf16.msra.mxu0 %v223
      %230 = vmatprep.subr.bf16.mxu0 0
      %231 = vmatpush1.bf16.msra.mxu0 0
      %232 = vmatprep.subr.bf16.mxu0 0
      %233 = vmatpush1.bf16.msra.mxu0 0
      %234 = vmatprep.subr.bf16.mxu0 0
      %235 = vmatpush1.bf16.msra.mxu0 0
      %236 = vmatprep.subr.bf16.mxu0 0
      %237 = vmatpush1.bf16.msra.mxu0 0
      %238 = vmatprep.subr.bf16.mxu0 0
      %239 = vmatpush1.bf16.msra.mxu0 0
      %240 = vmatprep.subr.bf16.mxu0 0
      %241 = vmatpush1.bf16.msra.mxu0 0
      %242 = vmatprep.subr.bf16.mxu0 0
      %243 = vmatpush1.bf16.msra.mxu0 0
      %244 = vmatprep.subr.bf16.mxu0 0
      %245 = vmatpush1.bf16.msra.mxu0 0
      %246 = vmatprep.subr.bf16.mxu0 0
      %247 = vmatpush1.bf16.msra.mxu0 0
      %248 = vmatprep.subr.bf16.mxu0 0
      %249 = vmatpush1.bf16.msra.mxu0 0
      %250 = vmatprep.subr.bf16.mxu0 0
      %251 = vmatpush1.bf16.msra.mxu0 0
      %252 = vmatprep.subr.bf16.mxu0 0
      %253 = vmatpush1.bf16.msra.mxu0 0
      %254 = vmatprep.subr.bf16.mxu0 0
      %255 = vmatpush1.bf16.msra.mxu0 0
      %256 = vmatprep.subr.bf16.mxu0 0
      %257 = vmatpush1.bf16.msra.mxu0 0
      %258 = vmatprep.subr.bf16.mxu0 0
      %259 = vmatpush1.bf16.msra.mxu0 0
      %260 = vmatprep.mubr.bf16.mxu0 0
      %261 = vmatmul.mubr.bf16.gmra.mrb[0].mxu0 %v226
      %v262 = vpop.f32.mrb[0].mxu0
      %v263 = vadd.f32 %v214, %v262
      %v264 = vpop.f32.mrb[0].mxu0
      %v265 = vpop.f32.mrb[0].mxu0
      %v266 = vpop.f32.mrb[0].mxu0
      %267 = vdwg.mxu0
      %s268 = scalar_lea.vmem %s1, 2
      %v269 = vld [vmem:[%s268] sm:$0x1]
      %s270 = scalar_lea.vmem %s153, 16
      %v271 = vld [vmem:[%s270] sm:$0xf]
      %v272 = vld [vmem:[%s270 + $0x4] sm:$0xf]
      %v275 = vunpack.c.l.b16 %v271
      %v276 = vunpack.c.l.b16 %v272
      %v277 = vpack.c.b16 %v276, %v275
      %v280 = vsel %vm175, %v269, 0
      %282 = vmatprep.subr.bf16.mxu0 0
      %283 = vmatpush1.bf16.msra.mxu0 %v277
      %284 = vmatprep.subr.bf16.mxu0 0
      %285 = vmatpush1.bf16.msra.mxu0 0
      %286 = vmatprep.subr.bf16.mxu0 0
      %287 = vmatpush1.bf16.msra.mxu0 0
      %288 = vmatprep.subr.bf16.mxu0 0
      %289 = vmatpush1.bf16.msra.mxu0 0
      %290 = vmatprep.subr.bf16.mxu0 0
      %291 = vmatpush1.bf16.msra.mxu0 0
      %292 = vmatprep.subr.bf16.mxu0 0
      %293 = vmatpush1.bf16.msra.mxu0 0
      %294 = vmatprep.subr.bf16.mxu0 0
      %295 = vmatpush1.bf16.msra.mxu0 0
      %296 = vmatprep.subr.bf16.mxu0 0
      %297 = vmatpush1.bf16.msra.mxu0 0
      %298 = vmatprep.subr.bf16.mxu0 0
      %299 = vmatpush1.bf16.msra.mxu0 0
      %300 = vmatprep.subr.bf16.mxu0 0
      %301 = vmatpush1.bf16.msra.mxu0 0
      %302 = vmatprep.subr.bf16.mxu0 0
      %303 = vmatpush1.bf16.msra.mxu0 0
      %304 = vmatprep.subr.bf16.mxu0 0
      %305 = vmatpush1.bf16.msra.mxu0 0
      %306 = vmatprep.subr.bf16.mxu0 0
      %307 = vmatpush1.bf16.msra.mxu0 0
      %308 = vmatprep.subr.bf16.mxu0 0
      %309 = vmatpush1.bf16.msra.mxu0 0
      %310 = vmatprep.subr.bf16.mxu0 0
      %311 = vmatpush1.bf16.msra.mxu0 0
      %312 = vmatprep.subr.bf16.mxu0 0
      %313 = vmatpush1.bf16.msra.mxu0 0
      %314 = vmatprep.mubr.bf16.mxu0 0
      %315 = vmatmul.mubr.bf16.gmra.mrb[0].mxu0 %v280
      %v316 = vpop.f32.mrb[0].mxu0
      %v317 = vadd.f32 0.0, %v316
      %v318 = vpop.f32.mrb[0].mxu0
      %v319 = vpop.f32.mrb[0].mxu0
      %v320 = vpop.f32.mrb[0].mxu0
      %321 = vdwg.mxu0
      %v322 = vadd.f32 %v263, %v317
      %s323 = scalar_lea.vmem %s1, 3
      %v324 = vld [vmem:[%s323] sm:$0x1]
      %325 = vrot.lane.b32.xlu0 %v223, 120
      %v326 = vpop.permute.xlu0 %325
      %v329 = vsel %vm175, %v324, 0
      %331 = vmatprep.subr.bf16.mxu0 0
      %332 = vmatpush1.bf16.msra.mxu0 %v326
      %333 = vmatprep.subr.bf16.mxu0 0
      %334 = vmatpush1.bf16.msra.mxu0 0
      %335 = vmatprep.subr.bf16.mxu0 0
      %336 = vmatpush1.bf16.msra.mxu0 0
      %337 = vmatprep.subr.bf16.mxu0 0
      %338 = vmatpush1.bf16.msra.mxu0 0
      %339 = vmatprep.subr.bf16.mxu0 0
      %340 = vmatpush1.bf16.msra.mxu0 0
      %341 = vmatprep.subr.bf16.mxu0 0
      %342 = vmatpush1.bf16.msra.mxu0 0
      %343 = vmatprep.subr.bf16.mxu0 0
      %344 = vmatpush1.bf16.msra.mxu0 0
      %345 = vmatprep.subr.bf16.mxu0 0
      %346 = vmatpush1.bf16.msra.mxu0 0
      %347 = vmatprep.subr.bf16.mxu0 0
      %348 = vmatpush1.bf16.msra.mxu0 0
      %349 = vmatprep.subr.bf16.mxu0 0
      %350 = vmatpush1.bf16.msra.mxu0 0
      %351 = vmatprep.subr.bf16.mxu0 0
      %352 = vmatpush1.bf16.msra.mxu0 0
      %353 = vmatprep.subr.bf16.mxu0 0
      %354 = vmatpush1.bf16.msra.mxu0 0
      %355 = vmatprep.subr.bf16.mxu0 0
      %356 = vmatpush1.bf16.msra.mxu0 0
      %357 = vmatprep.subr.bf16.mxu0 0
      %358 = vmatpush1.bf16.msra.mxu0 0
      %359 = vmatprep.subr.bf16.mxu0 0
      %360 = vmatpush1.bf16.msra.mxu0 0
      %361 = vmatprep.subr.bf16.mxu0 0
      %362 = vmatpush1.bf16.msra.mxu0 0
      %363 = vmatprep.mubr.bf16.mxu0 0
      %364 = vmatmul.mubr.bf16.gmra.mrb[0].mxu0 %v329
      %v365 = vpop.f32.mrb[0].mxu0
      %v366 = vadd.f32 0.0, %v365
      %v367 = vpop.f32.mrb[0].mxu0
      %v368 = vpop.f32.mrb[0].mxu0
      %v369 = vpop.f32.mrb[0].mxu0
      %370 = vdwg.mxu0
      %v371 = vadd.f32 %v322, %v366
      %s372 = scalar_lea.vmem %s1, 4
      %v373 = vld [vmem:[%s372] sm:$0x1]
      %374 = vrot.lane.b32.xlu0 %v173, 120
      %v375 = vpop.permute.xlu0 %374
      %v378 = vsel %vm175, %v373, 0
      %380 = vmatprep.subr.bf16.mxu0 0
      %381 = vmatpush1.bf16.msra.mxu0 %v375
      %382 = vmatprep.subr.bf16.mxu0 0
      %383 = vmatpush1.bf16.msra.mxu0 0
      %384 = vmatprep.subr.bf16.mxu0 0
      %385 = vmatpush1.bf16.msra.mxu0 0
      %386 = vmatprep.subr.bf16.mxu0 0
      %387 = vmatpush1.bf16.msra.mxu0 0
      %388 = vmatprep.subr.bf16.mxu0 0
      %389 = vmatpush1.bf16.msra.mxu0 0
      %390 = vmatprep.subr.bf16.mxu0 0
      %391 = vmatpush1.bf16.msra.mxu0 0
      %392 = vmatprep.subr.bf16.mxu0 0
      %393 = vmatpush1.bf16.msra.mxu0 0
      %394 = vmatprep.subr.bf16.mxu0 0
      %395 = vmatpush1.bf16.msra.mxu0 0
      %396 = vmatprep.subr.bf16.mxu0 0
      %397 = vmatpush1.bf16.msra.mxu0 0
      %398 = vmatprep.subr.bf16.mxu0 0
      %399 = vmatpush1.bf16.msra.mxu0 0
      %400 = vmatprep.subr.bf16.mxu0 0
      %401 = vmatpush1.bf16.msra.mxu0 0
      %402 = vmatprep.subr.bf16.mxu0 0
      %403 = vmatpush1.bf16.msra.mxu0 0
      %404 = vmatprep.subr.bf16.mxu0 0
      %405 = vmatpush1.bf16.msra.mxu0 0
      %406 = vmatprep.subr.bf16.mxu0 0
      %407 = vmatpush1.bf16.msra.mxu0 0
      %408 = vmatprep.subr.bf16.mxu0 0
      %409 = vmatpush1.bf16.msra.mxu0 0
      %410 = vmatprep.subr.bf16.mxu0 0
      %411 = vmatpush1.bf16.msra.mxu0 0
      %412 = vmatprep.mubr.bf16.mxu0 0
      %413 = vmatmul.mubr.bf16.gmra.mrb[0].mxu0 %v378
      %v414 = vpop.f32.mrb[0].mxu0
      %v415 = vadd.f32 0.0, %v414
      %v416 = vpop.f32.mrb[0].mxu0
      %v417 = vpop.f32.mrb[0].mxu0
      %v418 = vpop.f32.mrb[0].mxu0
      %419 = vdwg.mxu0
      %v420 = vadd.f32 %v371, %v415
      %s421 = scalar_lea.vmem %s1, 5
      %v422 = vld [vmem:[%s421] sm:$0x1]
      %423 = vrot.lane.b32.xlu0 %v277, 120
      %v424 = vpop.permute.xlu0 %423
      %v427 = vsel %vm175, %v422, 0
      %429 = vmatprep.subr.bf16.mxu0 0
      %430 = vmatpush1.bf16.msra.mxu0 %v424
      %431 = vmatprep.subr.bf16.mxu0 0
      %432 = vmatpush1.bf16.msra.mxu0 0
      %433 = vmatprep.subr.bf16.mxu0 0
      %434 = vmatpush1.bf16.msra.mxu0 0
      %435 = vmatprep.subr.bf16.mxu0 0
      %436 = vmatpush1.bf16.msra.mxu0 0
      %437 = vmatprep.subr.bf16.mxu0 0
      %438 = vmatpush1.bf16.msra.mxu0 0
      %439 = vmatprep.subr.bf16.mxu0 0
      %440 = vmatpush1.bf16.msra.mxu0 0
      %441 = vmatprep.subr.bf16.mxu0 0
      %442 = vmatpush1.bf16.msra.mxu0 0
      %443 = vmatprep.subr.bf16.mxu0 0
      %444 = vmatpush1.bf16.msra.mxu0 0
      %445 = vmatprep.subr.bf16.mxu0 0
      %446 = vmatpush1.bf16.msra.mxu0 0
      %447 = vmatprep.subr.bf16.mxu0 0
      %448 = vmatpush1.bf16.msra.mxu0 0
      %449 = vmatprep.subr.bf16.mxu0 0
      %450 = vmatpush1.bf16.msra.mxu0 0
      %451 = vmatprep.subr.bf16.mxu0 0
      %452 = vmatpush1.bf16.msra.mxu0 0
      %453 = vmatprep.subr.bf16.mxu0 0
      %454 = vmatpush1.bf16.msra.mxu0 0
      %455 = vmatprep.subr.bf16.mxu0 0
      %456 = vmatpush1.bf16.msra.mxu0 0
      %457 = vmatprep.subr.bf16.mxu0 0
      %458 = vmatpush1.bf16.msra.mxu0 0
      %459 = vmatprep.subr.bf16.mxu0 0
      %460 = vmatpush1.bf16.msra.mxu0 0
      %461 = vmatprep.mubr.bf16.mxu0 0
      %462 = vmatmul.mubr.bf16.gmra.mrb[0].mxu0 %v427
      %v463 = vpop.f32.mrb[0].mxu0
      %v464 = vadd.f32 0.0, %v463
      %v465 = vpop.f32.mrb[0].mxu0
      %v466 = vpop.f32.mrb[0].mxu0
      %v467 = vpop.f32.mrb[0].mxu0
      %468 = vdwg.mxu0
      %v469 = vadd.f32 %v420, %v464
      %s470 = scalar_lea.vmem %s1, 6
      %v471 = vld [vmem:[%s470] sm:$0x1]
      %472 = vrot.lane.b32.xlu0 %v223, 112
      %v473 = vpop.permute.xlu0 %472
      %v476 = vsel %vm175, %v471, 0
      %478 = vmatprep.subr.bf16.mxu0 0
      %479 = vmatpush1.bf16.msra.mxu0 %v473
      %480 = vmatprep.subr.bf16.mxu0 0
      %481 = vmatpush1.bf16.msra.mxu0 0
      %482 = vmatprep.subr.bf16.mxu0 0
      %483 = vmatpush1.bf16.msra.mxu0 0
      %484 = vmatprep.subr.bf16.mxu0 0
      %485 = vmatpush1.bf16.msra.mxu0 0
      %486 = vmatprep.subr.bf16.mxu0 0
      %487 = vmatpush1.bf16.msra.mxu0 0
      %488 = vmatprep.subr.bf16.mxu0 0
      %489 = vmatpush1.bf16.msra.mxu0 0
      %490 = vmatprep.subr.bf16.mxu0 0
      %491 = vmatpush1.bf16.msra.mxu0 0
      %492 = vmatprep.subr.bf16.mxu0 0
      %493 = vmatpush1.bf16.msra.mxu0 0
      %494 = vmatprep.subr.bf16.mxu0 0
      %495 = vmatpush1.bf16.msra.mxu0 0
      %496 = vmatprep.subr.bf16.mxu0 0
      %497 = vmatpush1.bf16.msra.mxu0 0
      %498 = vmatprep.subr.bf16.mxu0 0
      %499 = vmatpush1.bf16.msra.mxu0 0
      %500 = vmatprep.subr.bf16.mxu0 0
      %501 = vmatpush1.bf16.msra.mxu0 0
      %502 = vmatprep.subr.bf16.mxu0 0
      %503 = vmatpush1.bf16.msra.mxu0 0
      %504 = vmatprep.subr.bf16.mxu0 0
      %505 = vmatpush1.bf16.msra.mxu0 0
      %506 = vmatprep.subr.bf16.mxu0 0
      %507 = vmatpush1.bf16.msra.mxu0 0
      %508 = vmatprep.subr.bf16.mxu0 0
      %509 = vmatpush1.bf16.msra.mxu0 0
      %510 = vmatprep.mubr.bf16.mxu0 0
      %511 = vmatmul.mubr.bf16.gmra.mrb[0].mxu0 %v476
      %v512 = vpop.f32.mrb[0].mxu0
      %v513 = vadd.f32 0.0, %v512
      %v514 = vpop.f32.mrb[0].mxu0
      %v515 = vpop.f32.mrb[0].mxu0
      %v516 = vpop.f32.mrb[0].mxu0
      %517 = vdwg.mxu0
      %v518 = vadd.f32 %v469, %v513
      %s519 = scalar_lea.vmem %s1, 7
      %v520 = vld [vmem:[%s519] sm:$0x1]
      %521 = vrot.lane.b32.xlu0 %v173, 112
      %v522 = vpop.permute.xlu0 %521
      %v525 = vsel %vm175, %v520, 0
      %527 = vmatprep.subr.bf16.mxu0 0
      %528 = vmatpush1.bf16.msra.mxu0 %v522
      %529 = vmatprep.subr.bf16.mxu0 0
      %530 = vmatpush1.bf16.msra.mxu0 0
      %531 = vmatprep.subr.bf16.mxu0 0
      %532 = vmatpush1.bf16.msra.mxu0 0
      %533 = vmatprep.subr.bf16.mxu0 0
      %534 = vmatpush1.bf16.msra.mxu0 0
      %535 = vmatprep.subr.bf16.mxu0 0
      %536 = vmatpush1.bf16.msra.mxu0 0
      %537 = vmatprep.subr.bf16.mxu0 0
      %538 = vmatpush1.bf16.msra.mxu0 0
      %539 = vmatprep.subr.bf16.mxu0 0
      %540 = vmatpush1.bf16.msra.mxu0 0
      %541 = vmatprep.subr.bf16.mxu0 0
      %542 = vmatpush1.bf16.msra.mxu0 0
      %543 = vmatprep.subr.bf16.mxu0 0
      %544 = vmatpush1.bf16.msra.mxu0 0
      %545 = vmatprep.subr.bf16.mxu0 0
      %546 = vmatpush1.bf16.msra.mxu0 0
      %547 = vmatprep.subr.bf16.mxu0 0
      %548 = vmatpush1.bf16.msra.mxu0 0
      %549 = vmatprep.subr.bf16.mxu0 0
      %550 = vmatpush1.bf16.msra.mxu0 0
      %551 = vmatprep.subr.bf16.mxu0 0
      %552 = vmatpush1.bf16.msra.mxu0 0
      %553 = vmatprep.subr.bf16.mxu0 0
      %554 = vmatpush1.bf16.msra.mxu0 0
      %555 = vmatprep.subr.bf16.mxu0 0
      %556 = vmatpush1.bf16.msra.mxu0 0
      %557 = vmatprep.subr.bf16.mxu0 0
      %558 = vmatpush1.bf16.msra.mxu0 0
      %559 = vmatprep.mubr.bf16.mxu0 0
      %560 = vmatmul.mubr.bf16.gmra.mrb[0].mxu0 %v525
      %v561 = vpop.f32.mrb[0].mxu0
      %v562 = vadd.f32 0.0, %v561
      %v563 = vpop.f32.mrb[0].mxu0
      %v564 = vpop.f32.mrb[0].mxu0
      %v565 = vpop.f32.mrb[0].mxu0
      %566 = vdwg.mxu0
      %v567 = vadd.f32 %v518, %v562
      %s568 = scalar_lea.vmem %s1, 8
      %v569 = vld [vmem:[%s568] sm:$0x1]
      %570 = vrot.lane.b32.xlu0 %v277, 112
      %v571 = vpop.permute.xlu0 %570
      %v574 = vsel %vm175, %v569, 0
      %576 = vmatprep.subr.bf16.mxu0 0
      %577 = vmatpush1.bf16.msra.mxu0 %v571
      %578 = vmatprep.subr.bf16.mxu0 0
      %579 = vmatpush1.bf16.msra.mxu0 0
      %580 = vmatprep.subr.bf16.mxu0 0
      %581 = vmatpush1.bf16.msra.mxu0 0
      %582 = vmatprep.subr.bf16.mxu0 0
      %583 = vmatpush1.bf16.msra.mxu0 0
      %584 = vmatprep.subr.bf16.mxu0 0
      %585 = vmatpush1.bf16.msra.mxu0 0
      %586 = vmatprep.subr.bf16.mxu0 0
      %587 = vmatpush1.bf16.msra.mxu0 0
      %588 = vmatprep.subr.bf16.mxu0 0
      %589 = vmatpush1.bf16.msra.mxu0 0
      %590 = vmatprep.subr.bf16.mxu0 0
      %591 = vmatpush1.bf16.msra.mxu0 0
      %592 = vmatprep.subr.bf16.mxu0 0
      %593 = vmatpush1.bf16.msra.mxu0 0
      %594 = vmatprep.subr.bf16.mxu0 0
      %595 = vmatpush1.bf16.msra.mxu0 0
      %596 = vmatprep.subr.bf16.mxu0 0
      %597 = vmatpush1.bf16.msra.mxu0 0
      %598 = vmatprep.subr.bf16.mxu0 0
      %599 = vmatpush1.bf16.msra.mxu0 0
      %600 = vmatprep.subr.bf16.mxu0 0
      %601 = vmatpush1.bf16.msra.mxu0 0
      %602 = vmatprep.subr.bf16.mxu0 0
      %603 = vmatpush1.bf16.msra.mxu0 0
      %604 = vmatprep.subr.bf16.mxu0 0
      %605 = vmatpush1.bf16.msra.mxu0 0
      %606 = vmatprep.subr.bf16.mxu0 0
      %607 = vmatpush1.bf16.msra.mxu0 0
      %608 = vmatprep.mubr.bf16.mxu0 0
      %609 = vmatmul.mubr.bf16.gmra.mrb[0].mxu0 %v574
      %v610 = vpop.f32.mrb[0].mxu0
      %v611 = vadd.f32 0.0, %v610
      %v612 = vpop.f32.mrb[0].mxu0
      %v613 = vpop.f32.mrb[0].mxu0
      %v614 = vpop.f32.mrb[0].mxu0
      %615 = vdwg.mxu0
      %v616 = vadd.f32 %v567, %v611
      %vm617 = vcmask 516096
      %618 = vst.msk [vmem:[%s159] sm:$0x1] %vm617, %v616
      %p619 = scmp.lt.s32.totalorder %s17, 1
      %s620 = scalar_select %p619, %s17, 1
      %p621 = scmp.lt.s32.totalorder %s18, 0
      %s622 = scalar_select %p621, %s18, 0
      %s623 = sadd.s32 %s622, %s620
      %s624 = scalar_lea.vmem %s2, %s623
      // Predicated region
      $region29: #{critic_srgan_forward.7} parent=27 // pred_check
        %p625 = pneg %p92
      $region30: #{critic_srgan_forward.7} parent=27 // pred_check_branch
        %627 = sbr.rel (%p625) target = $region32
      $region31: #{critic_srgan_forward.7} parent=27 // pred_region
        _
      $region32: #{critic_srgan_forward.7} parent=27 // pred_fallthru
        _
    $region28: #{critic_srgan_forward.7} parent=5 // pred_fallthru
      _
    %p628 = scmp.le.s32.totalorder 2, %s8
    // Predicated region
    $region33: #{critic_srgan_forward.7} parent=5 // pred_check
      %p629 = pneg %p628
    $region34: #{critic_srgan_forward.7} parent=5 // pred_check_branch
      %631 = sbr.rel (%p629) target = $region36
    $region35: #{critic_srgan_forward.7} parent=5 // pred_region
      %s632 = ssub.s32 %s8, 2
      // Predicated region
      $region37: #{critic_srgan_forward.7} parent=35 // pred_check
        %p633 = pneg %p98
      $region38: #{critic_srgan_forward.7} parent=35 // pred_check_branch
        %635 = sbr.rel (%p633) target = $region40
      $region39: #{critic_srgan_forward.7} parent=35 // pred_region
        %p636 = scmp.lt.s32.totalorder %s19, 1
        %s637 = scalar_select %p636, %s19, 1
        %p638 = scmp.lt.s32.totalorder %s20, 0
        %s639 = scalar_select %p638, %s20, 0
        %s640 = sadd.s32 %s639, %s637
        %s641 = scalar_lea.vmem %s2, %s640
      $region40: #{critic_srgan_forward.7} parent=35 // pred_fallthru
        _
    $region36: #{critic_srgan_forward.7} parent=5 // pred_fallthru
      _
  $region6: #{critic_srgan_forward.7} parent=0 // loop_footer
    %s12 = sadd.s32 1, %s8
  $region7: #{critic_srgan_forward.7} parent=0 // loop_footer_branch
    %7 = sbr.rel target = $region3
  $region8: #{critic_srgan_forward.7} parent=0 // loop_exit
    _

</llo_original>
